<compile_context>
chip_gen: v7x
topology: tpu7x:2x2x1
jax: 0.10.0
libtpu: 0.0.40
codegen_flags: <defaults>
</compile_context>

<pallas_src>
import functools

import jax
import jax.numpy as jnp
from jax import lax
from jax.experimental import pallas as pl
from jax.experimental.pallas import tpu as pltpu


# ----------------------------------------------------------------------------
# Fused forward kernel (single invocation, no grid)
# ----------------------------------------------------------------------------
def fused_forward_kernel(L_obs, L_cmd, nb_cmds,
                         ids_ref, emb_ref, gw_ref, b_ref, dqn_ref, h0_ref,
                         scores_ref, state_out_ref):
    v_pad, H = emb_ref.shape
    H3 = 3 * H
    n_tok = ids_ref.shape[1]
    n_cmd_tok = L_cmd * nb_cmds

    # Lane offsets inside the packed GRU weight slab (H, 18H):
    #   [o_wih | c_wih | s_wih | o_whh | c_whh | s_whh], each (H, 3H).
    OIH, CIH, SIH = 0, H3, 2 * H3
    OHH, CHH, SHH = 3 * H3, 4 * H3, 5 * H3

    # --- embedding of ALL (obs + cmd) tokens in one one-hot matmul -----------
    # One-hot is built transposed (V, n_tok): the lane-dense (1, n_tok) ids row
    # broadcasts along sublanes, so no transpose of runtime data is needed; the
    # dot contracts dim 0 of both operands (TN form).
    onehot_t = jnp.where(
        ids_ref[...] == lax.broadcasted_iota(jnp.int32, (v_pad, n_tok), 0),
        1.0, 0.0)
    x_all = lax.dot_general(onehot_t, emb_ref[...], (((0,), (0,)), ((), ())),
                            preferred_element_type=jnp.float32)   # (n_tok, H)

    # --- fused hoisted input projection for BOTH encoder GRUs ----------------
    # N = 2*3H = 192: one MXU pass on v6e/v7x (two on v5e); cross terms are
    # discarded by the slices below.
    gi_big = jnp.dot(x_all, gw_ref[:, OIH:CIH + H3],
                     preferred_element_type=jnp.float32)          # (n_tok, 6H)
    cmd_gi = gi_big[L_obs:L_obs + n_cmd_tok, H3:2 * H3]           # (L_cmd*nb, 3H)
    obs_gi = gi_big[0:L_obs, 0:H3]                                # (L_obs, 3H)

    def gru_chain(gi_seq, whh_col, b_row, h, batch, steps):
        # Per-gate hidden weights + biases sliced ONCE (off the critical path);
        # each gate's matmul result lands lane-0 aligned -> no per-step rotates.
        whh = [gw_ref[:, whh_col + g * H: whh_col + (g + 1) * H] for g in range(3)]
        bhn = b_ref[b_row:b_row + 1, H3:H3 + H]
        # b_ih + b_hh_{r,z} were folded into the bias slab host-side.
        gi = [gi_seq[:, g * H:(g + 1) * H]
              + b_ref[b_row:b_row + 1, g * H:(g + 1) * H] for g in range(3)]
        for t in range(steps):                 # static, fully unrolled
            lo = t * batch
            gr = jnp.dot(h, whh[0], preferred_element_type=jnp.float32)
            gz = jnp.dot(h, whh[1], preferred_element_type=jnp.float32)
            gn = jnp.dot(h, whh[2], preferred_element_type=jnp.float32)
            r = jax.nn.sigmoid(gi[0][lo:lo + batch] + gr)
            z = jax.nn.sigmoid(gi[1][lo:lo + batch] + gz)
            n = jnp.tanh(gi[2][lo:lo + batch] + r * (gn + bhn))
            h = (1.0 - z) * n + z * h
        return h

    # --- command encoder GRU (run first: its hoisted gi is the largest) ------
    cmd_h = gru_chain(cmd_gi, CHH, 1,
                      jnp.zeros((nb_cmds, H), jnp.float32), nb_cmds, L_cmd)

    # --- observation encoder GRU ----------------------------------------------
    obs_h = gru_chain(obs_gi, OHH, 0,
                      jnp.zeros((1, H), jnp.float32), 1, L_obs)

    # --- state GRU: single step over obs_h with the carried hidden state ------
    s_gi = jnp.dot(obs_h, gw_ref[:, SIH:SIH + H3],
                   preferred_element_type=jnp.float32)            # (1, 3H)
    state_h = gru_chain(s_gi, SHH, 2, h0_ref[...], 1, 1)
    state_out_ref[...] = state_h

    # --- DQN MLP on [state_h (broadcast) | cmd_h] ------------------------------
    # Layer 1 is split into state/cmd halves so no lane-concat is materialized.
    d1, d2, d3 = (3 * H) // 2, H, H // 2
    c1a, c1b, c2, c3, c4 = 0, d1, 2 * d1, 2 * d1 + d2, 2 * d1 + d2 + d3
    h1 = jnp.dot(cmd_h, dqn_ref[0:H, c1b:c1b + d1],
                 preferred_element_type=jnp.float32)
    h1 = h1 + jnp.dot(state_h, dqn_ref[0:H, c1a:c1a + d1],
                      preferred_element_type=jnp.float32)         # (1,d1) bcast
    h1 = jnp.maximum(h1 + b_ref[3:4, 0:d1], 0.0)
    h2 = jnp.maximum(
        jnp.dot(h1, dqn_ref[0:d1, c2:c2 + d2],
                preferred_element_type=jnp.float32) + b_ref[3:4, d1:d1 + d2], 0.0)
    h3 = jnp.maximum(
        jnp.dot(h2, dqn_ref[0:d2, c3:c3 + d3],
                preferred_element_type=jnp.float32)
        + b_ref[3:4, d1 + d2:d1 + d2 + d3], 0.0)
    # Last layer computed transposed -> one lane-dense (1, nb_cmds) row store.
    scores_ref[...] = lax.dot_general(
        dqn_ref[0:1, c4:c4 + d3], h3, (((1,), (1,)), ((), ())),
        preferred_element_type=jnp.float32) \
        + b_ref[3:4, d1 + d2 + d3:d1 + d2 + d3 + 1]


# ----------------------------------------------------------------------------
# Parameter construction (deterministic, synthetic) with host-side packing:
#   - GRU weights transposed to (H, 3H), concatenated into ONE (H, 18H) slab
#   - all biases (3 GRUs + DQN) folded into ONE (4, 4H) slab
#   - embedding table zero-padded to a multiple of 128 rows
#   - all DQN weights packed into ONE (max(H,d1), 2*d1+d2+2*d3) slab
# ----------------------------------------------------------------------------
def init_params(key, vocab_size, hidden_size):
    H = hidden_size
    ks = jax.random.split(key, 16)
    scale = 1.0 / jnp.sqrt(jnp.float32(H))

    def uni(k, shape, s):
        return jax.random.uniform(k, shape, jnp.float32, -s, s)

    v_pad = ((vocab_size + 127) // 128) * 128
    emb = jax.random.normal(ks[0], (vocab_size, H), jnp.float32)
    emb_padded = jnp.zeros((v_pad, H), jnp.float32).at[:vocab_size].set(emb)

    # Three GRUs (obs, cmd, state); PyTorch layout (3H, H), gate order [r, z, n].
    wih_blocks, whh_blocks, bias_rows = [], [], []
    for idx in range(3):
        base = 1 + idx * 4
        w_ih = uni(ks[base + 0], (3 * H, H), scale)
        w_hh = uni(ks[base + 1], (3 * H, H), scale)
        b_ih = uni(ks[base + 2], (1, 3 * H), scale)
        b_hh = uni(ks[base + 3], (1, 3 * H), scale)
        b_gi = b_ih + jnp.concatenate(
            [b_hh[:, :2 * H], jnp.zeros((1, H), jnp.float32)], axis=-1)
        wih_blocks.append(w_ih.T)                                  # (H, 3H)
        whh_blocks.append(w_hh.T)                                  # (H, 3H)
        bias_rows.append(jnp.concatenate([b_gi, b_hh[:, 2 * H:]], axis=-1))  # (1,4H)

    gru_w = jnp.concatenate(wih_blocks + whh_blocks, axis=-1)      # (H, 18H)

    # DQN MLP: 2H -> 1.5H -> H -> 0.5H -> 1 (stored as (in, out)).
    dims = [2 * H, int(2 * H * 0.75), int(2 * H * 0.5), int(2 * H * 0.25), 1]
    kd = jax.random.split(ks[13], 2 * (len(dims) - 1))
    layers = []
    for li in range(len(dims) - 1):
        s = 1.0 / jnp.sqrt(jnp.float32(dims[li]))
        layers.append((uni(kd[2 * li], (dims[li], dims[li + 1]), s),
                       uni(kd[2 * li + 1], (1, dims[li + 1]), s)))
    (w1, b1), (w2, b2), (w3, b3), (w4, b4) = layers
    d1, d2, d3 = dims[1], dims[2], dims[3]

    rows = max(H, d1)
    cols = 2 * d1 + d2 + 2 * d3
    dqn_w = jnp.zeros((rows, cols), jnp.float32)
    dqn_w = dqn_w.at[:H, 0:d1].set(w1[:H, :])                      # w1a (state half)
    dqn_w = dqn_w.at[:H, d1:2 * d1].set(w1[H:, :])                 # w1b (cmd half)
    dqn_w = dqn_w.at[:d1, 2 * d1:2 * d1 + d2].set(w2)
    dqn_w = dqn_w.at[:d2, 2 * d1 + d2:2 * d1 + d2 + d3].set(w3)
    dqn_w = dqn_w.at[0:1, 2 * d1 + d2 + d3:cols].set(w4.T)         # (1, d3)

    dqn_b = jnp.zeros((1, 4 * H), jnp.float32)
    dqn_b = dqn_b.at[:, 0:d1].set(b1)
    dqn_b = dqn_b.at[:, d1:d1 + d2].set(b2)
    dqn_b = dqn_b.at[:, d1 + d2:d1 + d2 + d3].set(b3)
    dqn_b = dqn_b.at[:, d1 + d2 + d3:d1 + d2 + d3 + 1].set(b4)
    biases = jnp.concatenate(bias_rows + [dqn_b], axis=0)          # (4, 4H)

    return {"embedding": emb_padded, "gru_w": gru_w,
            "biases": biases, "dqn_w": dqn_w}


# ----------------------------------------------------------------------------
# Full forward (single pallas_call, no grid, 6 packed operands)
# ----------------------------------------------------------------------------
def recurrent_net_forward(params, obs, commands, state_hidden):
    """
    obs:          (L_obs, 1)       int32 token ids
    commands:     (L_cmd, nb_cmds) int32 token ids
    state_hidden: (1, 1, H)        f32 recurrent state
    returns (scores (1, 1, nb_cmds), new_state_hidden (1, 1, H))
    """
    emb = params["embedding"]
    H = emb.shape[1]
    L_obs = obs.shape[0]
    L_cmd, nb_cmds = commands.shape

    # One lane-dense int32 ids row: [obs tokens | commands (row-major) | pad].
    n_tok = L_obs + L_cmd * nb_cmds
    n_pad = ((n_tok + 7) // 8) * 8 - n_tok
    ids = jnp.concatenate(
        [obs.reshape(1, -1).astype(jnp.int32),
         commands.reshape(1, -1).astype(jnp.int32),
         jnp.zeros((1, n_pad), jnp.int32)], axis=1)
    h0 = state_hidden.reshape(1, H).astype(jnp.float32)

    args = (ids, emb, params["gru_w"], params["biases"], params["dqn_w"], h0)
    kernel = functools.partial(fused_forward_kernel, L_obs, L_cmd, nb_cmds)
    vmem = pl.BlockSpec(memory_space=pltpu.MemorySpace.VMEM)

    scores, new_h = pl.pallas_call(
        kernel,
        out_shape=(
            jax.ShapeDtypeStruct((1, nb_cmds), jnp.float32),
            jax.ShapeDtypeStruct((1, H), jnp.float32),
        ),
        in_specs=[vmem] * len(args),
        out_specs=(vmem, vmem),
        input_output_aliases={5: 1},          # h0 -> new state (in-place)
        cost_estimate=pl.CostEstimate(
            flops=1_600_000, transcendentals=6_000, bytes_accessed=125_000),
    )(*args)

    return scores.reshape(1, 1, nb_cmds), new_h.reshape(1, 1, H)


if __name__ == "__main__":
    VOCAB = 100
    HIDDEN = 32
    L_OBS = 8
    L_CMD = 6
    NB_CMDS = 8

    key = jax.random.PRNGKey(0)
    k_param, k_obs, k_cmd = jax.random.split(key, 3)

    params = init_params(k_param, VOCAB, HIDDEN)
    obs = jax.random.randint(k_obs, (L_OBS, 1), 0, VOCAB, dtype=jnp.int32)
    commands = jax.random.randint(k_cmd, (L_CMD, NB_CMDS), 0, VOCAB,
                                  dtype=jnp.int32)
    state_hidden = jnp.zeros((1, 1, HIDDEN), jnp.float32)

    fwd = jax.jit(recurrent_net_forward)
    scores, new_state = fwd(params, obs, commands, state_hidden)
    jax.block_until_ready((scores, new_state))

    assert scores.shape == (1, 1, NB_CMDS), scores.shape
    assert new_state.shape == (1, 1, HIDDEN), new_state.shape
    assert bool(jnp.all(jnp.isfinite(scores))), "non-finite scores"
    assert bool(jnp.all(jnp.isfinite(new_state))), "non-finite state"
    print("KERNEL_OK")
</pallas_src>

<mosaic_0001>
module attributes {stable_mosaic.version = 11 : i64} {
  func.func @fused_forward_kernel(%arg0: memref<1x56xi32, #tpu.memory_space<vmem>>, %arg1: memref<128x32xf32, #tpu.memory_space<vmem>>, %arg2: memref<32x576xf32, #tpu.memory_space<vmem>>, %arg3: memref<4x128xf32, #tpu.memory_space<vmem>>, %arg4: memref<48x160xf32, #tpu.memory_space<vmem>>, %arg5: memref<1x32xf32, #tpu.memory_space<vmem>>, %arg6: memref<1x8xf32, #tpu.memory_space<vmem>>, %arg7: memref<1x32xf32, #tpu.memory_space<vmem>>) attributes {dimension_semantics = [], scalar_prefetch = 0 : i64, scratch_operands = 0 : i64, tpu.core_type = #tpu.core_type<tc>} {
    %c0 = arith.constant 0 : index
    %c0_0 = arith.constant 0 : index
    %0 = vector.load %arg0[%c0, %c0_0] : memref<1x56xi32, #tpu.memory_space<vmem>>, vector<1x56xi32>
    %1 = tpu.iota {dimensions = array<i32: 0>} : vector<128x56xi32>
    %2 = vector.broadcast %0 : vector<1x56xi32> to vector<128x56xi32>
    %3 = arith.cmpi eq, %2, %1 : vector<128x56xi32>
    %cst = arith.constant 1.000000e+00 : f32
    %cst_1 = arith.constant 0.000000e+00 : f32
    %4 = vector.broadcast %cst : f32 to vector<128x56xf32>
    %5 = vector.broadcast %cst_1 : f32 to vector<128x56xf32>
    %6 = arith.select %3, %4, %5 : vector<128x56xi1>, vector<128x56xf32>
    %c0_2 = arith.constant 0 : index
    %c0_3 = arith.constant 0 : index
    %7 = vector.load %arg1[%c0_2, %c0_3] : memref<128x32xf32, #tpu.memory_space<vmem>>, vector<128x32xf32>
    %cst_4 = arith.constant dense<0.000000e+00> : vector<56x32xf32>
    %8 = tpu.matmul %6, %7, %cst_4 {dimension_numbers = #tpu.dot_dimension_numbers<[0], [0], [1], [1], [0, 1, 1, 1], [], []>} : vector<128x56xf32>, vector<128x32xf32>, vector<56x32xf32> -> vector<56x32xf32>
    %c0_5 = arith.constant 0 : index
    %c0_6 = arith.constant 0 : index
    %9 = vector.load %arg2[%c0_5, %c0_6] : memref<32x576xf32, #tpu.memory_space<vmem>>, vector<32x192xf32>
    %cst_7 = arith.constant dense<0.000000e+00> : vector<56x192xf32>
    %10 = tpu.matmul %8, %9, %cst_7 {dimension_numbers = #tpu.dot_dimension_numbers<[1], [0], [0], [1], [0, 0, 1, 1], [], []>} : vector<56x32xf32>, vector<32x192xf32>, vector<56x192xf32> -> vector<56x192xf32>
    %11 = vector.extract_strided_slice %10 {offsets = [8, 96], sizes = [48, 96], strides = [1, 1]} : vector<56x192xf32> to vector<48x96xf32>
    %12 = vector.extract_strided_slice %10 {offsets = [0, 0], sizes = [8, 96], strides = [1, 1]} : vector<56x192xf32> to vector<8x96xf32>
    %cst_8 = arith.constant 0.000000e+00 : f32
    %13 = vector.broadcast %cst_8 : f32 to vector<8x32xf32>
    %c0_9 = arith.constant 0 : index
    %c384 = arith.constant 384 : index
    %14 = vector.load %arg2[%c0_9, %c384] : memref<32x576xf32, #tpu.memory_space<vmem>>, vector<32x32xf32>
    %c0_10 = arith.constant 0 : index
    %c416 = arith.constant 416 : index
    %15 = vector.load %arg2[%c0_10, %c416] : memref<32x576xf32, #tpu.memory_space<vmem>>, vector<32x32xf32>
    %c0_11 = arith.constant 0 : index
    %c448 = arith.constant 448 : index
    %16 = vector.load %arg2[%c0_11, %c448] : memref<32x576xf32, #tpu.memory_space<vmem>>, vector<32x32xf32>
    %c1 = arith.constant 1 : index
    %c96 = arith.constant 96 : index
    %17 = vector.load %arg3[%c1, %c96] : memref<4x128xf32, #tpu.memory_space<vmem>>, vector<1x32xf32>
    %18 = vector.extract_strided_slice %11 {offsets = [0, 0], sizes = [48, 32], strides = [1, 1]} : vector<48x96xf32> to vector<48x32xf32>
    %c1_12 = arith.constant 1 : index
    %c0_13 = arith.constant 0 : index
    %19 = vector.load %arg3[%c1_12, %c0_13] : memref<4x128xf32, #tpu.memory_space<vmem>>, vector<1x32xf32>
    %20 = vector.broadcast %19 : vector<1x32xf32> to vector<48x32xf32>
    %21 = arith.addf %18, %20 : vector<48x32xf32>
    %22 = vector.extract_strided_slice %11 {offsets = [0, 32], sizes = [48, 32], strides = [1, 1]} : vector<48x96xf32> to vector<48x32xf32>
    %c1_14 = arith.constant 1 : index
    %c32 = arith.constant 32 : index
    %23 = vector.load %arg3[%c1_14, %c32] : memref<4x128xf32, #tpu.memory_space<vmem>>, vector<1x32xf32>
    %24 = vector.broadcast %23 : vector<1x32xf32> to vector<48x32xf32>
    %25 = arith.addf %22, %24 : vector<48x32xf32>
    %26 = vector.extract_strided_slice %11 {offsets = [0, 64], sizes = [48, 32], strides = [1, 1]} : vector<48x96xf32> to vector<48x32xf32>
    %c1_15 = arith.constant 1 : index
    %c64 = arith.constant 64 : index
    %27 = vector.load %arg3[%c1_15, %c64] : memref<4x128xf32, #tpu.memory_space<vmem>>, vector<1x32xf32>
    %28 = vector.broadcast %27 : vector<1x32xf32> to vector<48x32xf32>
    %29 = arith.addf %26, %28 : vector<48x32xf32>
    %cst_16 = arith.constant dense<0.000000e+00> : vector<8x32xf32>
    %30 = tpu.matmul %13, %14, %cst_16 {dimension_numbers = #tpu.dot_dimension_numbers<[1], [0], [0], [1], [0, 0, 1, 1], [], []>} : vector<8x32xf32>, vector<32x32xf32>, vector<8x32xf32> -> vector<8x32xf32>
    %cst_17 = arith.constant dense<0.000000e+00> : vector<8x32xf32>
    %31 = tpu.matmul %13, %15, %cst_17 {dimension_numbers = #tpu.dot_dimension_numbers<[1], [0], [0], [1], [0, 0, 1, 1], [], []>} : vector<8x32xf32>, vector<32x32xf32>, vector<8x32xf32> -> vector<8x32xf32>
    %cst_18 = arith.constant dense<0.000000e+00> : vector<8x32xf32>
    %32 = tpu.matmul %13, %16, %cst_18 {dimension_numbers = #tpu.dot_dimension_numbers<[1], [0], [0], [1], [0, 0, 1, 1], [], []>} : vector<8x32xf32>, vector<32x32xf32>, vector<8x32xf32> -> vector<8x32xf32>
    %33 = vector.extract_strided_slice %21 {offsets = [0, 0], sizes = [8, 32], strides = [1, 1]} : vector<48x32xf32> to vector<8x32xf32>
    %34 = arith.addf %33, %30 : vector<8x32xf32>
    %35 = arith.negf %34 : vector<8x32xf32>
    %36 = math.exp %35 : vector<8x32xf32>
    %cst_19 = arith.constant 1.000000e+00 : f32
    %37 = vector.broadcast %cst_19 : f32 to vector<8x32xf32>
    %38 = arith.addf %37, %36 : vector<8x32xf32>
    %39 = arith.divf %37, %38 : vector<8x32xf32>
    %40 = vector.extract_strided_slice %25 {offsets = [0, 0], sizes = [8, 32], strides = [1, 1]} : vector<48x32xf32> to vector<8x32xf32>
    %41 = arith.addf %40, %31 : vector<8x32xf32>
    %42 = arith.negf %41 : vector<8x32xf32>
    %43 = math.exp %42 : vector<8x32xf32>
    %cst_20 = arith.constant 1.000000e+00 : f32
    %44 = vector.broadcast %cst_20 : f32 to vector<8x32xf32>
    %45 = arith.addf %44, %43 : vector<8x32xf32>
    %46 = arith.divf %44, %45 : vector<8x32xf32>
    %47 = vector.extract_strided_slice %29 {offsets = [0, 0], sizes = [8, 32], strides = [1, 1]} : vector<48x32xf32> to vector<8x32xf32>
    %48 = vector.broadcast %17 : vector<1x32xf32> to vector<8x32xf32>
    %49 = arith.addf %32, %48 : vector<8x32xf32>
    %50 = arith.mulf %39, %49 : vector<8x32xf32>
    %51 = arith.addf %47, %50 : vector<8x32xf32>
    %52 = math.tanh %51 : vector<8x32xf32>
    %cst_21 = arith.constant 1.000000e+00 : f32
    %53 = vector.broadcast %cst_21 : f32 to vector<8x32xf32>
    %54 = arith.subf %53, %46 : vector<8x32xf32>
    %55 = arith.mulf %54, %52 : vector<8x32xf32>
    %56 = arith.mulf %46, %13 : vector<8x32xf32>
    %57 = arith.addf %55, %56 : vector<8x32xf32>
    %cst_22 = arith.constant dense<0.000000e+00> : vector<8x32xf32>
    %58 = tpu.matmul %57, %14, %cst_22 {dimension_numbers = #tpu.dot_dimension_numbers<[1], [0], [0], [1], [0, 0, 1, 1], [], []>} : vector<8x32xf32>, vector<32x32xf32>, vector<8x32xf32> -> vector<8x32xf32>
    %cst_23 = arith.constant dense<0.000000e+00> : vector<8x32xf32>
    %59 = tpu.matmul %57, %15, %cst_23 {dimension_numbers = #tpu.dot_dimension_numbers<[1], [0], [0], [1], [0, 0, 1, 1], [], []>} : vector<8x32xf32>, vector<32x32xf32>, vector<8x32xf32> -> vector<8x32xf32>
    %cst_24 = arith.constant dense<0.000000e+00> : vector<8x32xf32>
    %60 = tpu.matmul %57, %16, %cst_24 {dimension_numbers = #tpu.dot_dimension_numbers<[1], [0], [0], [1], [0, 0, 1, 1], [], []>} : vector<8x32xf32>, vector<32x32xf32>, vector<8x32xf32> -> vector<8x32xf32>
    %61 = vector.extract_strided_slice %21 {offsets = [8, 0], sizes = [8, 32], strides = [1, 1]} : vector<48x32xf32> to vector<8x32xf32>
    %62 = arith.addf %61, %58 : vector<8x32xf32>
    %63 = arith.negf %62 : vector<8x32xf32>
    %64 = math.exp %63 : vector<8x32xf32>
    %cst_25 = arith.constant 1.000000e+00 : f32
    %65 = vector.broadcast %cst_25 : f32 to vector<8x32xf32>
    %66 = arith.addf %65, %64 : vector<8x32xf32>
    %67 = arith.divf %65, %66 : vector<8x32xf32>
    %68 = vector.extract_strided_slice %25 {offsets = [8, 0], sizes = [8, 32], strides = [1, 1]} : vector<48x32xf32> to vector<8x32xf32>
    %69 = arith.addf %68, %59 : vector<8x32xf32>
    %70 = arith.negf %69 : vector<8x32xf32>
    %71 = math.exp %70 : vector<8x32xf32>
    %cst_26 = arith.constant 1.000000e+00 : f32
    %72 = vector.broadcast %cst_26 : f32 to vector<8x32xf32>
    %73 = arith.addf %72, %71 : vector<8x32xf32>
    %74 = arith.divf %72, %73 : vector<8x32xf32>
    %75 = vector.extract_strided_slice %29 {offsets = [8, 0], sizes = [8, 32], strides = [1, 1]} : vector<48x32xf32> to vector<8x32xf32>
    %76 = vector.broadcast %17 : vector<1x32xf32> to vector<8x32xf32>
    %77 = arith.addf %60, %76 : vector<8x32xf32>
    %78 = arith.mulf %67, %77 : vector<8x32xf32>
    %79 = arith.addf %75, %78 : vector<8x32xf32>
    %80 = math.tanh %79 : vector<8x32xf32>
    %cst_27 = arith.constant 1.000000e+00 : f32
    %81 = vector.broadcast %cst_27 : f32 to vector<8x32xf32>
    %82 = arith.subf %81, %74 : vector<8x32xf32>
    %83 = arith.mulf %82, %80 : vector<8x32xf32>
    %84 = arith.mulf %74, %57 : vector<8x32xf32>
    %85 = arith.addf %83, %84 : vector<8x32xf32>
    %cst_28 = arith.constant dense<0.000000e+00> : vector<8x32xf32>
    %86 = tpu.matmul %85, %14, %cst_28 {dimension_numbers = #tpu.dot_dimension_numbers<[1], [0], [0], [1], [0, 0, 1, 1], [], []>} : vector<8x32xf32>, vector<32x32xf32>, vector<8x32xf32> -> vector<8x32xf32>
    %cst_29 = arith.constant dense<0.000000e+00> : vector<8x32xf32>
    %87 = tpu.matmul %85, %15, %cst_29 {dimension_numbers = #tpu.dot_dimension_numbers<[1], [0], [0], [1], [0, 0, 1, 1], [], []>} : vector<8x32xf32>, vector<32x32xf32>, vector<8x32xf32> -> vector<8x32xf32>
    %cst_30 = arith.constant dense<0.000000e+00> : vector<8x32xf32>
    %88 = tpu.matmul %85, %16, %cst_30 {dimension_numbers = #tpu.dot_dimension_numbers<[1], [0], [0], [1], [0, 0, 1, 1], [], []>} : vector<8x32xf32>, vector<32x32xf32>, vector<8x32xf32> -> vector<8x32xf32>
    %89 = vector.extract_strided_slice %21 {offsets = [16, 0], sizes = [8, 32], strides = [1, 1]} : vector<48x32xf32> to vector<8x32xf32>
    %90 = arith.addf %89, %86 : vector<8x32xf32>
    %91 = arith.negf %90 : vector<8x32xf32>
    %92 = math.exp %91 : vector<8x32xf32>
    %cst_31 = arith.constant 1.000000e+00 : f32
    %93 = vector.broadcast %cst_31 : f32 to vector<8x32xf32>
    %94 = arith.addf %93, %92 : vector<8x32xf32>
    %95 = arith.divf %93, %94 : vector<8x32xf32>
    %96 = vector.extract_strided_slice %25 {offsets = [16, 0], sizes = [8, 32], strides = [1, 1]} : vector<48x32xf32> to vector<8x32xf32>
    %97 = arith.addf %96, %87 : vector<8x32xf32>
    %98 = arith.negf %97 : vector<8x32xf32>
    %99 = math.exp %98 : vector<8x32xf32>
    %cst_32 = arith.constant 1.000000e+00 : f32
    %100 = vector.broadcast %cst_32 : f32 to vector<8x32xf32>
    %101 = arith.addf %100, %99 : vector<8x32xf32>
    %102 = arith.divf %100, %101 : vector<8x32xf32>
    %103 = vector.extract_strided_slice %29 {offsets = [16, 0], sizes = [8, 32], strides = [1, 1]} : vector<48x32xf32> to vector<8x32xf32>
    %104 = vector.broadcast %17 : vector<1x32xf32> to vector<8x32xf32>
    %105 = arith.addf %88, %104 : vector<8x32xf32>
    %106 = arith.mulf %95, %105 : vector<8x32xf32>
    %107 = arith.addf %103, %106 : vector<8x32xf32>
    %108 = math.tanh %107 : vector<8x32xf32>
    %cst_33 = arith.constant 1.000000e+00 : f32
    %109 = vector.broadcast %cst_33 : f32 to vector<8x32xf32>
    %110 = arith.subf %109, %102 : vector<8x32xf32>
    %111 = arith.mulf %110, %108 : vector<8x32xf32>
    %112 = arith.mulf %102, %85 : vector<8x32xf32>
    %113 = arith.addf %111, %112 : vector<8x32xf32>
    %cst_34 = arith.constant dense<0.000000e+00> : vector<8x32xf32>
    %114 = tpu.matmul %113, %14, %cst_34 {dimension_numbers = #tpu.dot_dimension_numbers<[1], [0], [0], [1], [0, 0, 1, 1], [], []>} : vector<8x32xf32>, vector<32x32xf32>, vector<8x32xf32> -> vector<8x32xf32>
    %cst_35 = arith.constant dense<0.000000e+00> : vector<8x32xf32>
    %115 = tpu.matmul %113, %15, %cst_35 {dimension_numbers = #tpu.dot_dimension_numbers<[1], [0], [0], [1], [0, 0, 1, 1], [], []>} : vector<8x32xf32>, vector<32x32xf32>, vector<8x32xf32> -> vector<8x32xf32>
    %cst_36 = arith.constant dense<0.000000e+00> : vector<8x32xf32>
    %116 = tpu.matmul %113, %16, %cst_36 {dimension_numbers = #tpu.dot_dimension_numbers<[1], [0], [0], [1], [0, 0, 1, 1], [], []>} : vector<8x32xf32>, vector<32x32xf32>, vector<8x32xf32> -> vector<8x32xf32>
    %117 = vector.extract_strided_slice %21 {offsets = [24, 0], sizes = [8, 32], strides = [1, 1]} : vector<48x32xf32> to vector<8x32xf32>
    %118 = arith.addf %117, %114 : vector<8x32xf32>
    %119 = arith.negf %118 : vector<8x32xf32>
    %120 = math.exp %119 : vector<8x32xf32>
    %cst_37 = arith.constant 1.000000e+00 : f32
    %121 = vector.broadcast %cst_37 : f32 to vector<8x32xf32>
    %122 = arith.addf %121, %120 : vector<8x32xf32>
    %123 = arith.divf %121, %122 : vector<8x32xf32>
    %124 = vector.extract_strided_slice %25 {offsets = [24, 0], sizes = [8, 32], strides = [1, 1]} : vector<48x32xf32> to vector<8x32xf32>
    %125 = arith.addf %124, %115 : vector<8x32xf32>
    %126 = arith.negf %125 : vector<8x32xf32>
    %127 = math.exp %126 : vector<8x32xf32>
    %cst_38 = arith.constant 1.000000e+00 : f32
    %128 = vector.broadcast %cst_38 : f32 to vector<8x32xf32>
    %129 = arith.addf %128, %127 : vector<8x32xf32>
    %130 = arith.divf %128, %129 : vector<8x32xf32>
    %131 = vector.extract_strided_slice %29 {offsets = [24, 0], sizes = [8, 32], strides = [1, 1]} : vector<48x32xf32> to vector<8x32xf32>
    %132 = vector.broadcast %17 : vector<1x32xf32> to vector<8x32xf32>
    %133 = arith.addf %116, %132 : vector<8x32xf32>
    %134 = arith.mulf %123, %133 : vector<8x32xf32>
    %135 = arith.addf %131, %134 : vector<8x32xf32>
    %136 = math.tanh %135 : vector<8x32xf32>
    %cst_39 = arith.constant 1.000000e+00 : f32
    %137 = vector.broadcast %cst_39 : f32 to vector<8x32xf32>
    %138 = arith.subf %137, %130 : vector<8x32xf32>
    %139 = arith.mulf %138, %136 : vector<8x32xf32>
    %140 = arith.mulf %130, %113 : vector<8x32xf32>
    %141 = arith.addf %139, %140 : vector<8x32xf32>
    %cst_40 = arith.constant dense<0.000000e+00> : vector<8x32xf32>
    %142 = tpu.matmul %141, %14, %cst_40 {dimension_numbers = #tpu.dot_dimension_numbers<[1], [0], [0], [1], [0, 0, 1, 1], [], []>} : vector<8x32xf32>, vector<32x32xf32>, vector<8x32xf32> -> vector<8x32xf32>
    %cst_41 = arith.constant dense<0.000000e+00> : vector<8x32xf32>
    %143 = tpu.matmul %141, %15, %cst_41 {dimension_numbers = #tpu.dot_dimension_numbers<[1], [0], [0], [1], [0, 0, 1, 1], [], []>} : vector<8x32xf32>, vector<32x32xf32>, vector<8x32xf32> -> vector<8x32xf32>
    %cst_42 = arith.constant dense<0.000000e+00> : vector<8x32xf32>
    %144 = tpu.matmul %141, %16, %cst_42 {dimension_numbers = #tpu.dot_dimension_numbers<[1], [0], [0], [1], [0, 0, 1, 1], [], []>} : vector<8x32xf32>, vector<32x32xf32>, vector<8x32xf32> -> vector<8x32xf32>
    %145 = vector.extract_strided_slice %21 {offsets = [32, 0], sizes = [8, 32], strides = [1, 1]} : vector<48x32xf32> to vector<8x32xf32>
    %146 = arith.addf %145, %142 : vector<8x32xf32>
    %147 = arith.negf %146 : vector<8x32xf32>
    %148 = math.exp %147 : vector<8x32xf32>
    %cst_43 = arith.constant 1.000000e+00 : f32
    %149 = vector.broadcast %cst_43 : f32 to vector<8x32xf32>
    %150 = arith.addf %149, %148 : vector<8x32xf32>
    %151 = arith.divf %149, %150 : vector<8x32xf32>
    %152 = vector.extract_strided_slice %25 {offsets = [32, 0], sizes = [8, 32], strides = [1, 1]} : vector<48x32xf32> to vector<8x32xf32>
    %153 = arith.addf %152, %143 : vector<8x32xf32>
    %154 = arith.negf %153 : vector<8x32xf32>
    %155 = math.exp %154 : vector<8x32xf32>
    %cst_44 = arith.constant 1.000000e+00 : f32
    %156 = vector.broadcast %cst_44 : f32 to vector<8x32xf32>
    %157 = arith.addf %156, %155 : vector<8x32xf32>
    %158 = arith.divf %156, %157 : vector<8x32xf32>
    %159 = vector.extract_strided_slice %29 {offsets = [32, 0], sizes = [8, 32], strides = [1, 1]} : vector<48x32xf32> to vector<8x32xf32>
    %160 = vector.broadcast %17 : vector<1x32xf32> to vector<8x32xf32>
    %161 = arith.addf %144, %160 : vector<8x32xf32>
    %162 = arith.mulf %151, %161 : vector<8x32xf32>
    %163 = arith.addf %159, %162 : vector<8x32xf32>
    %164 = math.tanh %163 : vector<8x32xf32>
    %cst_45 = arith.constant 1.000000e+00 : f32
    %165 = vector.broadcast %cst_45 : f32 to vector<8x32xf32>
    %166 = arith.subf %165, %158 : vector<8x32xf32>
    %167 = arith.mulf %166, %164 : vector<8x32xf32>
    %168 = arith.mulf %158, %141 : vector<8x32xf32>
    %169 = arith.addf %167, %168 : vector<8x32xf32>
    %cst_46 = arith.constant dense<0.000000e+00> : vector<8x32xf32>
    %170 = tpu.matmul %169, %14, %cst_46 {dimension_numbers = #tpu.dot_dimension_numbers<[1], [0], [0], [1], [0, 0, 1, 1], [], []>} : vector<8x32xf32>, vector<32x32xf32>, vector<8x32xf32> -> vector<8x32xf32>
    %cst_47 = arith.constant dense<0.000000e+00> : vector<8x32xf32>
    %171 = tpu.matmul %169, %15, %cst_47 {dimension_numbers = #tpu.dot_dimension_numbers<[1], [0], [0], [1], [0, 0, 1, 1], [], []>} : vector<8x32xf32>, vector<32x32xf32>, vector<8x32xf32> -> vector<8x32xf32>
    %cst_48 = arith.constant dense<0.000000e+00> : vector<8x32xf32>
    %172 = tpu.matmul %169, %16, %cst_48 {dimension_numbers = #tpu.dot_dimension_numbers<[1], [0], [0], [1], [0, 0, 1, 1], [], []>} : vector<8x32xf32>, vector<32x32xf32>, vector<8x32xf32> -> vector<8x32xf32>
    %173 = vector.extract_strided_slice %21 {offsets = [40, 0], sizes = [8, 32], strides = [1, 1]} : vector<48x32xf32> to vector<8x32xf32>
    %174 = arith.addf %173, %170 : vector<8x32xf32>
    %175 = arith.negf %174 : vector<8x32xf32>
    %176 = math.exp %175 : vector<8x32xf32>
    %cst_49 = arith.constant 1.000000e+00 : f32
    %177 = vector.broadcast %cst_49 : f32 to vector<8x32xf32>
    %178 = arith.addf %177, %176 : vector<8x32xf32>
    %179 = arith.divf %177, %178 : vector<8x32xf32>
    %180 = vector.extract_strided_slice %25 {offsets = [40, 0], sizes = [8, 32], strides = [1, 1]} : vector<48x32xf32> to vector<8x32xf32>
    %181 = arith.addf %180, %171 : vector<8x32xf32>
    %182 = arith.negf %181 : vector<8x32xf32>
    %183 = math.exp %182 : vector<8x32xf32>
    %cst_50 = arith.constant 1.000000e+00 : f32
    %184 = vector.broadcast %cst_50 : f32 to vector<8x32xf32>
    %185 = arith.addf %184, %183 : vector<8x32xf32>
    %186 = arith.divf %184, %185 : vector<8x32xf32>
    %187 = vector.extract_strided_slice %29 {offsets = [40, 0], sizes = [8, 32], strides = [1, 1]} : vector<48x32xf32> to vector<8x32xf32>
    %188 = vector.broadcast %17 : vector<1x32xf32> to vector<8x32xf32>
    %189 = arith.addf %172, %188 : vector<8x32xf32>
    %190 = arith.mulf %179, %189 : vector<8x32xf32>
    %191 = arith.addf %187, %190 : vector<8x32xf32>
    %192 = math.tanh %191 : vector<8x32xf32>
    %cst_51 = arith.constant 1.000000e+00 : f32
    %193 = vector.broadcast %cst_51 : f32 to vector<8x32xf32>
    %194 = arith.subf %193, %186 : vector<8x32xf32>
    %195 = arith.mulf %194, %192 : vector<8x32xf32>
    %196 = arith.mulf %186, %169 : vector<8x32xf32>
    %197 = arith.addf %195, %196 : vector<8x32xf32>
    %cst_52 = arith.constant 0.000000e+00 : f32
    %198 = vector.broadcast %cst_52 : f32 to vector<1x32xf32>
    %c0_53 = arith.constant 0 : index
    %c288 = arith.constant 288 : index
    %199 = vector.load %arg2[%c0_53, %c288] : memref<32x576xf32, #tpu.memory_space<vmem>>, vector<32x32xf32>
    %c0_54 = arith.constant 0 : index
    %c320 = arith.constant 320 : index
    %200 = vector.load %arg2[%c0_54, %c320] : memref<32x576xf32, #tpu.memory_space<vmem>>, vector<32x32xf32>
    %c0_55 = arith.constant 0 : index
    %c352 = arith.constant 352 : index
    %201 = vector.load %arg2[%c0_55, %c352] : memref<32x576xf32, #tpu.memory_space<vmem>>, vector<32x32xf32>
    %c0_56 = arith.constant 0 : index
    %c96_57 = arith.constant 96 : index
    %202 = vector.load %arg3[%c0_56, %c96_57] : memref<4x128xf32, #tpu.memory_space<vmem>>, vector<1x32xf32>
    %203 = vector.extract_strided_slice %12 {offsets = [0, 0], sizes = [8, 32], strides = [1, 1]} : vector<8x96xf32> to vector<8x32xf32>
    %c0_58 = arith.constant 0 : index
    %c0_59 = arith.constant 0 : index
    %204 = vector.load %arg3[%c0_58, %c0_59] : memref<4x128xf32, #tpu.memory_space<vmem>>, vector<1x32xf32>
    %205 = vector.broadcast %204 : vector<1x32xf32> to vector<8x32xf32>
    %206 = arith.addf %203, %205 : vector<8x32xf32>
    %207 = vector.extract_strided_slice %12 {offsets = [0, 32], sizes = [8, 32], strides = [1, 1]} : vector<8x96xf32> to vector<8x32xf32>
    %c0_60 = arith.constant 0 : index
    %c32_61 = arith.constant 32 : index
    %208 = vector.load %arg3[%c0_60, %c32_61] : memref<4x128xf32, #tpu.memory_space<vmem>>, vector<1x32xf32>
    %209 = vector.broadcast %208 : vector<1x32xf32> to vector<8x32xf32>
    %210 = arith.addf %207, %209 : vector<8x32xf32>
    %211 = vector.extract_strided_slice %12 {offsets = [0, 64], sizes = [8, 32], strides = [1, 1]} : vector<8x96xf32> to vector<8x32xf32>
    %c0_62 = arith.constant 0 : index
    %c64_63 = arith.constant 64 : index
    %212 = vector.load %arg3[%c0_62, %c64_63] : memref<4x128xf32, #tpu.memory_space<vmem>>, vector<1x32xf32>
    %213 = vector.broadcast %212 : vector<1x32xf32> to vector<8x32xf32>
    %214 = arith.addf %211, %213 : vector<8x32xf32>
    %cst_64 = arith.constant dense<0.000000e+00> : vector<1x32xf32>
    %215 = tpu.matmul %198, %199, %cst_64 {dimension_numbers = #tpu.dot_dimension_numbers<[1], [0], [0], [1], [0, 0, 1, 1], [], []>} : vector<1x32xf32>, vector<32x32xf32>, vector<1x32xf32> -> vector<1x32xf32>
    %cst_65 = arith.constant dense<0.000000e+00> : vector<1x32xf32>
    %216 = tpu.matmul %198, %200, %cst_65 {dimension_numbers = #tpu.dot_dimension_numbers<[1], [0], [0], [1], [0, 0, 1, 1], [], []>} : vector<1x32xf32>, vector<32x32xf32>, vector<1x32xf32> -> vector<1x32xf32>
    %cst_66 = arith.constant dense<0.000000e+00> : vector<1x32xf32>
    %217 = tpu.matmul %198, %201, %cst_66 {dimension_numbers = #tpu.dot_dimension_numbers<[1], [0], [0], [1], [0, 0, 1, 1], [], []>} : vector<1x32xf32>, vector<32x32xf32>, vector<1x32xf32> -> vector<1x32xf32>
    %218 = vector.extract_strided_slice %206 {offsets = [0, 0], sizes = [1, 32], strides = [1, 1]} : vector<8x32xf32> to vector<1x32xf32>
    %219 = arith.addf %218, %215 : vector<1x32xf32>
    %220 = arith.negf %219 : vector<1x32xf32>
    %221 = math.exp %220 : vector<1x32xf32>
    %cst_67 = arith.constant 1.000000e+00 : f32
    %222 = vector.broadcast %cst_67 : f32 to vector<1x32xf32>
    %223 = arith.addf %222, %221 : vector<1x32xf32>
    %224 = arith.divf %222, %223 : vector<1x32xf32>
    %225 = vector.extract_strided_slice %210 {offsets = [0, 0], sizes = [1, 32], strides = [1, 1]} : vector<8x32xf32> to vector<1x32xf32>
    %226 = arith.addf %225, %216 : vector<1x32xf32>
    %227 = arith.negf %226 : vector<1x32xf32>
    %228 = math.exp %227 : vector<1x32xf32>
    %cst_68 = arith.constant 1.000000e+00 : f32
    %229 = vector.broadcast %cst_68 : f32 to vector<1x32xf32>
    %230 = arith.addf %229, %228 : vector<1x32xf32>
    %231 = arith.divf %229, %230 : vector<1x32xf32>
    %232 = vector.extract_strided_slice %214 {offsets = [0, 0], sizes = [1, 32], strides = [1, 1]} : vector<8x32xf32> to vector<1x32xf32>
    %233 = arith.addf %217, %202 : vector<1x32xf32>
    %234 = arith.mulf %224, %233 : vector<1x32xf32>
    %235 = arith.addf %232, %234 : vector<1x32xf32>
    %236 = math.tanh %235 : vector<1x32xf32>
    %cst_69 = arith.constant 1.000000e+00 : f32
    %237 = vector.broadcast %cst_69 : f32 to vector<1x32xf32>
    %238 = arith.subf %237, %231 : vector<1x32xf32>
    %239 = arith.mulf %238, %236 : vector<1x32xf32>
    %240 = arith.mulf %231, %198 : vector<1x32xf32>
    %241 = arith.addf %239, %240 : vector<1x32xf32>
    %cst_70 = arith.constant dense<0.000000e+00> : vector<1x32xf32>
    %242 = tpu.matmul %241, %199, %cst_70 {dimension_numbers = #tpu.dot_dimension_numbers<[1], [0], [0], [1], [0, 0, 1, 1], [], []>} : vector<1x32xf32>, vector<32x32xf32>, vector<1x32xf32> -> vector<1x32xf32>
    %cst_71 = arith.constant dense<0.000000e+00> : vector<1x32xf32>
    %243 = tpu.matmul %241, %200, %cst_71 {dimension_numbers = #tpu.dot_dimension_numbers<[1], [0], [0], [1], [0, 0, 1, 1], [], []>} : vector<1x32xf32>, vector<32x32xf32>, vector<1x32xf32> -> vector<1x32xf32>
    %cst_72 = arith.constant dense<0.000000e+00> : vector<1x32xf32>
    %244 = tpu.matmul %241, %201, %cst_72 {dimension_numbers = #tpu.dot_dimension_numbers<[1], [0], [0], [1], [0, 0, 1, 1], [], []>} : vector<1x32xf32>, vector<32x32xf32>, vector<1x32xf32> -> vector<1x32xf32>
    %245 = vector.extract_strided_slice %206 {offsets = [1, 0], sizes = [1, 32], strides = [1, 1]} : vector<8x32xf32> to vector<1x32xf32>
    %246 = arith.addf %245, %242 : vector<1x32xf32>
    %247 = arith.negf %246 : vector<1x32xf32>
    %248 = math.exp %247 : vector<1x32xf32>
    %cst_73 = arith.constant 1.000000e+00 : f32
    %249 = vector.broadcast %cst_73 : f32 to vector<1x32xf32>
    %250 = arith.addf %249, %248 : vector<1x32xf32>
    %251 = arith.divf %249, %250 : vector<1x32xf32>
    %252 = vector.extract_strided_slice %210 {offsets = [1, 0], sizes = [1, 32], strides = [1, 1]} : vector<8x32xf32> to vector<1x32xf32>
    %253 = arith.addf %252, %243 : vector<1x32xf32>
    %254 = arith.negf %253 : vector<1x32xf32>
    %255 = math.exp %254 : vector<1x32xf32>
    %cst_74 = arith.constant 1.000000e+00 : f32
    %256 = vector.broadcast %cst_74 : f32 to vector<1x32xf32>
    %257 = arith.addf %256, %255 : vector<1x32xf32>
    %258 = arith.divf %256, %257 : vector<1x32xf32>
    %259 = vector.extract_strided_slice %214 {offsets = [1, 0], sizes = [1, 32], strides = [1, 1]} : vector<8x32xf32> to vector<1x32xf32>
    %260 = arith.addf %244, %202 : vector<1x32xf32>
    %261 = arith.mulf %251, %260 : vector<1x32xf32>
    %262 = arith.addf %259, %261 : vector<1x32xf32>
    %263 = math.tanh %262 : vector<1x32xf32>
    %cst_75 = arith.constant 1.000000e+00 : f32
    %264 = vector.broadcast %cst_75 : f32 to vector<1x32xf32>
    %265 = arith.subf %264, %258 : vector<1x32xf32>
    %266 = arith.mulf %265, %263 : vector<1x32xf32>
    %267 = arith.mulf %258, %241 : vector<1x32xf32>
    %268 = arith.addf %266, %267 : vector<1x32xf32>
    %cst_76 = arith.constant dense<0.000000e+00> : vector<1x32xf32>
    %269 = tpu.matmul %268, %199, %cst_76 {dimension_numbers = #tpu.dot_dimension_numbers<[1], [0], [0], [1], [0, 0, 1, 1], [], []>} : vector<1x32xf32>, vector<32x32xf32>, vector<1x32xf32> -> vector<1x32xf32>
    %cst_77 = arith.constant dense<0.000000e+00> : vector<1x32xf32>
    %270 = tpu.matmul %268, %200, %cst_77 {dimension_numbers = #tpu.dot_dimension_numbers<[1], [0], [0], [1], [0, 0, 1, 1], [], []>} : vector<1x32xf32>, vector<32x32xf32>, vector<1x32xf32> -> vector<1x32xf32>
    %cst_78 = arith.constant dense<0.000000e+00> : vector<1x32xf32>
    %271 = tpu.matmul %268, %201, %cst_78 {dimension_numbers = #tpu.dot_dimension_numbers<[1], [0], [0], [1], [0, 0, 1, 1], [], []>} : vector<1x32xf32>, vector<32x32xf32>, vector<1x32xf32> -> vector<1x32xf32>
    %272 = vector.extract_strided_slice %206 {offsets = [2, 0], sizes = [1, 32], strides = [1, 1]} : vector<8x32xf32> to vector<1x32xf32>
    %273 = arith.addf %272, %269 : vector<1x32xf32>
    %274 = arith.negf %273 : vector<1x32xf32>
    %275 = math.exp %274 : vector<1x32xf32>
    %cst_79 = arith.constant 1.000000e+00 : f32
    %276 = vector.broadcast %cst_79 : f32 to vector<1x32xf32>
    %277 = arith.addf %276, %275 : vector<1x32xf32>
    %278 = arith.divf %276, %277 : vector<1x32xf32>
    %279 = vector.extract_strided_slice %210 {offsets = [2, 0], sizes = [1, 32], strides = [1, 1]} : vector<8x32xf32> to vector<1x32xf32>
    %280 = arith.addf %279, %270 : vector<1x32xf32>
    %281 = arith.negf %280 : vector<1x32xf32>
    %282 = math.exp %281 : vector<1x32xf32>
    %cst_80 = arith.constant 1.000000e+00 : f32
    %283 = vector.broadcast %cst_80 : f32 to vector<1x32xf32>
    %284 = arith.addf %283, %282 : vector<1x32xf32>
    %285 = arith.divf %283, %284 : vector<1x32xf32>
    %286 = vector.extract_strided_slice %214 {offsets = [2, 0], sizes = [1, 32], strides = [1, 1]} : vector<8x32xf32> to vector<1x32xf32>
    %287 = arith.addf %271, %202 : vector<1x32xf32>
    %288 = arith.mulf %278, %287 : vector<1x32xf32>
    %289 = arith.addf %286, %288 : vector<1x32xf32>
    %290 = math.tanh %289 : vector<1x32xf32>
    %cst_81 = arith.constant 1.000000e+00 : f32
    %291 = vector.broadcast %cst_81 : f32 to vector<1x32xf32>
    %292 = arith.subf %291, %285 : vector<1x32xf32>
    %293 = arith.mulf %292, %290 : vector<1x32xf32>
    %294 = arith.mulf %285, %268 : vector<1x32xf32>
    %295 = arith.addf %293, %294 : vector<1x32xf32>
    %cst_82 = arith.constant dense<0.000000e+00> : vector<1x32xf32>
    %296 = tpu.matmul %295, %199, %cst_82 {dimension_numbers = #tpu.dot_dimension_numbers<[1], [0], [0], [1], [0, 0, 1, 1], [], []>} : vector<1x32xf32>, vector<32x32xf32>, vector<1x32xf32> -> vector<1x32xf32>
    %cst_83 = arith.constant dense<0.000000e+00> : vector<1x32xf32>
    %297 = tpu.matmul %295, %200, %cst_83 {dimension_numbers = #tpu.dot_dimension_numbers<[1], [0], [0], [1], [0, 0, 1, 1], [], []>} : vector<1x32xf32>, vector<32x32xf32>, vector<1x32xf32> -> vector<1x32xf32>
    %cst_84 = arith.constant dense<0.000000e+00> : vector<1x32xf32>
    %298 = tpu.matmul %295, %201, %cst_84 {dimension_numbers = #tpu.dot_dimension_numbers<[1], [0], [0], [1], [0, 0, 1, 1], [], []>} : vector<1x32xf32>, vector<32x32xf32>, vector<1x32xf32> -> vector<1x32xf32>
    %299 = vector.extract_strided_slice %206 {offsets = [3, 0], sizes = [1, 32], strides = [1, 1]} : vector<8x32xf32> to vector<1x32xf32>
    %300 = arith.addf %299, %296 : vector<1x32xf32>
    %301 = arith.negf %300 : vector<1x32xf32>
    %302 = math.exp %301 : vector<1x32xf32>
    %cst_85 = arith.constant 1.000000e+00 : f32
    %303 = vector.broadcast %cst_85 : f32 to vector<1x32xf32>
    %304 = arith.addf %303, %302 : vector<1x32xf32>
    %305 = arith.divf %303, %304 : vector<1x32xf32>
    %306 = vector.extract_strided_slice %210 {offsets = [3, 0], sizes = [1, 32], strides = [1, 1]} : vector<8x32xf32> to vector<1x32xf32>
    %307 = arith.addf %306, %297 : vector<1x32xf32>
    %308 = arith.negf %307 : vector<1x32xf32>
    %309 = math.exp %308 : vector<1x32xf32>
    %cst_86 = arith.constant 1.000000e+00 : f32
    %310 = vector.broadcast %cst_86 : f32 to vector<1x32xf32>
    %311 = arith.addf %310, %309 : vector<1x32xf32>
    %312 = arith.divf %310, %311 : vector<1x32xf32>
    %313 = vector.extract_strided_slice %214 {offsets = [3, 0], sizes = [1, 32], strides = [1, 1]} : vector<8x32xf32> to vector<1x32xf32>
    %314 = arith.addf %298, %202 : vector<1x32xf32>
    %315 = arith.mulf %305, %314 : vector<1x32xf32>
    %316 = arith.addf %313, %315 : vector<1x32xf32>
    %317 = math.tanh %316 : vector<1x32xf32>
    %cst_87 = arith.constant 1.000000e+00 : f32
    %318 = vector.broadcast %cst_87 : f32 to vector<1x32xf32>
    %319 = arith.subf %318, %312 : vector<1x32xf32>
    %320 = arith.mulf %319, %317 : vector<1x32xf32>
    %321 = arith.mulf %312, %295 : vector<1x32xf32>
    %322 = arith.addf %320, %321 : vector<1x32xf32>
    %cst_88 = arith.constant dense<0.000000e+00> : vector<1x32xf32>
    %323 = tpu.matmul %322, %199, %cst_88 {dimension_numbers = #tpu.dot_dimension_numbers<[1], [0], [0], [1], [0, 0, 1, 1], [], []>} : vector<1x32xf32>, vector<32x32xf32>, vector<1x32xf32> -> vector<1x32xf32>
    %cst_89 = arith.constant dense<0.000000e+00> : vector<1x32xf32>
    %324 = tpu.matmul %322, %200, %cst_89 {dimension_numbers = #tpu.dot_dimension_numbers<[1], [0], [0], [1], [0, 0, 1, 1], [], []>} : vector<1x32xf32>, vector<32x32xf32>, vector<1x32xf32> -> vector<1x32xf32>
    %cst_90 = arith.constant dense<0.000000e+00> : vector<1x32xf32>
    %325 = tpu.matmul %322, %201, %cst_90 {dimension_numbers = #tpu.dot_dimension_numbers<[1], [0], [0], [1], [0, 0, 1, 1], [], []>} : vector<1x32xf32>, vector<32x32xf32>, vector<1x32xf32> -> vector<1x32xf32>
    %326 = vector.extract_strided_slice %206 {offsets = [4, 0], sizes = [1, 32], strides = [1, 1]} : vector<8x32xf32> to vector<1x32xf32>
    %327 = arith.addf %326, %323 : vector<1x32xf32>
    %328 = arith.negf %327 : vector<1x32xf32>
    %329 = math.exp %328 : vector<1x32xf32>
    %cst_91 = arith.constant 1.000000e+00 : f32
    %330 = vector.broadcast %cst_91 : f32 to vector<1x32xf32>
    %331 = arith.addf %330, %329 : vector<1x32xf32>
    %332 = arith.divf %330, %331 : vector<1x32xf32>
    %333 = vector.extract_strided_slice %210 {offsets = [4, 0], sizes = [1, 32], strides = [1, 1]} : vector<8x32xf32> to vector<1x32xf32>
    %334 = arith.addf %333, %324 : vector<1x32xf32>
    %335 = arith.negf %334 : vector<1x32xf32>
    %336 = math.exp %335 : vector<1x32xf32>
    %cst_92 = arith.constant 1.000000e+00 : f32
    %337 = vector.broadcast %cst_92 : f32 to vector<1x32xf32>
    %338 = arith.addf %337, %336 : vector<1x32xf32>
    %339 = arith.divf %337, %338 : vector<1x32xf32>
    %340 = vector.extract_strided_slice %214 {offsets = [4, 0], sizes = [1, 32], strides = [1, 1]} : vector<8x32xf32> to vector<1x32xf32>
    %341 = arith.addf %325, %202 : vector<1x32xf32>
    %342 = arith.mulf %332, %341 : vector<1x32xf32>
    %343 = arith.addf %340, %342 : vector<1x32xf32>
    %344 = math.tanh %343 : vector<1x32xf32>
    %cst_93 = arith.constant 1.000000e+00 : f32
    %345 = vector.broadcast %cst_93 : f32 to vector<1x32xf32>
    %346 = arith.subf %345, %339 : vector<1x32xf32>
    %347 = arith.mulf %346, %344 : vector<1x32xf32>
    %348 = arith.mulf %339, %322 : vector<1x32xf32>
    %349 = arith.addf %347, %348 : vector<1x32xf32>
    %cst_94 = arith.constant dense<0.000000e+00> : vector<1x32xf32>
    %350 = tpu.matmul %349, %199, %cst_94 {dimension_numbers = #tpu.dot_dimension_numbers<[1], [0], [0], [1], [0, 0, 1, 1], [], []>} : vector<1x32xf32>, vector<32x32xf32>, vector<1x32xf32> -> vector<1x32xf32>
    %cst_95 = arith.constant dense<0.000000e+00> : vector<1x32xf32>
    %351 = tpu.matmul %349, %200, %cst_95 {dimension_numbers = #tpu.dot_dimension_numbers<[1], [0], [0], [1], [0, 0, 1, 1], [], []>} : vector<1x32xf32>, vector<32x32xf32>, vector<1x32xf32> -> vector<1x32xf32>
    %cst_96 = arith.constant dense<0.000000e+00> : vector<1x32xf32>
    %352 = tpu.matmul %349, %201, %cst_96 {dimension_numbers = #tpu.dot_dimension_numbers<[1], [0], [0], [1], [0, 0, 1, 1], [], []>} : vector<1x32xf32>, vector<32x32xf32>, vector<1x32xf32> -> vector<1x32xf32>
    %353 = vector.extract_strided_slice %206 {offsets = [5, 0], sizes = [1, 32], strides = [1, 1]} : vector<8x32xf32> to vector<1x32xf32>
    %354 = arith.addf %353, %350 : vector<1x32xf32>
    %355 = arith.negf %354 : vector<1x32xf32>
    %356 = math.exp %355 : vector<1x32xf32>
    %cst_97 = arith.constant 1.000000e+00 : f32
    %357 = vector.broadcast %cst_97 : f32 to vector<1x32xf32>
    %358 = arith.addf %357, %356 : vector<1x32xf32>
    %359 = arith.divf %357, %358 : vector<1x32xf32>
    %360 = vector.extract_strided_slice %210 {offsets = [5, 0], sizes = [1, 32], strides = [1, 1]} : vector<8x32xf32> to vector<1x32xf32>
    %361 = arith.addf %360, %351 : vector<1x32xf32>
    %362 = arith.negf %361 : vector<1x32xf32>
    %363 = math.exp %362 : vector<1x32xf32>
    %cst_98 = arith.constant 1.000000e+00 : f32
    %364 = vector.broadcast %cst_98 : f32 to vector<1x32xf32>
    %365 = arith.addf %364, %363 : vector<1x32xf32>
    %366 = arith.divf %364, %365 : vector<1x32xf32>
    %367 = vector.extract_strided_slice %214 {offsets = [5, 0], sizes = [1, 32], strides = [1, 1]} : vector<8x32xf32> to vector<1x32xf32>
    %368 = arith.addf %352, %202 : vector<1x32xf32>
    %369 = arith.mulf %359, %368 : vector<1x32xf32>
    %370 = arith.addf %367, %369 : vector<1x32xf32>
    %371 = math.tanh %370 : vector<1x32xf32>
    %cst_99 = arith.constant 1.000000e+00 : f32
    %372 = vector.broadcast %cst_99 : f32 to vector<1x32xf32>
    %373 = arith.subf %372, %366 : vector<1x32xf32>
    %374 = arith.mulf %373, %371 : vector<1x32xf32>
    %375 = arith.mulf %366, %349 : vector<1x32xf32>
    %376 = arith.addf %374, %375 : vector<1x32xf32>
    %cst_100 = arith.constant dense<0.000000e+00> : vector<1x32xf32>
    %377 = tpu.matmul %376, %199, %cst_100 {dimension_numbers = #tpu.dot_dimension_numbers<[1], [0], [0], [1], [0, 0, 1, 1], [], []>} : vector<1x32xf32>, vector<32x32xf32>, vector<1x32xf32> -> vector<1x32xf32>
    %cst_101 = arith.constant dense<0.000000e+00> : vector<1x32xf32>
    %378 = tpu.matmul %376, %200, %cst_101 {dimension_numbers = #tpu.dot_dimension_numbers<[1], [0], [0], [1], [0, 0, 1, 1], [], []>} : vector<1x32xf32>, vector<32x32xf32>, vector<1x32xf32> -> vector<1x32xf32>
    %cst_102 = arith.constant dense<0.000000e+00> : vector<1x32xf32>
    %379 = tpu.matmul %376, %201, %cst_102 {dimension_numbers = #tpu.dot_dimension_numbers<[1], [0], [0], [1], [0, 0, 1, 1], [], []>} : vector<1x32xf32>, vector<32x32xf32>, vector<1x32xf32> -> vector<1x32xf32>
    %380 = vector.extract_strided_slice %206 {offsets = [6, 0], sizes = [1, 32], strides = [1, 1]} : vector<8x32xf32> to vector<1x32xf32>
    %381 = arith.addf %380, %377 : vector<1x32xf32>
    %382 = arith.negf %381 : vector<1x32xf32>
    %383 = math.exp %382 : vector<1x32xf32>
    %cst_103 = arith.constant 1.000000e+00 : f32
    %384 = vector.broadcast %cst_103 : f32 to vector<1x32xf32>
    %385 = arith.addf %384, %383 : vector<1x32xf32>
    %386 = arith.divf %384, %385 : vector<1x32xf32>
    %387 = vector.extract_strided_slice %210 {offsets = [6, 0], sizes = [1, 32], strides = [1, 1]} : vector<8x32xf32> to vector<1x32xf32>
    %388 = arith.addf %387, %378 : vector<1x32xf32>
    %389 = arith.negf %388 : vector<1x32xf32>
    %390 = math.exp %389 : vector<1x32xf32>
    %cst_104 = arith.constant 1.000000e+00 : f32
    %391 = vector.broadcast %cst_104 : f32 to vector<1x32xf32>
    %392 = arith.addf %391, %390 : vector<1x32xf32>
    %393 = arith.divf %391, %392 : vector<1x32xf32>
    %394 = vector.extract_strided_slice %214 {offsets = [6, 0], sizes = [1, 32], strides = [1, 1]} : vector<8x32xf32> to vector<1x32xf32>
    %395 = arith.addf %379, %202 : vector<1x32xf32>
    %396 = arith.mulf %386, %395 : vector<1x32xf32>
    %397 = arith.addf %394, %396 : vector<1x32xf32>
    %398 = math.tanh %397 : vector<1x32xf32>
    %cst_105 = arith.constant 1.000000e+00 : f32
    %399 = vector.broadcast %cst_105 : f32 to vector<1x32xf32>
    %400 = arith.subf %399, %393 : vector<1x32xf32>
    %401 = arith.mulf %400, %398 : vector<1x32xf32>
    %402 = arith.mulf %393, %376 : vector<1x32xf32>
    %403 = arith.addf %401, %402 : vector<1x32xf32>
    %cst_106 = arith.constant dense<0.000000e+00> : vector<1x32xf32>
    %404 = tpu.matmul %403, %199, %cst_106 {dimension_numbers = #tpu.dot_dimension_numbers<[1], [0], [0], [1], [0, 0, 1, 1], [], []>} : vector<1x32xf32>, vector<32x32xf32>, vector<1x32xf32> -> vector<1x32xf32>
    %cst_107 = arith.constant dense<0.000000e+00> : vector<1x32xf32>
    %405 = tpu.matmul %403, %200, %cst_107 {dimension_numbers = #tpu.dot_dimension_numbers<[1], [0], [0], [1], [0, 0, 1, 1], [], []>} : vector<1x32xf32>, vector<32x32xf32>, vector<1x32xf32> -> vector<1x32xf32>
    %cst_108 = arith.constant dense<0.000000e+00> : vector<1x32xf32>
    %406 = tpu.matmul %403, %201, %cst_108 {dimension_numbers = #tpu.dot_dimension_numbers<[1], [0], [0], [1], [0, 0, 1, 1], [], []>} : vector<1x32xf32>, vector<32x32xf32>, vector<1x32xf32> -> vector<1x32xf32>
    %407 = vector.extract_strided_slice %206 {offsets = [7, 0], sizes = [1, 32], strides = [1, 1]} : vector<8x32xf32> to vector<1x32xf32>
    %408 = arith.addf %407, %404 : vector<1x32xf32>
    %409 = arith.negf %408 : vector<1x32xf32>
    %410 = math.exp %409 : vector<1x32xf32>
    %cst_109 = arith.constant 1.000000e+00 : f32
    %411 = vector.broadcast %cst_109 : f32 to vector<1x32xf32>
    %412 = arith.addf %411, %410 : vector<1x32xf32>
    %413 = arith.divf %411, %412 : vector<1x32xf32>
    %414 = vector.extract_strided_slice %210 {offsets = [7, 0], sizes = [1, 32], strides = [1, 1]} : vector<8x32xf32> to vector<1x32xf32>
    %415 = arith.addf %414, %405 : vector<1x32xf32>
    %416 = arith.negf %415 : vector<1x32xf32>
    %417 = math.exp %416 : vector<1x32xf32>
    %cst_110 = arith.constant 1.000000e+00 : f32
    %418 = vector.broadcast %cst_110 : f32 to vector<1x32xf32>
    %419 = arith.addf %418, %417 : vector<1x32xf32>
    %420 = arith.divf %418, %419 : vector<1x32xf32>
    %421 = vector.extract_strided_slice %214 {offsets = [7, 0], sizes = [1, 32], strides = [1, 1]} : vector<8x32xf32> to vector<1x32xf32>
    %422 = arith.addf %406, %202 : vector<1x32xf32>
    %423 = arith.mulf %413, %422 : vector<1x32xf32>
    %424 = arith.addf %421, %423 : vector<1x32xf32>
    %425 = math.tanh %424 : vector<1x32xf32>
    %cst_111 = arith.constant 1.000000e+00 : f32
    %426 = vector.broadcast %cst_111 : f32 to vector<1x32xf32>
    %427 = arith.subf %426, %420 : vector<1x32xf32>
    %428 = arith.mulf %427, %425 : vector<1x32xf32>
    %429 = arith.mulf %420, %403 : vector<1x32xf32>
    %430 = arith.addf %428, %429 : vector<1x32xf32>
    %c0_112 = arith.constant 0 : index
    %c192 = arith.constant 192 : index
    %431 = vector.load %arg2[%c0_112, %c192] : memref<32x576xf32, #tpu.memory_space<vmem>>, vector<32x96xf32>
    %cst_113 = arith.constant dense<0.000000e+00> : vector<1x96xf32>
    %432 = tpu.matmul %430, %431, %cst_113 {dimension_numbers = #tpu.dot_dimension_numbers<[1], [0], [0], [1], [0, 0, 1, 1], [], []>} : vector<1x32xf32>, vector<32x96xf32>, vector<1x96xf32> -> vector<1x96xf32>
    %c0_114 = arith.constant 0 : index
    %c0_115 = arith.constant 0 : index
    %433 = vector.load %arg5[%c0_114, %c0_115] : memref<1x32xf32, #tpu.memory_space<vmem>>, vector<1x32xf32>
    %c0_116 = arith.constant 0 : index
    %c480 = arith.constant 480 : index
    %434 = vector.load %arg2[%c0_116, %c480] : memref<32x576xf32, #tpu.memory_space<vmem>>, vector<32x32xf32>
    %c0_117 = arith.constant 0 : index
    %c512 = arith.constant 512 : index
    %435 = vector.load %arg2[%c0_117, %c512] : memref<32x576xf32, #tpu.memory_space<vmem>>, vector<32x32xf32>
    %c0_118 = arith.constant 0 : index
    %c544 = arith.constant 544 : index
    %436 = vector.load %arg2[%c0_118, %c544] : memref<32x576xf32, #tpu.memory_space<vmem>>, vector<32x32xf32>
    %c2 = arith.constant 2 : index
    %c96_119 = arith.constant 96 : index
    %437 = vector.load %arg3[%c2, %c96_119] : memref<4x128xf32, #tpu.memory_space<vmem>>, vector<1x32xf32>
    %438 = vector.extract_strided_slice %432 {offsets = [0, 0], sizes = [1, 32], strides = [1, 1]} : vector<1x96xf32> to vector<1x32xf32>
    %c2_120 = arith.constant 2 : index
    %c0_121 = arith.constant 0 : index
    %439 = vector.load %arg3[%c2_120, %c0_121] : memref<4x128xf32, #tpu.memory_space<vmem>>, vector<1x32xf32>
    %440 = arith.addf %438, %439 : vector<1x32xf32>
    %441 = vector.extract_strided_slice %432 {offsets = [0, 32], sizes = [1, 32], strides = [1, 1]} : vector<1x96xf32> to vector<1x32xf32>
    %c2_122 = arith.constant 2 : index
    %c32_123 = arith.constant 32 : index
    %442 = vector.load %arg3[%c2_122, %c32_123] : memref<4x128xf32, #tpu.memory_space<vmem>>, vector<1x32xf32>
    %443 = arith.addf %441, %442 : vector<1x32xf32>
    %444 = vector.extract_strided_slice %432 {offsets = [0, 64], sizes = [1, 32], strides = [1, 1]} : vector<1x96xf32> to vector<1x32xf32>
    %c2_124 = arith.constant 2 : index
    %c64_125 = arith.constant 64 : index
    %445 = vector.load %arg3[%c2_124, %c64_125] : memref<4x128xf32, #tpu.memory_space<vmem>>, vector<1x32xf32>
    %446 = arith.addf %444, %445 : vector<1x32xf32>
    %cst_126 = arith.constant dense<0.000000e+00> : vector<1x32xf32>
    %447 = tpu.matmul %433, %434, %cst_126 {dimension_numbers = #tpu.dot_dimension_numbers<[1], [0], [0], [1], [0, 0, 1, 1], [], []>} : vector<1x32xf32>, vector<32x32xf32>, vector<1x32xf32> -> vector<1x32xf32>
    %cst_127 = arith.constant dense<0.000000e+00> : vector<1x32xf32>
    %448 = tpu.matmul %433, %435, %cst_127 {dimension_numbers = #tpu.dot_dimension_numbers<[1], [0], [0], [1], [0, 0, 1, 1], [], []>} : vector<1x32xf32>, vector<32x32xf32>, vector<1x32xf32> -> vector<1x32xf32>
    %cst_128 = arith.constant dense<0.000000e+00> : vector<1x32xf32>
    %449 = tpu.matmul %433, %436, %cst_128 {dimension_numbers = #tpu.dot_dimension_numbers<[1], [0], [0], [1], [0, 0, 1, 1], [], []>} : vector<1x32xf32>, vector<32x32xf32>, vector<1x32xf32> -> vector<1x32xf32>
    %450 = arith.addf %440, %447 : vector<1x32xf32>
    %451 = arith.negf %450 : vector<1x32xf32>
    %452 = math.exp %451 : vector<1x32xf32>
    %cst_129 = arith.constant 1.000000e+00 : f32
    %453 = vector.broadcast %cst_129 : f32 to vector<1x32xf32>
    %454 = arith.addf %453, %452 : vector<1x32xf32>
    %455 = arith.divf %453, %454 : vector<1x32xf32>
    %456 = arith.addf %443, %448 : vector<1x32xf32>
    %457 = arith.negf %456 : vector<1x32xf32>
    %458 = math.exp %457 : vector<1x32xf32>
    %cst_130 = arith.constant 1.000000e+00 : f32
    %459 = vector.broadcast %cst_130 : f32 to vector<1x32xf32>
    %460 = arith.addf %459, %458 : vector<1x32xf32>
    %461 = arith.divf %459, %460 : vector<1x32xf32>
    %462 = arith.addf %449, %437 : vector<1x32xf32>
    %463 = arith.mulf %455, %462 : vector<1x32xf32>
    %464 = arith.addf %446, %463 : vector<1x32xf32>
    %465 = math.tanh %464 : vector<1x32xf32>
    %cst_131 = arith.constant 1.000000e+00 : f32
    %466 = vector.broadcast %cst_131 : f32 to vector<1x32xf32>
    %467 = arith.subf %466, %461 : vector<1x32xf32>
    %468 = arith.mulf %467, %465 : vector<1x32xf32>
    %469 = arith.mulf %461, %433 : vector<1x32xf32>
    %470 = arith.addf %468, %469 : vector<1x32xf32>
    %c0_132 = arith.constant 0 : index
    %c0_133 = arith.constant 0 : index
    %471 = vector.load %arg7[%c0_132, %c0_133] : memref<1x32xf32, #tpu.memory_space<vmem>>, vector<1x32xf32>
    tpu.vector_store %arg7[%c0_132, %c0_133], %470 {strides = array<i32>} : memref<1x32xf32, #tpu.memory_space<vmem>>, vector<1x32xf32>,
    %c0_134 = arith.constant 0 : index
    %c48 = arith.constant 48 : index
    %472 = vector.load %arg4[%c0_134, %c48] : memref<48x160xf32, #tpu.memory_space<vmem>>, vector<32x48xf32>
    %cst_135 = arith.constant dense<0.000000e+00> : vector<8x48xf32>
    %473 = tpu.matmul %197, %472, %cst_135 {dimension_numbers = #tpu.dot_dimension_numbers<[1], [0], [0], [1], [0, 0, 1, 1], [], []>} : vector<8x32xf32>, vector<32x48xf32>, vector<8x48xf32> -> vector<8x48xf32>
    %c0_136 = arith.constant 0 : index
    %c0_137 = arith.constant 0 : index
    %474 = vector.load %arg4[%c0_136, %c0_137] : memref<48x160xf32, #tpu.memory_space<vmem>>, vector<32x48xf32>
    %cst_138 = arith.constant dense<0.000000e+00> : vector<1x48xf32>
    %475 = tpu.matmul %470, %474, %cst_138 {dimension_numbers = #tpu.dot_dimension_numbers<[1], [0], [0], [1], [0, 0, 1, 1], [], []>} : vector<1x32xf32>, vector<32x48xf32>, vector<1x48xf32> -> vector<1x48xf32>
    %476 = vector.broadcast %475 : vector<1x48xf32> to vector<8x48xf32>
    %477 = arith.addf %473, %476 : vector<8x48xf32>
    %c3 = arith.constant 3 : index
    %c0_139 = arith.constant 0 : index
    %478 = vector.load %arg3[%c3, %c0_139] : memref<4x128xf32, #tpu.memory_space<vmem>>, vector<1x48xf32>
    %479 = vector.broadcast %478 : vector<1x48xf32> to vector<8x48xf32>
    %480 = arith.addf %477, %479 : vector<8x48xf32>
    %cst_140 = arith.constant 0.000000e+00 : f32
    %481 = vector.broadcast %cst_140 : f32 to vector<8x48xf32>
    %482 = arith.maximumf %480, %481 : vector<8x48xf32>
    %c0_141 = arith.constant 0 : index
    %c96_142 = arith.constant 96 : index
    %483 = vector.load %arg4[%c0_141, %c96_142] : memref<48x160xf32, #tpu.memory_space<vmem>>, vector<48x32xf32>
    %cst_143 = arith.constant dense<0.000000e+00> : vector<8x32xf32>
    %484 = tpu.matmul %482, %483, %cst_143 {dimension_numbers = #tpu.dot_dimension_numbers<[1], [0], [0], [1], [0, 0, 1, 1], [], []>} : vector<8x48xf32>, vector<48x32xf32>, vector<8x32xf32> -> vector<8x32xf32>
    %c3_144 = arith.constant 3 : index
    %c48_145 = arith.constant 48 : index
    %485 = vector.load %arg3[%c3_144, %c48_145] : memref<4x128xf32, #tpu.memory_space<vmem>>, vector<1x32xf32>
    %486 = vector.broadcast %485 : vector<1x32xf32> to vector<8x32xf32>
    %487 = arith.addf %484, %486 : vector<8x32xf32>
    %cst_146 = arith.constant 0.000000e+00 : f32
    %488 = vector.broadcast %cst_146 : f32 to vector<8x32xf32>
    %489 = arith.maximumf %487, %488 : vector<8x32xf32>
    %c0_147 = arith.constant 0 : index
    %c128 = arith.constant 128 : index
    %490 = vector.load %arg4[%c0_147, %c128] : memref<48x160xf32, #tpu.memory_space<vmem>>, vector<32x16xf32>
    %cst_148 = arith.constant dense<0.000000e+00> : vector<8x16xf32>
    %491 = tpu.matmul %489, %490, %cst_148 {dimension_numbers = #tpu.dot_dimension_numbers<[1], [0], [0], [1], [0, 0, 1, 1], [], []>} : vector<8x32xf32>, vector<32x16xf32>, vector<8x16xf32> -> vector<8x16xf32>
    %c3_149 = arith.constant 3 : index
    %c80 = arith.constant 80 : index
    %492 = vector.load %arg3[%c3_149, %c80] : memref<4x128xf32, #tpu.memory_space<vmem>>, vector<1x16xf32>
    %493 = vector.broadcast %492 : vector<1x16xf32> to vector<8x16xf32>
    %494 = arith.addf %491, %493 : vector<8x16xf32>
    %cst_150 = arith.constant 0.000000e+00 : f32
    %495 = vector.broadcast %cst_150 : f32 to vector<8x16xf32>
    %496 = arith.maximumf %494, %495 : vector<8x16xf32>
    %c0_151 = arith.constant 0 : index
    %c144 = arith.constant 144 : index
    %497 = vector.load %arg4[%c0_151, %c144] : memref<48x160xf32, #tpu.memory_space<vmem>>, vector<1x16xf32>
    %cst_152 = arith.constant dense<0.000000e+00> : vector<1x8xf32>
    %498 = tpu.matmul %497, %496, %cst_152 {dimension_numbers = #tpu.dot_dimension_numbers<[1], [1], [0], [0], [0, 0, 1, 0], [], []>} : vector<1x16xf32>, vector<8x16xf32>, vector<1x8xf32> -> vector<1x8xf32>
    %c3_153 = arith.constant 3 : index
    %c96_154 = arith.constant 96 : index
    %499 = vector.load %arg3[%c3_153, %c96_154] : memref<4x128xf32, #tpu.memory_space<vmem>>, vector<1x1xf32>
    %500 = vector.broadcast %499 : vector<1x1xf32> to vector<1x8xf32>
    %501 = arith.addf %498, %500 : vector<1x8xf32>
    %c0_155 = arith.constant 0 : index
    %c0_156 = arith.constant 0 : index
    %502 = vector.load %arg6[%c0_155, %c0_156] : memref<1x8xf32, #tpu.memory_space<vmem>>, vector<1x8xf32>
    tpu.vector_store %arg6[%c0_155, %c0_156], %501 {strides = array<i32>} : memref<1x8xf32, #tpu.memory_space<vmem>>, vector<1x8xf32>,
    return
  }
}

</mosaic_0001>

<llo_original>
// kernel: recurrent_net_forward.1
$region0: #{recurrent_net_forward.1}
  #allocation0 [shape = 'u32[]', space=smem, size = 0x4, offset = 0x4, fixed_abs, tag = 'smem constant byte address 0x4 - core index']
  #allocation1 [shape = 'u32[144,128]{1,0:T(1,128)}', space=vmem, size = 0x12000, scoped, tag = 'internal scratch']
  %s0 = inlined_call_operand.vmem [shape: s32[1,56], index: 0, kind: input, shape index: {}]
  %s1 = inlined_call_operand.vmem [shape: f32[128,32], index: 1, kind: input, shape index: {}]
  %s2 = inlined_call_operand.vmem [shape: f32[32,576], index: 2, kind: input, shape index: {}]
  %s3 = inlined_call_operand.vmem [shape: f32[4,128], index: 3, kind: input, shape index: {}]
  %s4 = inlined_call_operand.hbm [shape: f32[48,160], index: 4, kind: input, shape index: {}]
  %s5 = inlined_call_operand.vmem [shape: f32[1,32], index: 5, kind: input, shape index: {}, may-alias: {5,7}]
  %s6 = inlined_call_operand.hbm [shape: f32[1,8], index: 6, kind: output, shape index: {0}]
  %s7 = inlined_call_operand.vmem [shape: f32[1,32], index: 7, kind: output, shape index: {1}, may-alias: {5,7}]
  %8 = xla_tuple %s6, %s7
  %s9 = sld [smem:[#allocation0]]
  $region46: #{recurrent_net_forward.1} parent=0
    _
  %s11 = ssub.s32 1, %s9
  %s12 = scalar_select 0, %s11, %s9
  $region1: #{recurrent_net_forward.1} parent=0
    #allocation2 [shape = 'u8[49152]{0}', space=vmem, size = 0xc000, scoped, tag = 'input window, operand 4, single buffered']
    #allocation3 [shape = 's32[1]{0}', space=sflag, size = 0x4, scoped, tag = 'scoped memory for recurrent_net_forward.1']
    #allocation4 [shape = 's32[1]{0}', space=sflag, size = 0x4, scoped, tag = 'scoped memory for recurrent_net_forward.1']
    #allocation5 [shape = 'u8[512]{0}', space=vmem, size = 0x400, scoped, tag = 'output window, operand 0, single buffered']
    %13 = vsyncpa [#allocation3], 0
    %14 = vsyncpa [#allocation4], 0
    // Predicated region
    $region2: #{recurrent_net_forward.1} parent=1 // pred_check
      _
    $region3: #{recurrent_net_forward.1} parent=1 // pred_check_branch
      %16 = sbr.rel (0) target = $region5
    $region4: #{recurrent_net_forward.1} parent=1 // pred_region
      _
    $region5: #{recurrent_net_forward.1} parent=1 // pred_fallthru
      _
    // Predicated region
    $region6: #{recurrent_net_forward.1} parent=1 // pred_check
      _
    $region7: #{recurrent_net_forward.1} parent=1 // pred_check_branch
      %18 = sbr.rel (0) target = $region9
    $region8: #{recurrent_net_forward.1} parent=1 // pred_region
      _
    $region9: #{recurrent_net_forward.1} parent=1 // pred_fallthru
      _
    // Predicated region
    $region10: #{recurrent_net_forward.1} parent=1 // pred_check
      _
    $region11: #{recurrent_net_forward.1} parent=1 // pred_check_branch
      %20 = sbr.rel (0) target = $region13
    $region12: #{recurrent_net_forward.1} parent=1 // pred_region
      _
    $region13: #{recurrent_net_forward.1} parent=1 // pred_fallthru
      _
    // Predicated region
    $region14: #{recurrent_net_forward.1} parent=1 // pred_check
      _
    $region15: #{recurrent_net_forward.1} parent=1 // pred_check_branch
      %22 = sbr.rel (0) target = $region17
    $region16: #{recurrent_net_forward.1} parent=1 // pred_region
      _
    $region17: #{recurrent_net_forward.1} parent=1 // pred_fallthru
      _
    // Predicated region
    $region18: #{recurrent_net_forward.1} parent=1 // pred_check
      _
    $region19: #{recurrent_net_forward.1} parent=1 // pred_check_branch
      %24 = sbr.rel (0) target = $region21
    $region20: #{recurrent_net_forward.1} parent=1 // pred_region
      %s26 = ssub.s32 1536, 1536
      %27 = vsyncadd [#allocation3], %s26
      %s28 = sshll.u32 [#allocation2], 4
      %s29 = int_to_ptr.vmem [resolvable:$true] %s28
      %34 = dma.hbm_to_vmem [thread:$0]  %s4, 1536, %s29, [#allocation3], 256, 256, 16
    $region21: #{recurrent_net_forward.1} parent=1 // pred_fallthru
      _
    // Predicated region
    $region22: #{recurrent_net_forward.1} parent=1 // pred_check
      _
    $region23: #{recurrent_net_forward.1} parent=1 // pred_check_branch
      %36 = sbr.rel (0) target = $region25
    $region24: #{recurrent_net_forward.1} parent=1 // pred_region
      _
    $region25: #{recurrent_net_forward.1} parent=1 // pred_fallthru
      _
    // Predicated region
    $region26: #{recurrent_net_forward.1} parent=1 // pred_check
      _
    $region27: #{recurrent_net_forward.1} parent=1 // pred_check_branch
      %38 = sbr.rel (0) target = $region29
    $region28: #{recurrent_net_forward.1} parent=1 // pred_region
      %39 = dma.done [#allocation3], 1536
    $region29: #{recurrent_net_forward.1} parent=1 // pred_fallthru
      _
    %v40 = vld [vmem:[%s0] sm:$0x1]
    %v41 = vlaneseq
    %v42 = vshrl.u32 %v41, 7
    %v43 = vadd.s32 %v42, 8
    %v44 = vadd.s32 %v42, 16
    %v45 = vadd.s32 %v42, 24
    %v46 = vadd.s32 %v42, 32
    %v47 = vadd.s32 %v42, 40
    %v48 = vadd.s32 %v42, 48
    %v49 = vadd.s32 %v42, 56
    %v50 = vadd.s32 %v42, 64
    %v51 = vadd.s32 %v42, 72
    %v52 = vadd.s32 %v42, 80
    %v53 = vadd.s32 %v42, 88
    %v54 = vadd.s32 %v42, 96
    %v55 = vadd.s32 %v42, 104
    %v56 = vadd.s32 %v42, 112
    %v57 = vadd.s32 %v42, 120
    %v58 = vlaneseq
    %v59 = vshrl.u32 %v58, 7
    %v60 = vsub.s32 0, %v59
    %v61 = vrot.slane %v40, %v60
    %vm62 = vcmp.eq.s32.totalorder %v61, %v42
    %vm63 = vcmp.eq.s32.totalorder %v61, %v43
    %vm64 = vcmp.eq.s32.totalorder %v61, %v44
    %vm65 = vcmp.eq.s32.totalorder %v61, %v45
    %vm66 = vcmp.eq.s32.totalorder %v61, %v46
    %vm67 = vcmp.eq.s32.totalorder %v61, %v47
    %vm68 = vcmp.eq.s32.totalorder %v61, %v48
    %vm69 = vcmp.eq.s32.totalorder %v61, %v49
    %vm70 = vcmp.eq.s32.totalorder %v61, %v50
    %vm71 = vcmp.eq.s32.totalorder %v61, %v51
    %vm72 = vcmp.eq.s32.totalorder %v61, %v52
    %vm73 = vcmp.eq.s32.totalorder %v61, %v53
    %vm74 = vcmp.eq.s32.totalorder %v61, %v54
    %vm75 = vcmp.eq.s32.totalorder %v61, %v55
    %vm76 = vcmp.eq.s32.totalorder %v61, %v56
    %vm77 = vcmp.eq.s32.totalorder %v61, %v57
    %v78 = vsel %vm62, 1.0, 0.0
    %v79 = vsel %vm63, 1.0, 0.0
    %v80 = vsel %vm64, 1.0, 0.0
    %v81 = vsel %vm65, 1.0, 0.0
    %v82 = vsel %vm66, 1.0, 0.0
    %v83 = vsel %vm67, 1.0, 0.0
    %v84 = vsel %vm68, 1.0, 0.0
    %v85 = vsel %vm69, 1.0, 0.0
    %v86 = vsel %vm70, 1.0, 0.0
    %v87 = vsel %vm71, 1.0, 0.0
    %v88 = vsel %vm72, 1.0, 0.0
    %v89 = vsel %vm73, 1.0, 0.0
    %v90 = vsel %vm74, 1.0, 0.0
    %v91 = vsel %vm75, 1.0, 0.0
    %v92 = vsel %vm76, 1.0, 0.0
    %v93 = vsel %vm77, 1.0, 0.0
    %v94 = vld [vmem:[%s1] sm:$0xff]
    %v95 = vld [vmem:[%s1 + $0x8] sm:$0xff]
    %v96 = vld [vmem:[%s1 + $0x10] sm:$0xff]
    %v97 = vld [vmem:[%s1 + $0x18] sm:$0xff]
    %v98 = vld [vmem:[%s1 + $0x20] sm:$0xff]
    %v99 = vld [vmem:[%s1 + $0x28] sm:$0xff]
    %v100 = vld [vmem:[%s1 + $0x30] sm:$0xff]
    %v101 = vld [vmem:[%s1 + $0x38] sm:$0xff]
    %v102 = vld [vmem:[%s1 + $0x40] sm:$0xff]
    %v103 = vld [vmem:[%s1 + $0x48] sm:$0xff]
    %v104 = vld [vmem:[%s1 + $0x50] sm:$0xff]
    %v105 = vld [vmem:[%s1 + $0x58] sm:$0xff]
    %v106 = vld [vmem:[%s1 + $0x60] sm:$0xff]
    %v107 = vld [vmem:[%s1 + $0x68] sm:$0xff]
    %v108 = vld [vmem:[%s1 + $0x70] sm:$0xff]
    %v109 = vld [vmem:[%s1 + $0x78] sm:$0xff]
    %110 = vxpose.xlu0.b32.start [1/16] %v78, 128
    %111 = vxpose.xlu0.b32.cont [2/16] %v79, 128
    %112 = vxpose.xlu0.b32.cont [3/16] %v80, 128
    %113 = vxpose.xlu0.b32.cont [4/16] %v81, 128
    %114 = vxpose.xlu0.b32.cont [5/16] %v82, 128
    %115 = vxpose.xlu0.b32.cont [6/16] %v83, 128
    %116 = vxpose.xlu0.b32.cont [7/16] %v84, 128
    %117 = vxpose.xlu0.b32.cont [8/16] %v85, 128
    %118 = vxpose.xlu0.b32.cont [9/16] %v86, 128
    %119 = vxpose.xlu0.b32.cont [10/16] %v87, 128
    %120 = vxpose.xlu0.b32.cont [11/16] %v88, 128
    %121 = vxpose.xlu0.b32.cont [12/16] %v89, 128
    %122 = vxpose.xlu0.b32.cont [13/16] %v90, 128
    %123 = vxpose.xlu0.b32.cont [14/16] %v91, 128
    %124 = vxpose.xlu0.b32.cont [15/16] %v92, 128
    %125 = vxpose.xlu0.b32.end [16/16] %v93, 128
    %v126 = vpop.trf.xlu0
    %v127 = vpop.trf.xlu0
    %v128 = vpop.trf.xlu0
    %v129 = vpop.trf.xlu0
    %v130 = vpop.trf.xlu0
    %v131 = vpop.trf.xlu0
    %v132 = vpop.trf.xlu0
    %v133 = vpop.trf.xlu0
    %v134 = vpop.trf.xlu0
    %v135 = vpop.trf.xlu0
    %v136 = vpop.trf.xlu0
    %v137 = vpop.trf.xlu0
    %v138 = vpop.trf.xlu0
    %v139 = vpop.trf.xlu0
    %v140 = vpop.trf.xlu0
    %v141 = vpop.trf.xlu0
    %142 = vmatprep.subr.mxu0 0.0
    %143 = vmatpush1.msra.mxu0 %v94
    %144 = vmatprep.subr.mxu0 0.0
    %145 = vmatpush1.msra.mxu0 %v95
    %146 = vmatprep.subr.mxu0 0.0
    %147 = vmatpush1.msra.mxu0 %v96
    %148 = vmatprep.subr.mxu0 0.0
    %149 = vmatpush1.msra.mxu0 %v97
    %150 = vmatprep.subr.mxu0 0.0
    %151 = vmatpush1.msra.mxu0 %v98
    %152 = vmatprep.subr.mxu0 0.0
    %153 = vmatpush1.msra.mxu0 %v99
    %154 = vmatprep.subr.mxu0 0.0
    %155 = vmatpush1.msra.mxu0 %v100
    %156 = vmatprep.subr.mxu0 0.0
    %157 = vmatpush1.msra.mxu0 %v101
    %158 = vmatprep.subr.mxu0 0.0
    %159 = vmatpush1.msra.mxu0 %v102
    %160 = vmatprep.subr.mxu0 0.0
    %161 = vmatpush1.msra.mxu0 %v103
    %162 = vmatprep.subr.mxu0 0.0
    %163 = vmatpush1.msra.mxu0 %v104
    %164 = vmatprep.subr.mxu0 0.0
    %165 = vmatpush1.msra.mxu0 %v105
    %166 = vmatprep.subr.mxu0 0.0
    %167 = vmatpush1.msra.mxu0 %v106
    %168 = vmatprep.subr.mxu0 0.0
    %169 = vmatpush1.msra.mxu0 %v107
    %170 = vmatprep.subr.mxu0 0.0
    %171 = vmatpush1.msra.mxu0 %v108
    %172 = vmatprep.subr.mxu0 0.0
    %173 = vmatpush1.msra.mxu0 %v109
    %174 = vmatprep.subr.mxu0 0.0
    %175 = vmatpush1.msra.mxu0 0.0
    %176 = vmatprep.subr.mxu0 0.0
    %177 = vmatpush1.msra.mxu0 0.0
    %178 = vmatprep.subr.mxu0 0.0
    %179 = vmatpush1.msra.mxu0 0.0
    %180 = vmatprep.subr.mxu0 0.0
    %181 = vmatpush1.msra.mxu0 0.0
    %182 = vmatprep.subr.mxu0 0.0
    %183 = vmatpush1.msra.mxu0 0.0
    %184 = vmatprep.subr.mxu0 0.0
    %185 = vmatpush1.msra.mxu0 0.0
    %186 = vmatprep.subr.mxu0 0.0
    %187 = vmatpush1.msra.mxu0 0.0
    %188 = vmatprep.subr.mxu0 0.0
    %189 = vmatpush1.msra.mxu0 0.0
    %190 = vmatprep.subr.mxu0 0.0
    %191 = vmatpush1.msra.mxu0 0.0
    %192 = vmatprep.subr.mxu0 0.0
    %193 = vmatpush1.msra.mxu0 0.0
    %194 = vmatprep.subr.mxu0 0.0
    %195 = vmatpush1.msra.mxu0 0.0
    %196 = vmatprep.subr.mxu0 0.0
    %197 = vmatpush1.msra.mxu0 0.0
    %198 = vmatprep.subr.mxu0 0.0
    %199 = vmatpush1.msra.mxu0 0.0
    %200 = vmatprep.subr.mxu0 0.0
    %201 = vmatpush1.msra.mxu0 0.0
    %202 = vmatprep.subr.mxu0 0.0
    %203 = vmatpush1.msra.mxu0 0.0
    %204 = vmatprep.subr.mxu0 0.0
    %205 = vmatpush1.msra.mxu0 0.0
    %206 = vmatprep.mubr.f32.mxu0 0.0
    %207 = vmatmul.mubr.f32.gmra.mrb[0].mxu0 %v126
    %v208 = vpop.f32.mrb[0].mxu0
    %v209 = vadd.f32 0.0, %v208
    %v210 = vpop.f32.mrb[0].mxu0
    %211 = vmatprep.mubr.f32.mxu0 0.0
    %212 = vmatmul.mubr.f32.gmra.mrb[0].mxu0 %v127
    %v213 = vpop.f32.mrb[0].mxu0
    %v214 = vadd.f32 0.0, %v213
    %v215 = vpop.f32.mrb[0].mxu0
    %216 = vmatprep.mubr.f32.mxu0 0.0
    %217 = vmatmul.mubr.f32.gmra.mrb[0].mxu0 %v128
    %v218 = vpop.f32.mrb[0].mxu0
    %v219 = vadd.f32 0.0, %v218
    %v220 = vpop.f32.mrb[0].mxu0
    %221 = vmatprep.mubr.f32.mxu0 0.0
    %222 = vmatmul.mubr.f32.gmra.mrb[0].mxu0 %v129
    %v223 = vpop.f32.mrb[0].mxu0
    %v224 = vadd.f32 0.0, %v223
    %v225 = vpop.f32.mrb[0].mxu0
    %226 = vmatprep.mubr.f32.mxu0 0.0
    %227 = vmatmul.mubr.f32.gmra.mrb[0].mxu0 %v130
    %v228 = vpop.f32.mrb[0].mxu0
    %v229 = vadd.f32 0.0, %v228
    %v230 = vpop.f32.mrb[0].mxu0
    %231 = vmatprep.mubr.f32.mxu0 0.0
    %232 = vmatmul.mubr.f32.gmra.mrb[0].mxu0 %v131
    %v233 = vpop.f32.mrb[0].mxu0
    %v234 = vadd.f32 0.0, %v233
    %v235 = vpop.f32.mrb[0].mxu0
    %236 = vmatprep.mubr.f32.mxu0 0.0
    %237 = vmatmul.mubr.f32.gmra.mrb[0].mxu0 %v132
    %v238 = vpop.f32.mrb[0].mxu0
    %v239 = vadd.f32 0.0, %v238
    %v240 = vpop.f32.mrb[0].mxu0
    %241 = vdwg.mxu0
    %v242 = vld [vmem:[%s2] sm:$0xff]
    %v243 = vld [vmem:[%s2 + $0x8] sm:$0xff]
    %v244 = vld [vmem:[%s2 + $0x28] sm:$0xff]
    %v245 = vld [vmem:[%s2 + $0x30] sm:$0xff]
    %v246 = vld [vmem:[%s2 + $0x50] sm:$0xff]
    %v247 = vld [vmem:[%s2 + $0x58] sm:$0xff]
    %v248 = vld [vmem:[%s2 + $0x78] sm:$0xff]
    %v249 = vld [vmem:[%s2 + $0x80] sm:$0xff]
    %vm250 = vcmask 261120
    %v252 = vsel %vm250, %v209, 0
    %v255 = vsel %vm250, %v214, 0
    %v258 = vsel %vm250, %v219, 0
    %v261 = vsel %vm250, %v224, 0
    %v264 = vsel %vm250, %v229, 0
    %v267 = vsel %vm250, %v234, 0
    %v270 = vsel %vm250, %v239, 0
    %272 = vmatprep.subr.mxu0 %v243
    %273 = vmatpush1.msra.mxu0 %v242
    %274 = vmatprep.subr.mxu0 %v245
    %275 = vmatpush1.msra.mxu0 %v244
    %276 = vmatprep.subr.mxu0 %v247
    %277 = vmatpush1.msra.mxu0 %v246
    %278 = vmatprep.subr.mxu0 %v249
    %279 = vmatpush1.msra.mxu0 %v248
    %280 = vmatprep.subr.mxu0 0.0
    %281 = vmatpush1.msra.mxu0 0.0
    %282 = vmatprep.subr.mxu0 0.0
    %283 = vmatpush1.msra.mxu0 0.0
    %284 = vmatprep.subr.mxu0 0.0
    %285 = vmatpush1.msra.mxu0 0.0
    %286 = vmatprep.subr.mxu0 0.0
    %287 = vmatpush1.msra.mxu0 0.0
    %288 = vmatprep.subr.mxu0 0.0
    %289 = vmatpush1.msra.mxu0 0.0
    %290 = vmatprep.subr.mxu0 0.0
    %291 = vmatpush1.msra.mxu0 0.0
    %292 = vmatprep.subr.mxu0 0.0
    %293 = vmatpush1.msra.mxu0 0.0
    %294 = vmatprep.subr.mxu0 0.0
    %295 = vmatpush1.msra.mxu0 0.0
    %296 = vmatprep.subr.mxu0 0.0
    %297 = vmatpush1.msra.mxu0 0.0
    %298 = vmatprep.subr.mxu0 0.0
    %299 = vmatpush1.msra.mxu0 0.0
    %300 = vmatprep.subr.mxu0 0.0
    %301 = vmatpush1.msra.mxu0 0.0
    %302 = vmatprep.subr.mxu0 0.0
    %303 = vmatpush1.msra.mxu0 0.0
    %304 = vmatprep.subr.mxu0 0.0
    %305 = vmatpush1.msra.mxu0 0.0
    %306 = vmatprep.subr.mxu0 0.0
    %307 = vmatpush1.msra.mxu0 0.0
    %308 = vmatprep.subr.mxu0 0.0
    %309 = vmatpush1.msra.mxu0 0.0
    %310 = vmatprep.subr.mxu0 0.0
    %311 = vmatpush1.msra.mxu0 0.0
    %312 = vmatprep.subr.mxu0 0.0
    %313 = vmatpush1.msra.mxu0 0.0
    %314 = vmatprep.subr.mxu0 0.0
    %315 = vmatpush1.msra.mxu0 0.0
    %316 = vmatprep.subr.mxu0 0.0
    %317 = vmatpush1.msra.mxu0 0.0
    %318 = vmatprep.subr.mxu0 0.0
    %319 = vmatpush1.msra.mxu0 0.0
    %320 = vmatprep.subr.mxu0 0.0
    %321 = vmatpush1.msra.mxu0 0.0
    %322 = vmatprep.subr.mxu0 0.0
    %323 = vmatpush1.msra.mxu0 0.0
    %324 = vmatprep.subr.mxu0 0.0
    %325 = vmatpush1.msra.mxu0 0.0
    %326 = vmatprep.subr.mxu0 0.0
    %327 = vmatpush1.msra.mxu0 0.0
    %328 = vmatprep.subr.mxu0 0.0
    %329 = vmatpush1.msra.mxu0 0.0
    %330 = vmatprep.subr.mxu0 0.0
    %331 = vmatpush1.msra.mxu0 0.0
    %332 = vmatprep.subr.mxu0 0.0
    %333 = vmatpush1.msra.mxu0 0.0
    %334 = vmatprep.subr.mxu0 0.0
    %335 = vmatpush1.msra.mxu0 0.0
    %336 = vmatprep.mubr.f32.mxu0 0.0
    %337 = vmatmul.mubr.f32.gmra.mrb[0].mxu0 %v252
    %v338 = vpop.f32.mrb[0].mxu0
    %v339 = vadd.f32 0.0, %v338
    %v340 = vpop.f32.mrb[0].mxu0
    %341 = vmatprep.mubr.f32.mxu0 0.0
    %342 = vmatmul.mubr.f32.gmra.mrb[0].mxu0 %v255
    %v343 = vpop.f32.mrb[0].mxu0
    %v344 = vadd.f32 0.0, %v343
    %v345 = vpop.f32.mrb[0].mxu0
    %v346 = vadd.f32 0.0, %v345
    %347 = vmatprep.mubr.f32.mxu0 0.0
    %348 = vmatmul.mubr.f32.gmra.mrb[0].mxu0 %v258
    %v349 = vpop.f32.mrb[0].mxu0
    %v350 = vadd.f32 0.0, %v349
    %v351 = vpop.f32.mrb[0].mxu0
    %v352 = vadd.f32 0.0, %v351
    %353 = vmatprep.mubr.f32.mxu0 0.0
    %354 = vmatmul.mubr.f32.gmra.mrb[0].mxu0 %v261
    %v355 = vpop.f32.mrb[0].mxu0
    %v356 = vadd.f32 0.0, %v355
    %v357 = vpop.f32.mrb[0].mxu0
    %v358 = vadd.f32 0.0, %v357
    %359 = vmatprep.mubr.f32.mxu0 0.0
    %360 = vmatmul.mubr.f32.gmra.mrb[0].mxu0 %v264
    %v361 = vpop.f32.mrb[0].mxu0
    %v362 = vadd.f32 0.0, %v361
    %v363 = vpop.f32.mrb[0].mxu0
    %v364 = vadd.f32 0.0, %v363
    %365 = vmatprep.mubr.f32.mxu0 0.0
    %366 = vmatmul.mubr.f32.gmra.mrb[0].mxu0 %v267
    %v367 = vpop.f32.mrb[0].mxu0
    %v368 = vadd.f32 0.0, %v367
    %v369 = vpop.f32.mrb[0].mxu0
    %v370 = vadd.f32 0.0, %v369
    %371 = vmatprep.mubr.f32.mxu0 0.0
    %372 = vmatmul.mubr.f32.gmra.mrb[0].mxu0 %v270
    %v373 = vpop.f32.mrb[0].mxu0
    %v374 = vadd.f32 0.0, %v373
    %v375 = vpop.f32.mrb[0].mxu0
    %v376 = vadd.f32 0.0, %v375
    %377 = vdwg.mxu0
    %v378 = vld [vmem:[%s2 + $0x18] sm:$0xff]
    %v379 = vld [vmem:[%s2 + $0x40] sm:$0xff]
    %v380 = vld [vmem:[%s2 + $0x68] sm:$0xff]
    %v381 = vld [vmem:[%s2 + $0x90] sm:$0xff]
    %v382 = vld [vmem:[%s3 + $0x1] sm:$0x1]
    %v383 = vlaneseq
    %v384 = vshrl.u32 %v383, 7
    %v385 = vsub.s32 0, %v384
    %v386 = vrot.slane %v382, %v385
    %388 = vrot.lane.b32.xlu0 %v386, 96
    %v389 = vpop.permute.xlu0 %388
    %v391 = vadd.f32 %v344, %v389
    %v392 = vadd.f32 %v350, %v389
    %v393 = vadd.f32 %v356, %v389
    %v394 = vadd.f32 %v362, %v389
    %v395 = vadd.f32 %v368, %v389
    %v396 = vadd.f32 %v374, %v389
    %v397 = vadd.f32 %v346, %v389
    %v398 = vadd.f32 %v352, %v389
    %v399 = vadd.f32 %v358, %v389
    %v400 = vadd.f32 %v364, %v389
    %v401 = vadd.f32 %v370, %v389
    %v402 = vadd.f32 %v376, %v389
    %v404 = vsel %vm250, 0.0, 0
    %406 = vmatprep.subr.mxu0 0.0
    %407 = vmatpush1.msra.mxu0 %v378
    %408 = vmatprep.subr.mxu0 0.0
    %409 = vmatpush1.msra.mxu0 %v379
    %410 = vmatprep.subr.mxu0 0.0
    %411 = vmatpush1.msra.mxu0 %v380
    %412 = vmatprep.subr.mxu0 0.0
    %413 = vmatpush1.msra.mxu0 %v381
    %414 = vmatprep.subr.mxu0 0.0
    %415 = vmatpush1.msra.mxu0 0.0
    %416 = vmatprep.subr.mxu0 0.0
    %417 = vmatpush1.msra.mxu0 0.0
    %418 = vmatprep.subr.mxu0 0.0
    %419 = vmatpush1.msra.mxu0 0.0
    %420 = vmatprep.subr.mxu0 0.0
    %421 = vmatpush1.msra.mxu0 0.0
    %422 = vmatprep.subr.mxu0 0.0
    %423 = vmatpush1.msra.mxu0 0.0
    %424 = vmatprep.subr.mxu0 0.0
    %425 = vmatpush1.msra.mxu0 0.0
    %426 = vmatprep.subr.mxu0 0.0
    %427 = vmatpush1.msra.mxu0 0.0
    %428 = vmatprep.subr.mxu0 0.0
    %429 = vmatpush1.msra.mxu0 0.0
    %430 = vmatprep.subr.mxu0 0.0
    %431 = vmatpush1.msra.mxu0 0.0
    %432 = vmatprep.subr.mxu0 0.0
    %433 = vmatpush1.msra.mxu0 0.0
    %434 = vmatprep.subr.mxu0 0.0
    %435 = vmatpush1.msra.mxu0 0.0
    %436 = vmatprep.subr.mxu0 0.0
    %437 = vmatpush1.msra.mxu0 0.0
    %438 = vmatprep.subr.mxu0 0.0
    %439 = vmatpush1.msra.mxu0 0.0
    %440 = vmatprep.subr.mxu0 0.0
    %441 = vmatpush1.msra.mxu0 0.0
    %442 = vmatprep.subr.mxu0 0.0
    %443 = vmatpush1.msra.mxu0 0.0
    %444 = vmatprep.subr.mxu0 0.0
    %445 = vmatpush1.msra.mxu0 0.0
    %446 = vmatprep.subr.mxu0 0.0
    %447 = vmatpush1.msra.mxu0 0.0
    %448 = vmatprep.subr.mxu0 0.0
    %449 = vmatpush1.msra.mxu0 0.0
    %450 = vmatprep.subr.mxu0 0.0
    %451 = vmatpush1.msra.mxu0 0.0
    %452 = vmatprep.subr.mxu0 0.0
    %453 = vmatpush1.msra.mxu0 0.0
    %454 = vmatprep.subr.mxu0 0.0
    %455 = vmatpush1.msra.mxu0 0.0
    %456 = vmatprep.subr.mxu0 0.0
    %457 = vmatpush1.msra.mxu0 0.0
    %458 = vmatprep.subr.mxu0 0.0
    %459 = vmatpush1.msra.mxu0 0.0
    %460 = vmatprep.subr.mxu0 0.0
    %461 = vmatpush1.msra.mxu0 0.0
    %462 = vmatprep.subr.mxu0 0.0
    %463 = vmatpush1.msra.mxu0 0.0
    %464 = vmatprep.subr.mxu0 0.0
    %465 = vmatpush1.msra.mxu0 0.0
    %466 = vmatprep.subr.mxu0 0.0
    %467 = vmatpush1.msra.mxu0 0.0
    %468 = vmatprep.subr.mxu0 0.0
    %469 = vmatpush1.msra.mxu0 0.0
    %470 = vmatprep.mubr.f32.mxu0 0.0
    %471 = vmatmul.mubr.f32.gmra.mrb[0].mxu0 %v404
    %v472 = vpop.f32.mrb[0].mxu0
    %v473 = vadd.f32 0.0, %v472
    %v474 = vpop.f32.mrb[0].mxu0
    %475 = vdwg.mxu0
    %480 = vrot.lane.b32.xlu0 %v378, 96
    %v481 = vpop.permute.xlu0 %480
    %482 = vrot.lane.b32.xlu0 %v379, 96
    %v483 = vpop.permute.xlu0 %482
    %484 = vrot.lane.b32.xlu0 %v380, 96
    %v485 = vpop.permute.xlu0 %484
    %486 = vrot.lane.b32.xlu0 %v381, 96
    %v487 = vpop.permute.xlu0 %486
    %492 = vmatprep.subr.mxu0 0.0
    %493 = vmatpush1.msra.mxu0 %v481
    %494 = vmatprep.subr.mxu0 0.0
    %495 = vmatpush1.msra.mxu0 %v483
    %496 = vmatprep.subr.mxu0 0.0
    %497 = vmatpush1.msra.mxu0 %v485
    %498 = vmatprep.subr.mxu0 0.0
    %499 = vmatpush1.msra.mxu0 %v487
    %500 = vmatprep.subr.mxu0 0.0
    %501 = vmatpush1.msra.mxu0 0.0
    %502 = vmatprep.subr.mxu0 0.0
    %503 = vmatpush1.msra.mxu0 0.0
    %504 = vmatprep.subr.mxu0 0.0
    %505 = vmatpush1.msra.mxu0 0.0
    %506 = vmatprep.subr.mxu0 0.0
    %507 = vmatpush1.msra.mxu0 0.0
    %508 = vmatprep.subr.mxu0 0.0
    %509 = vmatpush1.msra.mxu0 0.0
    %510 = vmatprep.subr.mxu0 0.0
    %511 = vmatpush1.msra.mxu0 0.0
    %512 = vmatprep.subr.mxu0 0.0
    %513 = vmatpush1.msra.mxu0 0.0
    %514 = vmatprep.subr.mxu0 0.0
    %515 = vmatpush1.msra.mxu0 0.0
    %516 = vmatprep.subr.mxu0 0.0
    %517 = vmatpush1.msra.mxu0 0.0
    %518 = vmatprep.subr.mxu0 0.0
    %519 = vmatpush1.msra.mxu0 0.0
    %520 = vmatprep.subr.mxu0 0.0
    %521 = vmatpush1.msra.mxu0 0.0
    %522 = vmatprep.subr.mxu0 0.0
    %523 = vmatpush1.msra.mxu0 0.0
    %524 = vmatprep.subr.mxu0 0.0
    %525 = vmatpush1.msra.mxu0 0.0
    %526 = vmatprep.subr.mxu0 0.0
    %527 = vmatpush1.msra.mxu0 0.0
    %528 = vmatprep.subr.mxu0 0.0
    %529 = vmatpush1.msra.mxu0 0.0
    %530 = vmatprep.subr.mxu0 0.0
    %531 = vmatpush1.msra.mxu0 0.0
    %532 = vmatprep.subr.mxu0 0.0
    %533 = vmatpush1.msra.mxu0 0.0
    %534 = vmatprep.subr.mxu0 0.0
    %535 = vmatpush1.msra.mxu0 0.0
    %536 = vmatprep.subr.mxu0 0.0
    %537 = vmatpush1.msra.mxu0 0.0
    %538 = vmatprep.subr.mxu0 0.0
    %539 = vmatpush1.msra.mxu0 0.0
    %540 = vmatprep.subr.mxu0 0.0
    %541 = vmatpush1.msra.mxu0 0.0
    %542 = vmatprep.subr.mxu0 0.0
    %543 = vmatpush1.msra.mxu0 0.0
    %544 = vmatprep.subr.mxu0 0.0
    %545 = vmatpush1.msra.mxu0 0.0
    %546 = vmatprep.subr.mxu0 0.0
    %547 = vmatpush1.msra.mxu0 0.0
    %548 = vmatprep.subr.mxu0 0.0
    %549 = vmatpush1.msra.mxu0 0.0
    %550 = vmatprep.subr.mxu0 0.0
    %551 = vmatpush1.msra.mxu0 0.0
    %552 = vmatprep.subr.mxu0 0.0
    %553 = vmatpush1.msra.mxu0 0.0
    %554 = vmatprep.subr.mxu0 0.0
    %555 = vmatpush1.msra.mxu0 0.0
    %556 = vmatprep.mubr.f32.mxu0 0.0
    %557 = vmatmul.mubr.f32.gmra.mrb[0].mxu0 %v404
    %v558 = vpop.f32.mrb[0].mxu0
    %v559 = vadd.f32 0.0, %v558
    %v560 = vpop.f32.mrb[0].mxu0
    %561 = vdwg.mxu0
    %563 = vrot.lane.b32.xlu0 %v473, 96
    %v564 = vpop.permute.xlu0 %563
    %v566 = vadd.f32 %v391, %v564
    %v567 = vxor.u32 %v566, 2147483648
    %v568 = vmul.f32 %v567, 1.442695
    %v569 = vpow.pop %v568
    %v570 = vadd.f32 %v569, 1.0
    %v571 = vrcp.pop %v570
    %v572 = vmul.f32 1.0, %v571
    %v573 = vadd.f32 %v397, %v559
    %v574 = vxor.u32 %v573, 2147483648
    %v575 = vmul.f32 %v574, 1.442695
    %v576 = vpow.pop %v575
    %v577 = vadd.f32 %v576, 1.0
    %v578 = vrcp.pop %v577
    %v579 = vmul.f32 1.0, %v578
    %580 = vrot.lane.b32.xlu0 %v378, 64
    %v581 = vpop.permute.xlu0 %580
    %582 = vrot.lane.b32.xlu0 %v379, 64
    %v583 = vpop.permute.xlu0 %582
    %584 = vrot.lane.b32.xlu0 %v380, 64
    %v585 = vpop.permute.xlu0 %584
    %586 = vrot.lane.b32.xlu0 %v381, 64
    %v587 = vpop.permute.xlu0 %586
    %592 = vrot.lane.b32.xlu0 %v386, 32
    %v593 = vpop.permute.xlu0 %592
    %595 = vmatprep.subr.mxu0 0.0
    %596 = vmatpush1.msra.mxu0 %v581
    %597 = vmatprep.subr.mxu0 0.0
    %598 = vmatpush1.msra.mxu0 %v583
    %599 = vmatprep.subr.mxu0 0.0
    %600 = vmatpush1.msra.mxu0 %v585
    %601 = vmatprep.subr.mxu0 0.0
    %602 = vmatpush1.msra.mxu0 %v587
    %603 = vmatprep.subr.mxu0 0.0
    %604 = vmatpush1.msra.mxu0 0.0
    %605 = vmatprep.subr.mxu0 0.0
    %606 = vmatpush1.msra.mxu0 0.0
    %607 = vmatprep.subr.mxu0 0.0
    %608 = vmatpush1.msra.mxu0 0.0
    %609 = vmatprep.subr.mxu0 0.0
    %610 = vmatpush1.msra.mxu0 0.0
    %611 = vmatprep.subr.mxu0 0.0
    %612 = vmatpush1.msra.mxu0 0.0
    %613 = vmatprep.subr.mxu0 0.0
    %614 = vmatpush1.msra.mxu0 0.0
    %615 = vmatprep.subr.mxu0 0.0
    %616 = vmatpush1.msra.mxu0 0.0
    %617 = vmatprep.subr.mxu0 0.0
    %618 = vmatpush1.msra.mxu0 0.0
    %619 = vmatprep.subr.mxu0 0.0
    %620 = vmatpush1.msra.mxu0 0.0
    %621 = vmatprep.subr.mxu0 0.0
    %622 = vmatpush1.msra.mxu0 0.0
    %623 = vmatprep.subr.mxu0 0.0
    %624 = vmatpush1.msra.mxu0 0.0
    %625 = vmatprep.subr.mxu0 0.0
    %626 = vmatpush1.msra.mxu0 0.0
    %627 = vmatprep.subr.mxu0 0.0
    %628 = vmatpush1.msra.mxu0 0.0
    %629 = vmatprep.subr.mxu0 0.0
    %630 = vmatpush1.msra.mxu0 0.0
    %631 = vmatprep.subr.mxu0 0.0
    %632 = vmatpush1.msra.mxu0 0.0
    %633 = vmatprep.subr.mxu0 0.0
    %634 = vmatpush1.msra.mxu0 0.0
    %635 = vmatprep.subr.mxu0 0.0
    %636 = vmatpush1.msra.mxu0 0.0
    %637 = vmatprep.subr.mxu0 0.0
    %638 = vmatpush1.msra.mxu0 0.0
    %639 = vmatprep.subr.mxu0 0.0
    %640 = vmatpush1.msra.mxu0 0.0
    %641 = vmatprep.subr.mxu0 0.0
    %642 = vmatpush1.msra.mxu0 0.0
    %643 = vmatprep.subr.mxu0 0.0
    %644 = vmatpush1.msra.mxu0 0.0
    %645 = vmatprep.subr.mxu0 0.0
    %646 = vmatpush1.msra.mxu0 0.0
    %647 = vmatprep.subr.mxu0 0.0
    %648 = vmatpush1.msra.mxu0 0.0
    %649 = vmatprep.subr.mxu0 0.0
    %650 = vmatpush1.msra.mxu0 0.0
    %651 = vmatprep.subr.mxu0 0.0
    %652 = vmatpush1.msra.mxu0 0.0
    %653 = vmatprep.subr.mxu0 0.0
    %654 = vmatpush1.msra.mxu0 0.0
    %655 = vmatprep.subr.mxu0 0.0
    %656 = vmatpush1.msra.mxu0 0.0
    %657 = vmatprep.subr.mxu0 0.0
    %658 = vmatpush1.msra.mxu0 0.0
    %659 = vmatprep.mubr.f32.mxu0 0.0
    %660 = vmatmul.mubr.f32.gmra.mrb[0].mxu0 %v404
    %v661 = vpop.f32.mrb[0].mxu0
    %v662 = vadd.f32 %v593, %v661
    %v663 = vpop.f32.mrb[0].mxu0
    %664 = vdwg.mxu0
    %666 = vrot.lane.b32.xlu0 %v662, 96
    %v667 = vpop.permute.xlu0 %666
    %v669 = vmul.f32 %v572, %v667
    %671 = vrot.lane.b32.xlu0 %v669, 64
    %v672 = vpop.permute.xlu0 %671
    %v674 = vadd.f32 %v397, %v672
    %v675 = vtanh.pop %v674
    %v676 = vsub.f32 1.0, %v579
    %678 = vrot.lane.b32.xlu0 %v675, 96
    %v679 = vpop.permute.xlu0 %678
    %v681 = vmul.f32 %v676, %v679
    %v682 = vmul.f32 %v579, 0.0
    %v683 = vadd.f32 %v681, %v682
    %v685 = vsel %vm250, %v683, 0
    %687 = vmatprep.subr.mxu0 0.0
    %688 = vmatpush1.msra.mxu0 %v378
    %689 = vmatprep.subr.mxu0 0.0
    %690 = vmatpush1.msra.mxu0 %v379
    %691 = vmatprep.subr.mxu0 0.0
    %692 = vmatpush1.msra.mxu0 %v380
    %693 = vmatprep.subr.mxu0 0.0
    %694 = vmatpush1.msra.mxu0 %v381
    %695 = vmatprep.subr.mxu0 0.0
    %696 = vmatpush1.msra.mxu0 0.0
    %697 = vmatprep.subr.mxu0 0.0
    %698 = vmatpush1.msra.mxu0 0.0
    %699 = vmatprep.subr.mxu0 0.0
    %700 = vmatpush1.msra.mxu0 0.0
    %701 = vmatprep.subr.mxu0 0.0
    %702 = vmatpush1.msra.mxu0 0.0
    %703 = vmatprep.subr.mxu0 0.0
    %704 = vmatpush1.msra.mxu0 0.0
    %705 = vmatprep.subr.mxu0 0.0
    %706 = vmatpush1.msra.mxu0 0.0
    %707 = vmatprep.subr.mxu0 0.0
    %708 = vmatpush1.msra.mxu0 0.0
    %709 = vmatprep.subr.mxu0 0.0
    %710 = vmatpush1.msra.mxu0 0.0
    %711 = vmatprep.subr.mxu0 0.0
    %712 = vmatpush1.msra.mxu0 0.0
    %713 = vmatprep.subr.mxu0 0.0
    %714 = vmatpush1.msra.mxu0 0.0
    %715 = vmatprep.subr.mxu0 0.0
    %716 = vmatpush1.msra.mxu0 0.0
    %717 = vmatprep.subr.mxu0 0.0
    %718 = vmatpush1.msra.mxu0 0.0
    %719 = vmatprep.subr.mxu0 0.0
    %720 = vmatpush1.msra.mxu0 0.0
    %721 = vmatprep.subr.mxu0 0.0
    %722 = vmatpush1.msra.mxu0 0.0
    %723 = vmatprep.subr.mxu0 0.0
    %724 = vmatpush1.msra.mxu0 0.0
    %725 = vmatprep.subr.mxu0 0.0
    %726 = vmatpush1.msra.mxu0 0.0
    %727 = vmatprep.subr.mxu0 0.0
    %728 = vmatpush1.msra.mxu0 0.0
    %729 = vmatprep.subr.mxu0 0.0
    %730 = vmatpush1.msra.mxu0 0.0
    %731 = vmatprep.subr.mxu0 0.0
    %732 = vmatpush1.msra.mxu0 0.0
    %733 = vmatprep.subr.mxu0 0.0
    %734 = vmatpush1.msra.mxu0 0.0
    %735 = vmatprep.subr.mxu0 0.0
    %736 = vmatpush1.msra.mxu0 0.0
    %737 = vmatprep.subr.mxu0 0.0
    %738 = vmatpush1.msra.mxu0 0.0
    %739 = vmatprep.subr.mxu0 0.0
    %740 = vmatpush1.msra.mxu0 0.0
    %741 = vmatprep.subr.mxu0 0.0
    %742 = vmatpush1.msra.mxu0 0.0
    %743 = vmatprep.subr.mxu0 0.0
    %744 = vmatpush1.msra.mxu0 0.0
    %745 = vmatprep.subr.mxu0 0.0
    %746 = vmatpush1.msra.mxu0 0.0
    %747 = vmatprep.subr.mxu0 0.0
    %748 = vmatpush1.msra.mxu0 0.0
    %749 = vmatprep.subr.mxu0 0.0
    %750 = vmatpush1.msra.mxu0 0.0
    %751 = vmatprep.mubr.f32.mxu0 0.0
    %752 = vmatmul.mubr.f32.gmra.mrb[0].mxu0 %v685
    %v753 = vpop.f32.mrb[0].mxu0
    %v754 = vadd.f32 0.0, %v753
    %v755 = vpop.f32.mrb[0].mxu0
    %756 = vdwg.mxu0
    %757 = vmatprep.subr.mxu0 0.0
    %758 = vmatpush1.msra.mxu0 %v481
    %759 = vmatprep.subr.mxu0 0.0
    %760 = vmatpush1.msra.mxu0 %v483
    %761 = vmatprep.subr.mxu0 0.0
    %762 = vmatpush1.msra.mxu0 %v485
    %763 = vmatprep.subr.mxu0 0.0
    %764 = vmatpush1.msra.mxu0 %v487
    %765 = vmatprep.subr.mxu0 0.0
    %766 = vmatpush1.msra.mxu0 0.0
    %767 = vmatprep.subr.mxu0 0.0
    %768 = vmatpush1.msra.mxu0 0.0
    %769 = vmatprep.subr.mxu0 0.0
    %770 = vmatpush1.msra.mxu0 0.0
    %771 = vmatprep.subr.mxu0 0.0
    %772 = vmatpush1.msra.mxu0 0.0
    %773 = vmatprep.subr.mxu0 0.0
    %774 = vmatpush1.msra.mxu0 0.0
    %775 = vmatprep.subr.mxu0 0.0
    %776 = vmatpush1.msra.mxu0 0.0
    %777 = vmatprep.subr.mxu0 0.0
    %778 = vmatpush1.msra.mxu0 0.0
    %779 = vmatprep.subr.mxu0 0.0
    %780 = vmatpush1.msra.mxu0 0.0
    %781 = vmatprep.subr.mxu0 0.0
    %782 = vmatpush1.msra.mxu0 0.0
    %783 = vmatprep.subr.mxu0 0.0
    %784 = vmatpush1.msra.mxu0 0.0
    %785 = vmatprep.subr.mxu0 0.0
    %786 = vmatpush1.msra.mxu0 0.0
    %787 = vmatprep.subr.mxu0 0.0
    %788 = vmatpush1.msra.mxu0 0.0
    %789 = vmatprep.subr.mxu0 0.0
    %790 = vmatpush1.msra.mxu0 0.0
    %791 = vmatprep.subr.mxu0 0.0
    %792 = vmatpush1.msra.mxu0 0.0
    %793 = vmatprep.subr.mxu0 0.0
    %794 = vmatpush1.msra.mxu0 0.0
    %795 = vmatprep.subr.mxu0 0.0
    %796 = vmatpush1.msra.mxu0 0.0
    %797 = vmatprep.subr.mxu0 0.0
    %798 = vmatpush1.msra.mxu0 0.0
    %799 = vmatprep.subr.mxu0 0.0
    %800 = vmatpush1.msra.mxu0 0.0
    %801 = vmatprep.subr.mxu0 0.0
    %802 = vmatpush1.msra.mxu0 0.0
    %803 = vmatprep.subr.mxu0 0.0
    %804 = vmatpush1.msra.mxu0 0.0
    %805 = vmatprep.subr.mxu0 0.0
    %806 = vmatpush1.msra.mxu0 0.0
    %807 = vmatprep.subr.mxu0 0.0
    %808 = vmatpush1.msra.mxu0 0.0
    %809 = vmatprep.subr.mxu0 0.0
    %810 = vmatpush1.msra.mxu0 0.0
    %811 = vmatprep.subr.mxu0 0.0
    %812 = vmatpush1.msra.mxu0 0.0
    %813 = vmatprep.subr.mxu0 0.0
    %814 = vmatpush1.msra.mxu0 0.0
    %815 = vmatprep.subr.mxu0 0.0
    %816 = vmatpush1.msra.mxu0 0.0
    %817 = vmatprep.subr.mxu0 0.0
    %818 = vmatpush1.msra.mxu0 0.0
    %819 = vmatprep.subr.mxu0 0.0
    %820 = vmatpush1.msra.mxu0 0.0
    %821 = vmatprep.mubr.f32.mxu0 0.0
    %822 = vmatmul.mubr.f32.gmra.mrb[0].mxu0 %v685
    %v823 = vpop.f32.mrb[0].mxu0
    %v824 = vadd.f32 0.0, %v823
    %v825 = vpop.f32.mrb[0].mxu0
    %826 = vdwg.mxu0
    %828 = vrot.lane.b32.xlu0 %v754, 96
    %v829 = vpop.permute.xlu0 %828
    %v831 = vadd.f32 %v392, %v829
    %v832 = vxor.u32 %v831, 2147483648
    %v833 = vmul.f32 %v832, 1.442695
    %v834 = vpow.pop %v833
    %v835 = vadd.f32 %v834, 1.0
    %v836 = vrcp.pop %v835
    %v837 = vmul.f32 1.0, %v836
    %v838 = vadd.f32 %v398, %v824
    %v839 = vxor.u32 %v838, 2147483648
    %v840 = vmul.f32 %v839, 1.442695
    %v841 = vpow.pop %v840
    %v842 = vadd.f32 %v841, 1.0
    %v843 = vrcp.pop %v842
    %v844 = vmul.f32 1.0, %v843
    %845 = vmatprep.subr.mxu0 0.0
    %846 = vmatpush1.msra.mxu0 %v581
    %847 = vmatprep.subr.mxu0 0.0
    %848 = vmatpush1.msra.mxu0 %v583
    %849 = vmatprep.subr.mxu0 0.0
    %850 = vmatpush1.msra.mxu0 %v585
    %851 = vmatprep.subr.mxu0 0.0
    %852 = vmatpush1.msra.mxu0 %v587
    %853 = vmatprep.subr.mxu0 0.0
    %854 = vmatpush1.msra.mxu0 0.0
    %855 = vmatprep.subr.mxu0 0.0
    %856 = vmatpush1.msra.mxu0 0.0
    %857 = vmatprep.subr.mxu0 0.0
    %858 = vmatpush1.msra.mxu0 0.0
    %859 = vmatprep.subr.mxu0 0.0
    %860 = vmatpush1.msra.mxu0 0.0
    %861 = vmatprep.subr.mxu0 0.0
    %862 = vmatpush1.msra.mxu0 0.0
    %863 = vmatprep.subr.mxu0 0.0
    %864 = vmatpush1.msra.mxu0 0.0
    %865 = vmatprep.subr.mxu0 0.0
    %866 = vmatpush1.msra.mxu0 0.0
    %867 = vmatprep.subr.mxu0 0.0
    %868 = vmatpush1.msra.mxu0 0.0
    %869 = vmatprep.subr.mxu0 0.0
    %870 = vmatpush1.msra.mxu0 0.0
    %871 = vmatprep.subr.mxu0 0.0
    %872 = vmatpush1.msra.mxu0 0.0
    %873 = vmatprep.subr.mxu0 0.0
    %874 = vmatpush1.msra.mxu0 0.0
    %875 = vmatprep.subr.mxu0 0.0
    %876 = vmatpush1.msra.mxu0 0.0
    %877 = vmatprep.subr.mxu0 0.0
    %878 = vmatpush1.msra.mxu0 0.0
    %879 = vmatprep.subr.mxu0 0.0
    %880 = vmatpush1.msra.mxu0 0.0
    %881 = vmatprep.subr.mxu0 0.0
    %882 = vmatpush1.msra.mxu0 0.0
    %883 = vmatprep.subr.mxu0 0.0
    %884 = vmatpush1.msra.mxu0 0.0
    %885 = vmatprep.subr.mxu0 0.0
    %886 = vmatpush1.msra.mxu0 0.0
    %887 = vmatprep.subr.mxu0 0.0
    %888 = vmatpush1.msra.mxu0 0.0
    %889 = vmatprep.subr.mxu0 0.0
    %890 = vmatpush1.msra.mxu0 0.0
    %891 = vmatprep.subr.mxu0 0.0
    %892 = vmatpush1.msra.mxu0 0.0
    %893 = vmatprep.subr.mxu0 0.0
    %894 = vmatpush1.msra.mxu0 0.0
    %895 = vmatprep.subr.mxu0 0.0
    %896 = vmatpush1.msra.mxu0 0.0
    %897 = vmatprep.subr.mxu0 0.0
    %898 = vmatpush1.msra.mxu0 0.0
    %899 = vmatprep.subr.mxu0 0.0
    %900 = vmatpush1.msra.mxu0 0.0
    %901 = vmatprep.subr.mxu0 0.0
    %902 = vmatpush1.msra.mxu0 0.0
    %903 = vmatprep.subr.mxu0 0.0
    %904 = vmatpush1.msra.mxu0 0.0
    %905 = vmatprep.subr.mxu0 0.0
    %906 = vmatpush1.msra.mxu0 0.0
    %907 = vmatprep.subr.mxu0 0.0
    %908 = vmatpush1.msra.mxu0 0.0
    %909 = vmatprep.mubr.f32.mxu0 0.0
    %910 = vmatmul.mubr.f32.gmra.mrb[0].mxu0 %v685
    %v911 = vpop.f32.mrb[0].mxu0
    %v912 = vadd.f32 %v593, %v911
    %v913 = vpop.f32.mrb[0].mxu0
    %914 = vdwg.mxu0
    %916 = vrot.lane.b32.xlu0 %v912, 96
    %v917 = vpop.permute.xlu0 %916
    %v919 = vmul.f32 %v837, %v917
    %921 = vrot.lane.b32.xlu0 %v919, 64
    %v922 = vpop.permute.xlu0 %921
    %v924 = vadd.f32 %v398, %v922
    %v925 = vtanh.pop %v924
    %v926 = vsub.f32 1.0, %v844
    %928 = vrot.lane.b32.xlu0 %v925, 96
    %v929 = vpop.permute.xlu0 %928
    %v931 = vmul.f32 %v926, %v929
    %v932 = vmul.f32 %v844, %v683
    %v933 = vadd.f32 %v931, %v932
    %v935 = vsel %vm250, %v933, 0
    %937 = vmatprep.subr.mxu0 0.0
    %938 = vmatpush1.msra.mxu0 %v378
    %939 = vmatprep.subr.mxu0 0.0
    %940 = vmatpush1.msra.mxu0 %v379
    %941 = vmatprep.subr.mxu0 0.0
    %942 = vmatpush1.msra.mxu0 %v380
    %943 = vmatprep.subr.mxu0 0.0
    %944 = vmatpush1.msra.mxu0 %v381
    %945 = vmatprep.subr.mxu0 0.0
    %946 = vmatpush1.msra.mxu0 0.0
    %947 = vmatprep.subr.mxu0 0.0
    %948 = vmatpush1.msra.mxu0 0.0
    %949 = vmatprep.subr.mxu0 0.0
    %950 = vmatpush1.msra.mxu0 0.0
    %951 = vmatprep.subr.mxu0 0.0
    %952 = vmatpush1.msra.mxu0 0.0
    %953 = vmatprep.subr.mxu0 0.0
    %954 = vmatpush1.msra.mxu0 0.0
    %955 = vmatprep.subr.mxu0 0.0
    %956 = vmatpush1.msra.mxu0 0.0
    %957 = vmatprep.subr.mxu0 0.0
    %958 = vmatpush1.msra.mxu0 0.0
    %959 = vmatprep.subr.mxu0 0.0
    %960 = vmatpush1.msra.mxu0 0.0
    %961 = vmatprep.subr.mxu0 0.0
    %962 = vmatpush1.msra.mxu0 0.0
    %963 = vmatprep.subr.mxu0 0.0
    %964 = vmatpush1.msra.mxu0 0.0
    %965 = vmatprep.subr.mxu0 0.0
    %966 = vmatpush1.msra.mxu0 0.0
    %967 = vmatprep.subr.mxu0 0.0
    %968 = vmatpush1.msra.mxu0 0.0
    %969 = vmatprep.subr.mxu0 0.0
    %970 = vmatpush1.msra.mxu0 0.0
    %971 = vmatprep.subr.mxu0 0.0
    %972 = vmatpush1.msra.mxu0 0.0
    %973 = vmatprep.subr.mxu0 0.0
    %974 = vmatpush1.msra.mxu0 0.0
    %975 = vmatprep.subr.mxu0 0.0
    %976 = vmatpush1.msra.mxu0 0.0
    %977 = vmatprep.subr.mxu0 0.0
    %978 = vmatpush1.msra.mxu0 0.0
    %979 = vmatprep.subr.mxu0 0.0
    %980 = vmatpush1.msra.mxu0 0.0
    %981 = vmatprep.subr.mxu0 0.0
    %982 = vmatpush1.msra.mxu0 0.0
    %983 = vmatprep.subr.mxu0 0.0
    %984 = vmatpush1.msra.mxu0 0.0
    %985 = vmatprep.subr.mxu0 0.0
    %986 = vmatpush1.msra.mxu0 0.0
    %987 = vmatprep.subr.mxu0 0.0
    %988 = vmatpush1.msra.mxu0 0.0
    %989 = vmatprep.subr.mxu0 0.0
    %990 = vmatpush1.msra.mxu0 0.0
    %991 = vmatprep.subr.mxu0 0.0
    %992 = vmatpush1.msra.mxu0 0.0
    %993 = vmatprep.subr.mxu0 0.0
    %994 = vmatpush1.msra.mxu0 0.0
    %995 = vmatprep.subr.mxu0 0.0
    %996 = vmatpush1.msra.mxu0 0.0
    %997 = vmatprep.subr.mxu0 0.0
    %998 = vmatpush1.msra.mxu0 0.0
    %999 = vmatprep.subr.mxu0 0.0
    %1000 = vmatpush1.msra.mxu0 0.0
    %1001 = vmatprep.mubr.f32.mxu0 0.0
    %1002 = vmatmul.mubr.f32.gmra.mrb[0].mxu0 %v935
    %v1003 = vpop.f32.mrb[0].mxu0
    %v1004 = vadd.f32 0.0, %v1003
    %v1005 = vpop.f32.mrb[0].mxu0
    %1006 = vdwg.mxu0
    %1007 = vmatprep.subr.mxu0 0.0
    %1008 = vmatpush1.msra.mxu0 %v481
    %1009 = vmatprep.subr.mxu0 0.0
    %1010 = vmatpush1.msra.mxu0 %v483
    %1011 = vmatprep.subr.mxu0 0.0
    %1012 = vmatpush1.msra.mxu0 %v485
    %1013 = vmatprep.subr.mxu0 0.0
    %1014 = vmatpush1.msra.mxu0 %v487
    %1015 = vmatprep.subr.mxu0 0.0
    %1016 = vmatpush1.msra.mxu0 0.0
    %1017 = vmatprep.subr.mxu0 0.0
    %1018 = vmatpush1.msra.mxu0 0.0
    %1019 = vmatprep.subr.mxu0 0.0
    %1020 = vmatpush1.msra.mxu0 0.0
    %1021 = vmatprep.subr.mxu0 0.0
    %1022 = vmatpush1.msra.mxu0 0.0
    %1023 = vmatprep.subr.mxu0 0.0
    %1024 = vmatpush1.msra.mxu0 0.0
    %1025 = vmatprep.subr.mxu0 0.0
    %1026 = vmatpush1.msra.mxu0 0.0
    %1027 = vmatprep.subr.mxu0 0.0
    %1028 = vmatpush1.msra.mxu0 0.0
    %1029 = vmatprep.subr.mxu0 0.0
    %1030 = vmatpush1.msra.mxu0 0.0
    %1031 = vmatprep.subr.mxu0 0.0
    %1032 = vmatpush1.msra.mxu0 0.0
    %1033 = vmatprep.subr.mxu0 0.0
    %1034 = vmatpush1.msra.mxu0 0.0
    %1035 = vmatprep.subr.mxu0 0.0
    %1036 = vmatpush1.msra.mxu0 0.0
    %1037 = vmatprep.subr.mxu0 0.0
    %1038 = vmatpush1.msra.mxu0 0.0
    %1039 = vmatprep.subr.mxu0 0.0
    %1040 = vmatpush1.msra.mxu0 0.0
    %1041 = vmatprep.subr.mxu0 0.0
    %1042 = vmatpush1.msra.mxu0 0.0
    %1043 = vmatprep.subr.mxu0 0.0
    %1044 = vmatpush1.msra.mxu0 0.0
    %1045 = vmatprep.subr.mxu0 0.0
    %1046 = vmatpush1.msra.mxu0 0.0
    %1047 = vmatprep.subr.mxu0 0.0
    %1048 = vmatpush1.msra.mxu0 0.0
    %1049 = vmatprep.subr.mxu0 0.0
    %1050 = vmatpush1.msra.mxu0 0.0
    %1051 = vmatprep.subr.mxu0 0.0
    %1052 = vmatpush1.msra.mxu0 0.0
    %1053 = vmatprep.subr.mxu0 0.0
    %1054 = vmatpush1.msra.mxu0 0.0
    %1055 = vmatprep.subr.mxu0 0.0
    %1056 = vmatpush1.msra.mxu0 0.0
    %1057 = vmatprep.subr.mxu0 0.0
    %1058 = vmatpush1.msra.mxu0 0.0
    %1059 = vmatprep.subr.mxu0 0.0
    %1060 = vmatpush1.msra.mxu0 0.0
    %1061 = vmatprep.subr.mxu0 0.0
    %1062 = vmatpush1.msra.mxu0 0.0
    %1063 = vmatprep.subr.mxu0 0.0
    %1064 = vmatpush1.msra.mxu0 0.0
    %1065 = vmatprep.subr.mxu0 0.0
    %1066 = vmatpush1.msra.mxu0 0.0
    %1067 = vmatprep.subr.mxu0 0.0
    %1068 = vmatpush1.msra.mxu0 0.0
    %1069 = vmatprep.subr.mxu0 0.0
    %1070 = vmatpush1.msra.mxu0 0.0
    %1071 = vmatprep.mubr.f32.mxu0 0.0
    %1072 = vmatmul.mubr.f32.gmra.mrb[0].mxu0 %v935
    %v1073 = vpop.f32.mrb[0].mxu0
    %v1074 = vadd.f32 0.0, %v1073
    %v1075 = vpop.f32.mrb[0].mxu0
    %1076 = vdwg.mxu0
    %1078 = vrot.lane.b32.xlu0 %v1004, 96
    %v1079 = vpop.permute.xlu0 %1078
    %v1081 = vadd.f32 %v393, %v1079
    %v1082 = vxor.u32 %v1081, 2147483648
    %v1083 = vmul.f32 %v1082, 1.442695
    %v1084 = vpow.pop %v1083
    %v1085 = vadd.f32 %v1084, 1.0
    %v1086 = vrcp.pop %v1085
    %v1087 = vmul.f32 1.0, %v1086
    %v1088 = vadd.f32 %v399, %v1074
    %v1089 = vxor.u32 %v1088, 2147483648
    %v1090 = vmul.f32 %v1089, 1.442695
    %v1091 = vpow.pop %v1090
    %v1092 = vadd.f32 %v1091, 1.0
    %v1093 = vrcp.pop %v1092
    %v1094 = vmul.f32 1.0, %v1093
    %1095 = vmatprep.subr.mxu0 0.0
    %1096 = vmatpush1.msra.mxu0 %v581
    %1097 = vmatprep.subr.mxu0 0.0
    %1098 = vmatpush1.msra.mxu0 %v583
    %1099 = vmatprep.subr.mxu0 0.0
    %1100 = vmatpush1.msra.mxu0 %v585
    %1101 = vmatprep.subr.mxu0 0.0
    %1102 = vmatpush1.msra.mxu0 %v587
    %1103 = vmatprep.subr.mxu0 0.0
    %1104 = vmatpush1.msra.mxu0 0.0
    %1105 = vmatprep.subr.mxu0 0.0
    %1106 = vmatpush1.msra.mxu0 0.0
    %1107 = vmatprep.subr.mxu0 0.0
    %1108 = vmatpush1.msra.mxu0 0.0
    %1109 = vmatprep.subr.mxu0 0.0
    %1110 = vmatpush1.msra.mxu0 0.0
    %1111 = vmatprep.subr.mxu0 0.0
    %1112 = vmatpush1.msra.mxu0 0.0
    %1113 = vmatprep.subr.mxu0 0.0
    %1114 = vmatpush1.msra.mxu0 0.0
    %1115 = vmatprep.subr.mxu0 0.0
    %1116 = vmatpush1.msra.mxu0 0.0
    %1117 = vmatprep.subr.mxu0 0.0
    %1118 = vmatpush1.msra.mxu0 0.0
    %1119 = vmatprep.subr.mxu0 0.0
    %1120 = vmatpush1.msra.mxu0 0.0
    %1121 = vmatprep.subr.mxu0 0.0
    %1122 = vmatpush1.msra.mxu0 0.0
    %1123 = vmatprep.subr.mxu0 0.0
    %1124 = vmatpush1.msra.mxu0 0.0
    %1125 = vmatprep.subr.mxu0 0.0
    %1126 = vmatpush1.msra.mxu0 0.0
    %1127 = vmatprep.subr.mxu0 0.0
    %1128 = vmatpush1.msra.mxu0 0.0
    %1129 = vmatprep.subr.mxu0 0.0
    %1130 = vmatpush1.msra.mxu0 0.0
    %1131 = vmatprep.subr.mxu0 0.0
    %1132 = vmatpush1.msra.mxu0 0.0
    %1133 = vmatprep.subr.mxu0 0.0
    %1134 = vmatpush1.msra.mxu0 0.0
    %1135 = vmatprep.subr.mxu0 0.0
    %1136 = vmatpush1.msra.mxu0 0.0
    %1137 = vmatprep.subr.mxu0 0.0
    %1138 = vmatpush1.msra.mxu0 0.0
    %1139 = vmatprep.subr.mxu0 0.0
    %1140 = vmatpush1.msra.mxu0 0.0
    %1141 = vmatprep.subr.mxu0 0.0
    %1142 = vmatpush1.msra.mxu0 0.0
    %1143 = vmatprep.subr.mxu0 0.0
    %1144 = vmatpush1.msra.mxu0 0.0
    %1145 = vmatprep.subr.mxu0 0.0
    %1146 = vmatpush1.msra.mxu0 0.0
    %1147 = vmatprep.subr.mxu0 0.0
    %1148 = vmatpush1.msra.mxu0 0.0
    %1149 = vmatprep.subr.mxu0 0.0
    %1150 = vmatpush1.msra.mxu0 0.0
    %1151 = vmatprep.subr.mxu0 0.0
    %1152 = vmatpush1.msra.mxu0 0.0
    %1153 = vmatprep.subr.mxu0 0.0
    %1154 = vmatpush1.msra.mxu0 0.0
    %1155 = vmatprep.subr.mxu0 0.0
    %1156 = vmatpush1.msra.mxu0 0.0
    %1157 = vmatprep.subr.mxu0 0.0
    %1158 = vmatpush1.msra.mxu0 0.0
    %1159 = vmatprep.mubr.f32.mxu0 0.0
    %1160 = vmatmul.mubr.f32.gmra.mrb[0].mxu0 %v935
    %v1161 = vpop.f32.mrb[0].mxu0
    %v1162 = vadd.f32 %v593, %v1161
    %v1163 = vpop.f32.mrb[0].mxu0
    %1164 = vdwg.mxu0
    %1166 = vrot.lane.b32.xlu0 %v1162, 96
    %v1167 = vpop.permute.xlu0 %1166
    %v1169 = vmul.f32 %v1087, %v1167
    %1171 = vrot.lane.b32.xlu0 %v1169, 64
    %v1172 = vpop.permute.xlu0 %1171
    %v1174 = vadd.f32 %v399, %v1172
    %v1175 = vtanh.pop %v1174
    %v1176 = vsub.f32 1.0, %v1094
    %1178 = vrot.lane.b32.xlu0 %v1175, 96
    %v1179 = vpop.permute.xlu0 %1178
    %v1181 = vmul.f32 %v1176, %v1179
    %v1182 = vmul.f32 %v1094, %v933
    %v1183 = vadd.f32 %v1181, %v1182
    %v1185 = vsel %vm250, %v1183, 0
    %1187 = vmatprep.subr.mxu0 0.0
    %1188 = vmatpush1.msra.mxu0 %v378
    %1189 = vmatprep.subr.mxu0 0.0
    %1190 = vmatpush1.msra.mxu0 %v379
    %1191 = vmatprep.subr.mxu0 0.0
    %1192 = vmatpush1.msra.mxu0 %v380
    %1193 = vmatprep.subr.mxu0 0.0
    %1194 = vmatpush1.msra.mxu0 %v381
    %1195 = vmatprep.subr.mxu0 0.0
    %1196 = vmatpush1.msra.mxu0 0.0
    %1197 = vmatprep.subr.mxu0 0.0
    %1198 = vmatpush1.msra.mxu0 0.0
    %1199 = vmatprep.subr.mxu0 0.0
    %1200 = vmatpush1.msra.mxu0 0.0
    %1201 = vmatprep.subr.mxu0 0.0
    %1202 = vmatpush1.msra.mxu0 0.0
    %1203 = vmatprep.subr.mxu0 0.0
    %1204 = vmatpush1.msra.mxu0 0.0
    %1205 = vmatprep.subr.mxu0 0.0
    %1206 = vmatpush1.msra.mxu0 0.0
    %1207 = vmatprep.subr.mxu0 0.0
    %1208 = vmatpush1.msra.mxu0 0.0
    %1209 = vmatprep.subr.mxu0 0.0
    %1210 = vmatpush1.msra.mxu0 0.0
    %1211 = vmatprep.subr.mxu0 0.0
    %1212 = vmatpush1.msra.mxu0 0.0
    %1213 = vmatprep.subr.mxu0 0.0
    %1214 = vmatpush1.msra.mxu0 0.0
    %1215 = vmatprep.subr.mxu0 0.0
    %1216 = vmatpush1.msra.mxu0 0.0
    %1217 = vmatprep.subr.mxu0 0.0
    %1218 = vmatpush1.msra.mxu0 0.0
    %1219 = vmatprep.subr.mxu0 0.0
    %1220 = vmatpush1.msra.mxu0 0.0
    %1221 = vmatprep.subr.mxu0 0.0
    %1222 = vmatpush1.msra.mxu0 0.0
    %1223 = vmatprep.subr.mxu0 0.0
    %1224 = vmatpush1.msra.mxu0 0.0
    %1225 = vmatprep.subr.mxu0 0.0
    %1226 = vmatpush1.msra.mxu0 0.0
    %1227 = vmatprep.subr.mxu0 0.0
    %1228 = vmatpush1.msra.mxu0 0.0
    %1229 = vmatprep.subr.mxu0 0.0
    %1230 = vmatpush1.msra.mxu0 0.0
    %1231 = vmatprep.subr.mxu0 0.0
    %1232 = vmatpush1.msra.mxu0 0.0
    %1233 = vmatprep.subr.mxu0 0.0
    %1234 = vmatpush1.msra.mxu0 0.0
    %1235 = vmatprep.subr.mxu0 0.0
    %1236 = vmatpush1.msra.mxu0 0.0
    %1237 = vmatprep.subr.mxu0 0.0
    %1238 = vmatpush1.msra.mxu0 0.0
    %1239 = vmatprep.subr.mxu0 0.0
    %1240 = vmatpush1.msra.mxu0 0.0
    %1241 = vmatprep.subr.mxu0 0.0
    %1242 = vmatpush1.msra.mxu0 0.0
    %1243 = vmatprep.subr.mxu0 0.0
    %1244 = vmatpush1.msra.mxu0 0.0
    %1245 = vmatprep.subr.mxu0 0.0
    %1246 = vmatpush1.msra.mxu0 0.0
    %1247 = vmatprep.subr.mxu0 0.0
    %1248 = vmatpush1.msra.mxu0 0.0
    %1249 = vmatprep.subr.mxu0 0.0
    %1250 = vmatpush1.msra.mxu0 0.0
    %1251 = vmatprep.mubr.f32.mxu0 0.0
    %1252 = vmatmul.mubr.f32.gmra.mrb[0].mxu0 %v1185
    %v1253 = vpop.f32.mrb[0].mxu0
    %v1254 = vadd.f32 0.0, %v1253
    %v1255 = vpop.f32.mrb[0].mxu0
    %1256 = vdwg.mxu0
    %1257 = vmatprep.subr.mxu0 0.0
    %1258 = vmatpush1.msra.mxu0 %v481
    %1259 = vmatprep.subr.mxu0 0.0
    %1260 = vmatpush1.msra.mxu0 %v483
    %1261 = vmatprep.subr.mxu0 0.0
    %1262 = vmatpush1.msra.mxu0 %v485
    %1263 = vmatprep.subr.mxu0 0.0
    %1264 = vmatpush1.msra.mxu0 %v487
    %1265 = vmatprep.subr.mxu0 0.0
    %1266 = vmatpush1.msra.mxu0 0.0
    %1267 = vmatprep.subr.mxu0 0.0
    %1268 = vmatpush1.msra.mxu0 0.0
    %1269 = vmatprep.subr.mxu0 0.0
    %1270 = vmatpush1.msra.mxu0 0.0
    %1271 = vmatprep.subr.mxu0 0.0
    %1272 = vmatpush1.msra.mxu0 0.0
    %1273 = vmatprep.subr.mxu0 0.0
    %1274 = vmatpush1.msra.mxu0 0.0
    %1275 = vmatprep.subr.mxu0 0.0
    %1276 = vmatpush1.msra.mxu0 0.0
    %1277 = vmatprep.subr.mxu0 0.0
    %1278 = vmatpush1.msra.mxu0 0.0
    %1279 = vmatprep.subr.mxu0 0.0
    %1280 = vmatpush1.msra.mxu0 0.0
    %1281 = vmatprep.subr.mxu0 0.0
    %1282 = vmatpush1.msra.mxu0 0.0
    %1283 = vmatprep.subr.mxu0 0.0
    %1284 = vmatpush1.msra.mxu0 0.0
    %1285 = vmatprep.subr.mxu0 0.0
    %1286 = vmatpush1.msra.mxu0 0.0
    %1287 = vmatprep.subr.mxu0 0.0
    %1288 = vmatpush1.msra.mxu0 0.0
    %1289 = vmatprep.subr.mxu0 0.0
    %1290 = vmatpush1.msra.mxu0 0.0
    %1291 = vmatprep.subr.mxu0 0.0
    %1292 = vmatpush1.msra.mxu0 0.0
    %1293 = vmatprep.subr.mxu0 0.0
    %1294 = vmatpush1.msra.mxu0 0.0
    %1295 = vmatprep.subr.mxu0 0.0
    %1296 = vmatpush1.msra.mxu0 0.0
    %1297 = vmatprep.subr.mxu0 0.0
    %1298 = vmatpush1.msra.mxu0 0.0
    %1299 = vmatprep.subr.mxu0 0.0
    %1300 = vmatpush1.msra.mxu0 0.0
    %1301 = vmatprep.subr.mxu0 0.0
    %1302 = vmatpush1.msra.mxu0 0.0
    %1303 = vmatprep.subr.mxu0 0.0
    %1304 = vmatpush1.msra.mxu0 0.0
    %1305 = vmatprep.subr.mxu0 0.0
    %1306 = vmatpush1.msra.mxu0 0.0
    %1307 = vmatprep.subr.mxu0 0.0
    %1308 = vmatpush1.msra.mxu0 0.0
    %1309 = vmatprep.subr.mxu0 0.0
    %1310 = vmatpush1.msra.mxu0 0.0
    %1311 = vmatprep.subr.mxu0 0.0
    %1312 = vmatpush1.msra.mxu0 0.0
    %1313 = vmatprep.subr.mxu0 0.0
    %1314 = vmatpush1.msra.mxu0 0.0
    %1315 = vmatprep.subr.mxu0 0.0
    %1316 = vmatpush1.msra.mxu0 0.0
    %1317 = vmatprep.subr.mxu0 0.0
    %1318 = vmatpush1.msra.mxu0 0.0
    %1319 = vmatprep.subr.mxu0 0.0
    %1320 = vmatpush1.msra.mxu0 0.0
    %1321 = vmatprep.mubr.f32.mxu0 0.0
    %1322 = vmatmul.mubr.f32.gmra.mrb[0].mxu0 %v1185
    %v1323 = vpop.f32.mrb[0].mxu0
    %v1324 = vadd.f32 0.0, %v1323
    %v1325 = vpop.f32.mrb[0].mxu0
    %1326 = vdwg.mxu0
    %1328 = vrot.lane.b32.xlu0 %v1254, 96
    %v1329 = vpop.permute.xlu0 %1328
    %v1331 = vadd.f32 %v394, %v1329
    %v1332 = vxor.u32 %v1331, 2147483648
    %v1333 = vmul.f32 %v1332, 1.442695
    %v1334 = vpow.pop %v1333
    %v1335 = vadd.f32 %v1334, 1.0
    %v1336 = vrcp.pop %v1335
    %v1337 = vmul.f32 1.0, %v1336
    %v1338 = vadd.f32 %v400, %v1324
    %v1339 = vxor.u32 %v1338, 2147483648
    %v1340 = vmul.f32 %v1339, 1.442695
    %v1341 = vpow.pop %v1340
    %v1342 = vadd.f32 %v1341, 1.0
    %v1343 = vrcp.pop %v1342
    %v1344 = vmul.f32 1.0, %v1343
    %1345 = vmatprep.subr.mxu0 0.0
    %1346 = vmatpush1.msra.mxu0 %v581
    %1347 = vmatprep.subr.mxu0 0.0
    %1348 = vmatpush1.msra.mxu0 %v583
    %1349 = vmatprep.subr.mxu0 0.0
    %1350 = vmatpush1.msra.mxu0 %v585
    %1351 = vmatprep.subr.mxu0 0.0
    %1352 = vmatpush1.msra.mxu0 %v587
    %1353 = vmatprep.subr.mxu0 0.0
    %1354 = vmatpush1.msra.mxu0 0.0
    %1355 = vmatprep.subr.mxu0 0.0
    %1356 = vmatpush1.msra.mxu0 0.0
    %1357 = vmatprep.subr.mxu0 0.0
    %1358 = vmatpush1.msra.mxu0 0.0
    %1359 = vmatprep.subr.mxu0 0.0
    %1360 = vmatpush1.msra.mxu0 0.0
    %1361 = vmatprep.subr.mxu0 0.0
    %1362 = vmatpush1.msra.mxu0 0.0
    %1363 = vmatprep.subr.mxu0 0.0
    %1364 = vmatpush1.msra.mxu0 0.0
    %1365 = vmatprep.subr.mxu0 0.0
    %1366 = vmatpush1.msra.mxu0 0.0
    %1367 = vmatprep.subr.mxu0 0.0
    %1368 = vmatpush1.msra.mxu0 0.0
    %1369 = vmatprep.subr.mxu0 0.0
    %1370 = vmatpush1.msra.mxu0 0.0
    %1371 = vmatprep.subr.mxu0 0.0
    %1372 = vmatpush1.msra.mxu0 0.0
    %1373 = vmatprep.subr.mxu0 0.0
    %1374 = vmatpush1.msra.mxu0 0.0
    %1375 = vmatprep.subr.mxu0 0.0
    %1376 = vmatpush1.msra.mxu0 0.0
    %1377 = vmatprep.subr.mxu0 0.0
    %1378 = vmatpush1.msra.mxu0 0.0
    %1379 = vmatprep.subr.mxu0 0.0
    %1380 = vmatpush1.msra.mxu0 0.0
    %1381 = vmatprep.subr.mxu0 0.0
    %1382 = vmatpush1.msra.mxu0 0.0
    %1383 = vmatprep.subr.mxu0 0.0
    %1384 = vmatpush1.msra.mxu0 0.0
    %1385 = vmatprep.subr.mxu0 0.0
    %1386 = vmatpush1.msra.mxu0 0.0
    %1387 = vmatprep.subr.mxu0 0.0
    %1388 = vmatpush1.msra.mxu0 0.0
    %1389 = vmatprep.subr.mxu0 0.0
    %1390 = vmatpush1.msra.mxu0 0.0
    %1391 = vmatprep.subr.mxu0 0.0
    %1392 = vmatpush1.msra.mxu0 0.0
    %1393 = vmatprep.subr.mxu0 0.0
    %1394 = vmatpush1.msra.mxu0 0.0
    %1395 = vmatprep.subr.mxu0 0.0
    %1396 = vmatpush1.msra.mxu0 0.0
    %1397 = vmatprep.subr.mxu0 0.0
    %1398 = vmatpush1.msra.mxu0 0.0
    %1399 = vmatprep.subr.mxu0 0.0
    %1400 = vmatpush1.msra.mxu0 0.0
    %1401 = vmatprep.subr.mxu0 0.0
    %1402 = vmatpush1.msra.mxu0 0.0
    %1403 = vmatprep.subr.mxu0 0.0
    %1404 = vmatpush1.msra.mxu0 0.0
    %1405 = vmatprep.subr.mxu0 0.0
    %1406 = vmatpush1.msra.mxu0 0.0
    %1407 = vmatprep.subr.mxu0 0.0
    %1408 = vmatpush1.msra.mxu0 0.0
    %1409 = vmatprep.mubr.f32.mxu0 0.0
    %1410 = vmatmul.mubr.f32.gmra.mrb[0].mxu0 %v1185
    %v1411 = vpop.f32.mrb[0].mxu0
    %v1412 = vadd.f32 %v593, %v1411
    %v1413 = vpop.f32.mrb[0].mxu0
    %1414 = vdwg.mxu0
    %1416 = vrot.lane.b32.xlu0 %v1412, 96
    %v1417 = vpop.permute.xlu0 %1416
    %v1419 = vmul.f32 %v1337, %v1417
    %1421 = vrot.lane.b32.xlu0 %v1419, 64
    %v1422 = vpop.permute.xlu0 %1421
    %v1424 = vadd.f32 %v400, %v1422
    %v1425 = vtanh.pop %v1424
    %v1426 = vsub.f32 1.0, %v1344
    %1428 = vrot.lane.b32.xlu0 %v1425, 96
    %v1429 = vpop.permute.xlu0 %1428
    %v1431 = vmul.f32 %v1426, %v1429
    %v1432 = vmul.f32 %v1344, %v1183
    %v1433 = vadd.f32 %v1431, %v1432
    %v1435 = vsel %vm250, %v1433, 0
    %1437 = vmatprep.subr.mxu0 0.0
    %1438 = vmatpush1.msra.mxu0 %v378
    %1439 = vmatprep.subr.mxu0 0.0
    %1440 = vmatpush1.msra.mxu0 %v379
    %1441 = vmatprep.subr.mxu0 0.0
    %1442 = vmatpush1.msra.mxu0 %v380
    %1443 = vmatprep.subr.mxu0 0.0
    %1444 = vmatpush1.msra.mxu0 %v381
    %1445 = vmatprep.subr.mxu0 0.0
    %1446 = vmatpush1.msra.mxu0 0.0
    %1447 = vmatprep.subr.mxu0 0.0
    %1448 = vmatpush1.msra.mxu0 0.0
    %1449 = vmatprep.subr.mxu0 0.0
    %1450 = vmatpush1.msra.mxu0 0.0
    %1451 = vmatprep.subr.mxu0 0.0
    %1452 = vmatpush1.msra.mxu0 0.0
    %1453 = vmatprep.subr.mxu0 0.0
    %1454 = vmatpush1.msra.mxu0 0.0
    %1455 = vmatprep.subr.mxu0 0.0
    %1456 = vmatpush1.msra.mxu0 0.0
    %1457 = vmatprep.subr.mxu0 0.0
    %1458 = vmatpush1.msra.mxu0 0.0
    %1459 = vmatprep.subr.mxu0 0.0
    %1460 = vmatpush1.msra.mxu0 0.0
    %1461 = vmatprep.subr.mxu0 0.0
    %1462 = vmatpush1.msra.mxu0 0.0
    %1463 = vmatprep.subr.mxu0 0.0
    %1464 = vmatpush1.msra.mxu0 0.0
    %1465 = vmatprep.subr.mxu0 0.0
    %1466 = vmatpush1.msra.mxu0 0.0
    %1467 = vmatprep.subr.mxu0 0.0
    %1468 = vmatpush1.msra.mxu0 0.0
    %1469 = vmatprep.subr.mxu0 0.0
    %1470 = vmatpush1.msra.mxu0 0.0
    %1471 = vmatprep.subr.mxu0 0.0
    %1472 = vmatpush1.msra.mxu0 0.0
    %1473 = vmatprep.subr.mxu0 0.0
    %1474 = vmatpush1.msra.mxu0 0.0
    %1475 = vmatprep.subr.mxu0 0.0
    %1476 = vmatpush1.msra.mxu0 0.0
    %1477 = vmatprep.subr.mxu0 0.0
    %1478 = vmatpush1.msra.mxu0 0.0
    %1479 = vmatprep.subr.mxu0 0.0
    %1480 = vmatpush1.msra.mxu0 0.0
    %1481 = vmatprep.subr.mxu0 0.0
    %1482 = vmatpush1.msra.mxu0 0.0
    %1483 = vmatprep.subr.mxu0 0.0
    %1484 = vmatpush1.msra.mxu0 0.0
    %1485 = vmatprep.subr.mxu0 0.0
    %1486 = vmatpush1.msra.mxu0 0.0
    %1487 = vmatprep.subr.mxu0 0.0
    %1488 = vmatpush1.msra.mxu0 0.0
    %1489 = vmatprep.subr.mxu0 0.0
    %1490 = vmatpush1.msra.mxu0 0.0
    %1491 = vmatprep.subr.mxu0 0.0
    %1492 = vmatpush1.msra.mxu0 0.0
    %1493 = vmatprep.subr.mxu0 0.0
    %1494 = vmatpush1.msra.mxu0 0.0
    %1495 = vmatprep.subr.mxu0 0.0
    %1496 = vmatpush1.msra.mxu0 0.0
    %1497 = vmatprep.subr.mxu0 0.0
    %1498 = vmatpush1.msra.mxu0 0.0
    %1499 = vmatprep.subr.mxu0 0.0
    %1500 = vmatpush1.msra.mxu0 0.0
    %1501 = vmatprep.mubr.f32.mxu0 0.0
    %1502 = vmatmul.mubr.f32.gmra.mrb[0].mxu0 %v1435
    %v1503 = vpop.f32.mrb[0].mxu0
    %v1504 = vadd.f32 0.0, %v1503
    %v1505 = vpop.f32.mrb[0].mxu0
    %1506 = vdwg.mxu0
    %1507 = vmatprep.subr.mxu0 0.0
    %1508 = vmatpush1.msra.mxu0 %v481
    %1509 = vmatprep.subr.mxu0 0.0
    %1510 = vmatpush1.msra.mxu0 %v483
    %1511 = vmatprep.subr.mxu0 0.0
    %1512 = vmatpush1.msra.mxu0 %v485
    %1513 = vmatprep.subr.mxu0 0.0
    %1514 = vmatpush1.msra.mxu0 %v487
    %1515 = vmatprep.subr.mxu0 0.0
    %1516 = vmatpush1.msra.mxu0 0.0
    %1517 = vmatprep.subr.mxu0 0.0
    %1518 = vmatpush1.msra.mxu0 0.0
    %1519 = vmatprep.subr.mxu0 0.0
    %1520 = vmatpush1.msra.mxu0 0.0
    %1521 = vmatprep.subr.mxu0 0.0
    %1522 = vmatpush1.msra.mxu0 0.0
    %1523 = vmatprep.subr.mxu0 0.0
    %1524 = vmatpush1.msra.mxu0 0.0
    %1525 = vmatprep.subr.mxu0 0.0
    %1526 = vmatpush1.msra.mxu0 0.0
    %1527 = vmatprep.subr.mxu0 0.0
    %1528 = vmatpush1.msra.mxu0 0.0
    %1529 = vmatprep.subr.mxu0 0.0
    %1530 = vmatpush1.msra.mxu0 0.0
    %1531 = vmatprep.subr.mxu0 0.0
    %1532 = vmatpush1.msra.mxu0 0.0
    %1533 = vmatprep.subr.mxu0 0.0
    %1534 = vmatpush1.msra.mxu0 0.0
    %1535 = vmatprep.subr.mxu0 0.0
    %1536 = vmatpush1.msra.mxu0 0.0
    %1537 = vmatprep.subr.mxu0 0.0
    %1538 = vmatpush1.msra.mxu0 0.0
    %1539 = vmatprep.subr.mxu0 0.0
    %1540 = vmatpush1.msra.mxu0 0.0
    %1541 = vmatprep.subr.mxu0 0.0
    %1542 = vmatpush1.msra.mxu0 0.0
    %1543 = vmatprep.subr.mxu0 0.0
    %1544 = vmatpush1.msra.mxu0 0.0
    %1545 = vmatprep.subr.mxu0 0.0
    %1546 = vmatpush1.msra.mxu0 0.0
    %1547 = vmatprep.subr.mxu0 0.0
    %1548 = vmatpush1.msra.mxu0 0.0
    %1549 = vmatprep.subr.mxu0 0.0
    %1550 = vmatpush1.msra.mxu0 0.0
    %1551 = vmatprep.subr.mxu0 0.0
    %1552 = vmatpush1.msra.mxu0 0.0
    %1553 = vmatprep.subr.mxu0 0.0
    %1554 = vmatpush1.msra.mxu0 0.0
    %1555 = vmatprep.subr.mxu0 0.0
    %1556 = vmatpush1.msra.mxu0 0.0
    %1557 = vmatprep.subr.mxu0 0.0
    %1558 = vmatpush1.msra.mxu0 0.0
    %1559 = vmatprep.subr.mxu0 0.0
    %1560 = vmatpush1.msra.mxu0 0.0
    %1561 = vmatprep.subr.mxu0 0.0
    %1562 = vmatpush1.msra.mxu0 0.0
    %1563 = vmatprep.subr.mxu0 0.0
    %1564 = vmatpush1.msra.mxu0 0.0
    %1565 = vmatprep.subr.mxu0 0.0
    %1566 = vmatpush1.msra.mxu0 0.0
    %1567 = vmatprep.subr.mxu0 0.0
    %1568 = vmatpush1.msra.mxu0 0.0
    %1569 = vmatprep.subr.mxu0 0.0
    %1570 = vmatpush1.msra.mxu0 0.0
    %1571 = vmatprep.mubr.f32.mxu0 0.0
    %1572 = vmatmul.mubr.f32.gmra.mrb[0].mxu0 %v1435
    %v1573 = vpop.f32.mrb[0].mxu0
    %v1574 = vadd.f32 0.0, %v1573
    %v1575 = vpop.f32.mrb[0].mxu0
    %1576 = vdwg.mxu0
    %1578 = vrot.lane.b32.xlu0 %v1504, 96
    %v1579 = vpop.permute.xlu0 %1578
    %v1581 = vadd.f32 %v395, %v1579
    %v1582 = vxor.u32 %v1581, 2147483648
    %v1583 = vmul.f32 %v1582, 1.442695
    %v1584 = vpow.pop %v1583
    %v1585 = vadd.f32 %v1584, 1.0
    %v1586 = vrcp.pop %v1585
    %v1587 = vmul.f32 1.0, %v1586
    %v1588 = vadd.f32 %v401, %v1574
    %v1589 = vxor.u32 %v1588, 2147483648
    %v1590 = vmul.f32 %v1589, 1.442695
    %v1591 = vpow.pop %v1590
    %v1592 = vadd.f32 %v1591, 1.0
    %v1593 = vrcp.pop %v1592
    %v1594 = vmul.f32 1.0, %v1593
    %1595 = vmatprep.subr.mxu0 0.0
    %1596 = vmatpush1.msra.mxu0 %v581
    %1597 = vmatprep.subr.mxu0 0.0
    %1598 = vmatpush1.msra.mxu0 %v583
    %1599 = vmatprep.subr.mxu0 0.0
    %1600 = vmatpush1.msra.mxu0 %v585
    %1601 = vmatprep.subr.mxu0 0.0
    %1602 = vmatpush1.msra.mxu0 %v587
    %1603 = vmatprep.subr.mxu0 0.0
    %1604 = vmatpush1.msra.mxu0 0.0
    %1605 = vmatprep.subr.mxu0 0.0
    %1606 = vmatpush1.msra.mxu0 0.0
    %1607 = vmatprep.subr.mxu0 0.0
    %1608 = vmatpush1.msra.mxu0 0.0
    %1609 = vmatprep.subr.mxu0 0.0
    %1610 = vmatpush1.msra.mxu0 0.0
    %1611 = vmatprep.subr.mxu0 0.0
    %1612 = vmatpush1.msra.mxu0 0.0
    %1613 = vmatprep.subr.mxu0 0.0
    %1614 = vmatpush1.msra.mxu0 0.0
    %1615 = vmatprep.subr.mxu0 0.0
    %1616 = vmatpush1.msra.mxu0 0.0
    %1617 = vmatprep.subr.mxu0 0.0
    %1618 = vmatpush1.msra.mxu0 0.0
    %1619 = vmatprep.subr.mxu0 0.0
    %1620 = vmatpush1.msra.mxu0 0.0
    %1621 = vmatprep.subr.mxu0 0.0
    %1622 = vmatpush1.msra.mxu0 0.0
    %1623 = vmatprep.subr.mxu0 0.0
    %1624 = vmatpush1.msra.mxu0 0.0
    %1625 = vmatprep.subr.mxu0 0.0
    %1626 = vmatpush1.msra.mxu0 0.0
    %1627 = vmatprep.subr.mxu0 0.0
    %1628 = vmatpush1.msra.mxu0 0.0
    %1629 = vmatprep.subr.mxu0 0.0
    %1630 = vmatpush1.msra.mxu0 0.0
    %1631 = vmatprep.subr.mxu0 0.0
    %1632 = vmatpush1.msra.mxu0 0.0
    %1633 = vmatprep.subr.mxu0 0.0
    %1634 = vmatpush1.msra.mxu0 0.0
    %1635 = vmatprep.subr.mxu0 0.0
    %1636 = vmatpush1.msra.mxu0 0.0
    %1637 = vmatprep.subr.mxu0 0.0
    %1638 = vmatpush1.msra.mxu0 0.0
    %1639 = vmatprep.subr.mxu0 0.0
    %1640 = vmatpush1.msra.mxu0 0.0
    %1641 = vmatprep.subr.mxu0 0.0
    %1642 = vmatpush1.msra.mxu0 0.0
    %1643 = vmatprep.subr.mxu0 0.0
    %1644 = vmatpush1.msra.mxu0 0.0
    %1645 = vmatprep.subr.mxu0 0.0
    %1646 = vmatpush1.msra.mxu0 0.0
    %1647 = vmatprep.subr.mxu0 0.0
    %1648 = vmatpush1.msra.mxu0 0.0
    %1649 = vmatprep.subr.mxu0 0.0
    %1650 = vmatpush1.msra.mxu0 0.0
    %1651 = vmatprep.subr.mxu0 0.0
    %1652 = vmatpush1.msra.mxu0 0.0
    %1653 = vmatprep.subr.mxu0 0.0
    %1654 = vmatpush1.msra.mxu0 0.0
    %1655 = vmatprep.subr.mxu0 0.0
    %1656 = vmatpush1.msra.mxu0 0.0
    %1657 = vmatprep.subr.mxu0 0.0
    %1658 = vmatpush1.msra.mxu0 0.0
    %1659 = vmatprep.mubr.f32.mxu0 0.0
    %1660 = vmatmul.mubr.f32.gmra.mrb[0].mxu0 %v1435
    %v1661 = vpop.f32.mrb[0].mxu0
    %v1662 = vadd.f32 %v593, %v1661
    %v1663 = vpop.f32.mrb[0].mxu0
    %1664 = vdwg.mxu0
    %1666 = vrot.lane.b32.xlu0 %v1662, 96
    %v1667 = vpop.permute.xlu0 %1666
    %v1669 = vmul.f32 %v1587, %v1667
    %1671 = vrot.lane.b32.xlu0 %v1669, 64
    %v1672 = vpop.permute.xlu0 %1671
    %v1674 = vadd.f32 %v401, %v1672
    %v1675 = vtanh.pop %v1674
    %v1676 = vsub.f32 1.0, %v1594
    %1678 = vrot.lane.b32.xlu0 %v1675, 96
    %v1679 = vpop.permute.xlu0 %1678
    %v1681 = vmul.f32 %v1676, %v1679
    %v1682 = vmul.f32 %v1594, %v1433
    %v1683 = vadd.f32 %v1681, %v1682
    %v1685 = vsel %vm250, %v1683, 0
    %1687 = vmatprep.subr.mxu0 0.0
    %1688 = vmatpush1.msra.mxu0 %v378
    %1689 = vmatprep.subr.mxu0 0.0
    %1690 = vmatpush1.msra.mxu0 %v379
    %1691 = vmatprep.subr.mxu0 0.0
    %1692 = vmatpush1.msra.mxu0 %v380
    %1693 = vmatprep.subr.mxu0 0.0
    %1694 = vmatpush1.msra.mxu0 %v381
    %1695 = vmatprep.subr.mxu0 0.0
    %1696 = vmatpush1.msra.mxu0 0.0
    %1697 = vmatprep.subr.mxu0 0.0
    %1698 = vmatpush1.msra.mxu0 0.0
    %1699 = vmatprep.subr.mxu0 0.0
    %1700 = vmatpush1.msra.mxu0 0.0
    %1701 = vmatprep.subr.mxu0 0.0
    %1702 = vmatpush1.msra.mxu0 0.0
    %1703 = vmatprep.subr.mxu0 0.0
    %1704 = vmatpush1.msra.mxu0 0.0
    %1705 = vmatprep.subr.mxu0 0.0
    %1706 = vmatpush1.msra.mxu0 0.0
    %1707 = vmatprep.subr.mxu0 0.0
    %1708 = vmatpush1.msra.mxu0 0.0
    %1709 = vmatprep.subr.mxu0 0.0
    %1710 = vmatpush1.msra.mxu0 0.0
    %1711 = vmatprep.subr.mxu0 0.0
    %1712 = vmatpush1.msra.mxu0 0.0
    %1713 = vmatprep.subr.mxu0 0.0
    %1714 = vmatpush1.msra.mxu0 0.0
    %1715 = vmatprep.subr.mxu0 0.0
    %1716 = vmatpush1.msra.mxu0 0.0
    %1717 = vmatprep.subr.mxu0 0.0
    %1718 = vmatpush1.msra.mxu0 0.0
    %1719 = vmatprep.subr.mxu0 0.0
    %1720 = vmatpush1.msra.mxu0 0.0
    %1721 = vmatprep.subr.mxu0 0.0
    %1722 = vmatpush1.msra.mxu0 0.0
    %1723 = vmatprep.subr.mxu0 0.0
    %1724 = vmatpush1.msra.mxu0 0.0
    %1725 = vmatprep.subr.mxu0 0.0
    %1726 = vmatpush1.msra.mxu0 0.0
    %1727 = vmatprep.subr.mxu0 0.0
    %1728 = vmatpush1.msra.mxu0 0.0
    %1729 = vmatprep.subr.mxu0 0.0
    %1730 = vmatpush1.msra.mxu0 0.0
    %1731 = vmatprep.subr.mxu0 0.0
    %1732 = vmatpush1.msra.mxu0 0.0
    %1733 = vmatprep.subr.mxu0 0.0
    %1734 = vmatpush1.msra.mxu0 0.0
    %1735 = vmatprep.subr.mxu0 0.0
    %1736 = vmatpush1.msra.mxu0 0.0
    %1737 = vmatprep.subr.mxu0 0.0
    %1738 = vmatpush1.msra.mxu0 0.0
    %1739 = vmatprep.subr.mxu0 0.0
    %1740 = vmatpush1.msra.mxu0 0.0
    %1741 = vmatprep.subr.mxu0 0.0
    %1742 = vmatpush1.msra.mxu0 0.0
    %1743 = vmatprep.subr.mxu0 0.0
    %1744 = vmatpush1.msra.mxu0 0.0
    %1745 = vmatprep.subr.mxu0 0.0
    %1746 = vmatpush1.msra.mxu0 0.0
    %1747 = vmatprep.subr.mxu0 0.0
    %1748 = vmatpush1.msra.mxu0 0.0
    %1749 = vmatprep.subr.mxu0 0.0
    %1750 = vmatpush1.msra.mxu0 0.0
    %1751 = vmatprep.mubr.f32.mxu0 0.0
    %1752 = vmatmul.mubr.f32.gmra.mrb[0].mxu0 %v1685
    %v1753 = vpop.f32.mrb[0].mxu0
    %v1754 = vadd.f32 0.0, %v1753
    %v1755 = vpop.f32.mrb[0].mxu0
    %1756 = vdwg.mxu0
    %1757 = vmatprep.subr.mxu0 0.0
    %1758 = vmatpush1.msra.mxu0 %v481
    %1759 = vmatprep.subr.mxu0 0.0
    %1760 = vmatpush1.msra.mxu0 %v483
    %1761 = vmatprep.subr.mxu0 0.0
    %1762 = vmatpush1.msra.mxu0 %v485
    %1763 = vmatprep.subr.mxu0 0.0
    %1764 = vmatpush1.msra.mxu0 %v487
    %1765 = vmatprep.subr.mxu0 0.0
    %1766 = vmatpush1.msra.mxu0 0.0
    %1767 = vmatprep.subr.mxu0 0.0
    %1768 = vmatpush1.msra.mxu0 0.0
    %1769 = vmatprep.subr.mxu0 0.0
    %1770 = vmatpush1.msra.mxu0 0.0
    %1771 = vmatprep.subr.mxu0 0.0
    %1772 = vmatpush1.msra.mxu0 0.0
    %1773 = vmatprep.subr.mxu0 0.0
    %1774 = vmatpush1.msra.mxu0 0.0
    %1775 = vmatprep.subr.mxu0 0.0
    %1776 = vmatpush1.msra.mxu0 0.0
    %1777 = vmatprep.subr.mxu0 0.0
    %1778 = vmatpush1.msra.mxu0 0.0
    %1779 = vmatprep.subr.mxu0 0.0
    %1780 = vmatpush1.msra.mxu0 0.0
    %1781 = vmatprep.subr.mxu0 0.0
    %1782 = vmatpush1.msra.mxu0 0.0
    %1783 = vmatprep.subr.mxu0 0.0
    %1784 = vmatpush1.msra.mxu0 0.0
    %1785 = vmatprep.subr.mxu0 0.0
    %1786 = vmatpush1.msra.mxu0 0.0
    %1787 = vmatprep.subr.mxu0 0.0
    %1788 = vmatpush1.msra.mxu0 0.0
    %1789 = vmatprep.subr.mxu0 0.0
    %1790 = vmatpush1.msra.mxu0 0.0
    %1791 = vmatprep.subr.mxu0 0.0
    %1792 = vmatpush1.msra.mxu0 0.0
    %1793 = vmatprep.subr.mxu0 0.0
    %1794 = vmatpush1.msra.mxu0 0.0
    %1795 = vmatprep.subr.mxu0 0.0
    %1796 = vmatpush1.msra.mxu0 0.0
    %1797 = vmatprep.subr.mxu0 0.0
    %1798 = vmatpush1.msra.mxu0 0.0
    %1799 = vmatprep.subr.mxu0 0.0
    %1800 = vmatpush1.msra.mxu0 0.0
    %1801 = vmatprep.subr.mxu0 0.0
    %1802 = vmatpush1.msra.mxu0 0.0
    %1803 = vmatprep.subr.mxu0 0.0
    %1804 = vmatpush1.msra.mxu0 0.0
    %1805 = vmatprep.subr.mxu0 0.0
    %1806 = vmatpush1.msra.mxu0 0.0
    %1807 = vmatprep.subr.mxu0 0.0
    %1808 = vmatpush1.msra.mxu0 0.0
    %1809 = vmatprep.subr.mxu0 0.0
    %1810 = vmatpush1.msra.mxu0 0.0
    %1811 = vmatprep.subr.mxu0 0.0
    %1812 = vmatpush1.msra.mxu0 0.0
    %1813 = vmatprep.subr.mxu0 0.0
    %1814 = vmatpush1.msra.mxu0 0.0
    %1815 = vmatprep.subr.mxu0 0.0
    %1816 = vmatpush1.msra.mxu0 0.0
    %1817 = vmatprep.subr.mxu0 0.0
    %1818 = vmatpush1.msra.mxu0 0.0
    %1819 = vmatprep.subr.mxu0 0.0
    %1820 = vmatpush1.msra.mxu0 0.0
    %1821 = vmatprep.mubr.f32.mxu0 0.0
    %1822 = vmatmul.mubr.f32.gmra.mrb[0].mxu0 %v1685
    %v1823 = vpop.f32.mrb[0].mxu0
    %v1824 = vadd.f32 0.0, %v1823
    %v1825 = vpop.f32.mrb[0].mxu0
    %1826 = vdwg.mxu0
    %1828 = vrot.lane.b32.xlu0 %v1754, 96
    %v1829 = vpop.permute.xlu0 %1828
    %v1831 = vadd.f32 %v396, %v1829
    %v1832 = vxor.u32 %v1831, 2147483648
    %v1833 = vmul.f32 %v1832, 1.442695
    %v1834 = vpow.pop %v1833
    %v1835 = vadd.f32 %v1834, 1.0
    %v1836 = vrcp.pop %v1835
    %v1837 = vmul.f32 1.0, %v1836
    %v1838 = vadd.f32 %v402, %v1824
    %v1839 = vxor.u32 %v1838, 2147483648
    %v1840 = vmul.f32 %v1839, 1.442695
    %v1841 = vpow.pop %v1840
    %v1842 = vadd.f32 %v1841, 1.0
    %v1843 = vrcp.pop %v1842
    %v1844 = vmul.f32 1.0, %v1843
    %1845 = vmatprep.subr.mxu0 0.0
    %1846 = vmatpush1.msra.mxu0 %v581
    %1847 = vmatprep.subr.mxu0 0.0
    %1848 = vmatpush1.msra.mxu0 %v583
    %1849 = vmatprep.subr.mxu0 0.0
    %1850 = vmatpush1.msra.mxu0 %v585
    %1851 = vmatprep.subr.mxu0 0.0
    %1852 = vmatpush1.msra.mxu0 %v587
    %1853 = vmatprep.subr.mxu0 0.0
    %1854 = vmatpush1.msra.mxu0 0.0
    %1855 = vmatprep.subr.mxu0 0.0
    %1856 = vmatpush1.msra.mxu0 0.0
    %1857 = vmatprep.subr.mxu0 0.0
    %1858 = vmatpush1.msra.mxu0 0.0
    %1859 = vmatprep.subr.mxu0 0.0
    %1860 = vmatpush1.msra.mxu0 0.0
    %1861 = vmatprep.subr.mxu0 0.0
    %1862 = vmatpush1.msra.mxu0 0.0
    %1863 = vmatprep.subr.mxu0 0.0
    %1864 = vmatpush1.msra.mxu0 0.0
    %1865 = vmatprep.subr.mxu0 0.0
    %1866 = vmatpush1.msra.mxu0 0.0
    %1867 = vmatprep.subr.mxu0 0.0
    %1868 = vmatpush1.msra.mxu0 0.0
    %1869 = vmatprep.subr.mxu0 0.0
    %1870 = vmatpush1.msra.mxu0 0.0
    %1871 = vmatprep.subr.mxu0 0.0
    %1872 = vmatpush1.msra.mxu0 0.0
    %1873 = vmatprep.subr.mxu0 0.0
    %1874 = vmatpush1.msra.mxu0 0.0
    %1875 = vmatprep.subr.mxu0 0.0
    %1876 = vmatpush1.msra.mxu0 0.0
    %1877 = vmatprep.subr.mxu0 0.0
    %1878 = vmatpush1.msra.mxu0 0.0
    %1879 = vmatprep.subr.mxu0 0.0
    %1880 = vmatpush1.msra.mxu0 0.0
    %1881 = vmatprep.subr.mxu0 0.0
    %1882 = vmatpush1.msra.mxu0 0.0
    %1883 = vmatprep.subr.mxu0 0.0
    %1884 = vmatpush1.msra.mxu0 0.0
    %1885 = vmatprep.subr.mxu0 0.0
    %1886 = vmatpush1.msra.mxu0 0.0
    %1887 = vmatprep.subr.mxu0 0.0
    %1888 = vmatpush1.msra.mxu0 0.0
    %1889 = vmatprep.subr.mxu0 0.0
    %1890 = vmatpush1.msra.mxu0 0.0
    %1891 = vmatprep.subr.mxu0 0.0
    %1892 = vmatpush1.msra.mxu0 0.0
    %1893 = vmatprep.subr.mxu0 0.0
    %1894 = vmatpush1.msra.mxu0 0.0
    %1895 = vmatprep.subr.mxu0 0.0
    %1896 = vmatpush1.msra.mxu0 0.0
    %1897 = vmatprep.subr.mxu0 0.0
    %1898 = vmatpush1.msra.mxu0 0.0
    %1899 = vmatprep.subr.mxu0 0.0
    %1900 = vmatpush1.msra.mxu0 0.0
    %1901 = vmatprep.subr.mxu0 0.0
    %1902 = vmatpush1.msra.mxu0 0.0
    %1903 = vmatprep.subr.mxu0 0.0
    %1904 = vmatpush1.msra.mxu0 0.0
    %1905 = vmatprep.subr.mxu0 0.0
    %1906 = vmatpush1.msra.mxu0 0.0
    %1907 = vmatprep.subr.mxu0 0.0
    %1908 = vmatpush1.msra.mxu0 0.0
    %1909 = vmatprep.mubr.f32.mxu0 0.0
    %1910 = vmatmul.mubr.f32.gmra.mrb[0].mxu0 %v1685
    %v1911 = vpop.f32.mrb[0].mxu0
    %v1912 = vadd.f32 %v593, %v1911
    %v1913 = vpop.f32.mrb[0].mxu0
    %1914 = vdwg.mxu0
    %1916 = vrot.lane.b32.xlu0 %v1912, 96
    %v1917 = vpop.permute.xlu0 %1916
    %v1919 = vmul.f32 %v1837, %v1917
    %1921 = vrot.lane.b32.xlu0 %v1919, 64
    %v1922 = vpop.permute.xlu0 %1921
    %v1924 = vadd.f32 %v402, %v1922
    %v1925 = vtanh.pop %v1924
    %v1926 = vsub.f32 1.0, %v1844
    %1928 = vrot.lane.b32.xlu0 %v1925, 96
    %v1929 = vpop.permute.xlu0 %1928
    %v1931 = vmul.f32 %v1926, %v1929
    %v1932 = vmul.f32 %v1844, %v1683
    %v1933 = vadd.f32 %v1931, %v1932
    %v1934 = vld [vmem:[%s2 + $0x10] sm:$0xff]
    %v1935 = vld [vmem:[%s2 + $0x38] sm:$0xff]
    %v1936 = vld [vmem:[%s2 + $0x60] sm:$0xff]
    %v1937 = vld [vmem:[%s2 + $0x88] sm:$0xff]
    %v1938 = vld [vmem:[%s3] sm:$0x1]
    %v1939 = vlaneseq
    %v1940 = vshrl.u32 %v1939, 7
    %v1941 = vsub.s32 0, %v1940
    %v1942 = vrot.slane %v1938, %v1941
    %v1943 = vadd.f32 %v339, %v1942
    %1948 = vrot.lane.b32.xlu0 %v1934, 96
    %v1949 = vpop.permute.xlu0 %1948
    %1950 = vrot.lane.b32.xlu0 %v1935, 96
    %v1951 = vpop.permute.xlu0 %1950
    %1952 = vrot.lane.b32.xlu0 %v1936, 96
    %v1953 = vpop.permute.xlu0 %1952
    %1954 = vrot.lane.b32.xlu0 %v1937, 96
    %v1955 = vpop.permute.xlu0 %1954
    %1960 = vmatprep.subr.mxu0 0.0
    %1961 = vmatpush1.msra.mxu0 %v1949
    %1962 = vmatprep.subr.mxu0 0.0
    %1963 = vmatpush1.msra.mxu0 %v1951
    %1964 = vmatprep.subr.mxu0 0.0
    %1965 = vmatpush1.msra.mxu0 %v1953
    %1966 = vmatprep.subr.mxu0 0.0
    %1967 = vmatpush1.msra.mxu0 %v1955
    %1968 = vmatprep.subr.mxu0 0.0
    %1969 = vmatpush1.msra.mxu0 0.0
    %1970 = vmatprep.subr.mxu0 0.0
    %1971 = vmatpush1.msra.mxu0 0.0
    %1972 = vmatprep.subr.mxu0 0.0
    %1973 = vmatpush1.msra.mxu0 0.0
    %1974 = vmatprep.subr.mxu0 0.0
    %1975 = vmatpush1.msra.mxu0 0.0
    %1976 = vmatprep.subr.mxu0 0.0
    %1977 = vmatpush1.msra.mxu0 0.0
    %1978 = vmatprep.subr.mxu0 0.0
    %1979 = vmatpush1.msra.mxu0 0.0
    %1980 = vmatprep.subr.mxu0 0.0
    %1981 = vmatpush1.msra.mxu0 0.0
    %1982 = vmatprep.subr.mxu0 0.0
    %1983 = vmatpush1.msra.mxu0 0.0
    %1984 = vmatprep.subr.mxu0 0.0
    %1985 = vmatpush1.msra.mxu0 0.0
    %1986 = vmatprep.subr.mxu0 0.0
    %1987 = vmatpush1.msra.mxu0 0.0
    %1988 = vmatprep.subr.mxu0 0.0
    %1989 = vmatpush1.msra.mxu0 0.0
    %1990 = vmatprep.subr.mxu0 0.0
    %1991 = vmatpush1.msra.mxu0 0.0
    %1992 = vmatprep.subr.mxu0 0.0
    %1993 = vmatpush1.msra.mxu0 0.0
    %1994 = vmatprep.subr.mxu0 0.0
    %1995 = vmatpush1.msra.mxu0 0.0
    %1996 = vmatprep.subr.mxu0 0.0
    %1997 = vmatpush1.msra.mxu0 0.0
    %1998 = vmatprep.subr.mxu0 0.0
    %1999 = vmatpush1.msra.mxu0 0.0
    %2000 = vmatprep.subr.mxu0 0.0
    %2001 = vmatpush1.msra.mxu0 0.0
    %2002 = vmatprep.subr.mxu0 0.0
    %2003 = vmatpush1.msra.mxu0 0.0
    %2004 = vmatprep.subr.mxu0 0.0
    %2005 = vmatpush1.msra.mxu0 0.0
    %2006 = vmatprep.subr.mxu0 0.0
    %2007 = vmatpush1.msra.mxu0 0.0
    %2008 = vmatprep.subr.mxu0 0.0
    %2009 = vmatpush1.msra.mxu0 0.0
    %2010 = vmatprep.subr.mxu0 0.0
    %2011 = vmatpush1.msra.mxu0 0.0
    %2012 = vmatprep.subr.mxu0 0.0
    %2013 = vmatpush1.msra.mxu0 0.0
    %2014 = vmatprep.subr.mxu0 0.0
    %2015 = vmatpush1.msra.mxu0 0.0
    %2016 = vmatprep.subr.mxu0 0.0
    %2017 = vmatpush1.msra.mxu0 0.0
    %2018 = vmatprep.subr.mxu0 0.0
    %2019 = vmatpush1.msra.mxu0 0.0
    %2020 = vmatprep.subr.mxu0 0.0
    %2021 = vmatpush1.msra.mxu0 0.0
    %2022 = vmatprep.subr.mxu0 0.0
    %2023 = vmatpush1.msra.mxu0 0.0
    %2024 = vmatprep.mubr.f32.mxu0 0.0
    %2025 = vmatmul.mubr.f32.gmra.mrb[0].mxu0 %v404
    %v2026 = vpop.f32.mrb[0].mxu0
    %v2027 = vadd.f32 0.0, %v2026
    %v2028 = vpop.f32.mrb[0].mxu0
    %2029 = vdwg.mxu0
    %2030 = vrot.lane.b32.xlu0 %v1934, 64
    %v2031 = vpop.permute.xlu0 %2030
    %2032 = vrot.lane.b32.xlu0 %v1935, 64
    %v2033 = vpop.permute.xlu0 %2032
    %2034 = vrot.lane.b32.xlu0 %v1936, 64
    %v2035 = vpop.permute.xlu0 %2034
    %2036 = vrot.lane.b32.xlu0 %v1937, 64
    %v2037 = vpop.permute.xlu0 %2036
    %2042 = vmatprep.subr.mxu0 0.0
    %2043 = vmatpush1.msra.mxu0 %v2031
    %2044 = vmatprep.subr.mxu0 0.0
    %2045 = vmatpush1.msra.mxu0 %v2033
    %2046 = vmatprep.subr.mxu0 0.0
    %2047 = vmatpush1.msra.mxu0 %v2035
    %2048 = vmatprep.subr.mxu0 0.0
    %2049 = vmatpush1.msra.mxu0 %v2037
    %2050 = vmatprep.subr.mxu0 0.0
    %2051 = vmatpush1.msra.mxu0 0.0
    %2052 = vmatprep.subr.mxu0 0.0
    %2053 = vmatpush1.msra.mxu0 0.0
    %2054 = vmatprep.subr.mxu0 0.0
    %2055 = vmatpush1.msra.mxu0 0.0
    %2056 = vmatprep.subr.mxu0 0.0
    %2057 = vmatpush1.msra.mxu0 0.0
    %2058 = vmatprep.subr.mxu0 0.0
    %2059 = vmatpush1.msra.mxu0 0.0
    %2060 = vmatprep.subr.mxu0 0.0
    %2061 = vmatpush1.msra.mxu0 0.0
    %2062 = vmatprep.subr.mxu0 0.0
    %2063 = vmatpush1.msra.mxu0 0.0
    %2064 = vmatprep.subr.mxu0 0.0
    %2065 = vmatpush1.msra.mxu0 0.0
    %2066 = vmatprep.subr.mxu0 0.0
    %2067 = vmatpush1.msra.mxu0 0.0
    %2068 = vmatprep.subr.mxu0 0.0
    %2069 = vmatpush1.msra.mxu0 0.0
    %2070 = vmatprep.subr.mxu0 0.0
    %2071 = vmatpush1.msra.mxu0 0.0
    %2072 = vmatprep.subr.mxu0 0.0
    %2073 = vmatpush1.msra.mxu0 0.0
    %2074 = vmatprep.subr.mxu0 0.0
    %2075 = vmatpush1.msra.mxu0 0.0
    %2076 = vmatprep.subr.mxu0 0.0
    %2077 = vmatpush1.msra.mxu0 0.0
    %2078 = vmatprep.subr.mxu0 0.0
    %2079 = vmatpush1.msra.mxu0 0.0
    %2080 = vmatprep.subr.mxu0 0.0
    %2081 = vmatpush1.msra.mxu0 0.0
    %2082 = vmatprep.subr.mxu0 0.0
    %2083 = vmatpush1.msra.mxu0 0.0
    %2084 = vmatprep.subr.mxu0 0.0
    %2085 = vmatpush1.msra.mxu0 0.0
    %2086 = vmatprep.subr.mxu0 0.0
    %2087 = vmatpush1.msra.mxu0 0.0
    %2088 = vmatprep.subr.mxu0 0.0
    %2089 = vmatpush1.msra.mxu0 0.0
    %2090 = vmatprep.subr.mxu0 0.0
    %2091 = vmatpush1.msra.mxu0 0.0
    %2092 = vmatprep.subr.mxu0 0.0
    %2093 = vmatpush1.msra.mxu0 0.0
    %2094 = vmatprep.subr.mxu0 0.0
    %2095 = vmatpush1.msra.mxu0 0.0
    %2096 = vmatprep.subr.mxu0 0.0
    %2097 = vmatpush1.msra.mxu0 0.0
    %2098 = vmatprep.subr.mxu0 0.0
    %2099 = vmatpush1.msra.mxu0 0.0
    %2100 = vmatprep.subr.mxu0 0.0
    %2101 = vmatpush1.msra.mxu0 0.0
    %2102 = vmatprep.subr.mxu0 0.0
    %2103 = vmatpush1.msra.mxu0 0.0
    %2104 = vmatprep.subr.mxu0 0.0
    %2105 = vmatpush1.msra.mxu0 0.0
    %2106 = vmatprep.mubr.f32.mxu0 0.0
    %2107 = vmatmul.mubr.f32.gmra.mrb[0].mxu0 %v404
    %v2108 = vpop.f32.mrb[0].mxu0
    %v2109 = vadd.f32 0.0, %v2108
    %v2110 = vpop.f32.mrb[0].mxu0
    %2111 = vdwg.mxu0
    %v2112 = vadd.f32 %v1943, %v2027
    %v2113 = vxor.u32 %v2112, 2147483648
    %v2114 = vmul.f32 %v2113, 1.442695
    %v2115 = vpow.pop %v2114
    %v2116 = vadd.f32 %v2115, 1.0
    %v2117 = vrcp.pop %v2116
    %v2118 = vmul.f32 1.0, %v2117
    %2120 = vrot.lane.b32.xlu0 %v2109, 32
    %v2121 = vpop.permute.xlu0 %2120
    %v2123 = vadd.f32 %v1943, %v2121
    %v2124 = vxor.u32 %v2123, 2147483648
    %v2125 = vmul.f32 %v2124, 1.442695
    %v2126 = vpow.pop %v2125
    %v2127 = vadd.f32 %v2126, 1.0
    %v2128 = vrcp.pop %v2127
    %v2129 = vmul.f32 1.0, %v2128
    %2130 = vrot.lane.b32.xlu0 %v1934, 32
    %v2131 = vpop.permute.xlu0 %2130
    %2132 = vrot.lane.b32.xlu0 %v1935, 32
    %v2133 = vpop.permute.xlu0 %2132
    %2134 = vrot.lane.b32.xlu0 %v1936, 32
    %v2135 = vpop.permute.xlu0 %2134
    %2136 = vrot.lane.b32.xlu0 %v1937, 32
    %v2137 = vpop.permute.xlu0 %2136
    %2143 = vrot.lane.b32.xlu0 %v1938, 32
    %v2144 = vpop.permute.xlu0 %2143
    %2146 = vmatprep.subr.mxu0 0.0
    %2147 = vmatpush1.msra.mxu0 %v2131
    %2148 = vmatprep.subr.mxu0 0.0
    %2149 = vmatpush1.msra.mxu0 %v2133
    %2150 = vmatprep.subr.mxu0 0.0
    %2151 = vmatpush1.msra.mxu0 %v2135
    %2152 = vmatprep.subr.mxu0 0.0
    %2153 = vmatpush1.msra.mxu0 %v2137
    %2154 = vmatprep.subr.mxu0 0.0
    %2155 = vmatpush1.msra.mxu0 0.0
    %2156 = vmatprep.subr.mxu0 0.0
    %2157 = vmatpush1.msra.mxu0 0.0
    %2158 = vmatprep.subr.mxu0 0.0
    %2159 = vmatpush1.msra.mxu0 0.0
    %2160 = vmatprep.subr.mxu0 0.0
    %2161 = vmatpush1.msra.mxu0 0.0
    %2162 = vmatprep.subr.mxu0 0.0
    %2163 = vmatpush1.msra.mxu0 0.0
    %2164 = vmatprep.subr.mxu0 0.0
    %2165 = vmatpush1.msra.mxu0 0.0
    %2166 = vmatprep.subr.mxu0 0.0
    %2167 = vmatpush1.msra.mxu0 0.0
    %2168 = vmatprep.subr.mxu0 0.0
    %2169 = vmatpush1.msra.mxu0 0.0
    %2170 = vmatprep.subr.mxu0 0.0
    %2171 = vmatpush1.msra.mxu0 0.0
    %2172 = vmatprep.subr.mxu0 0.0
    %2173 = vmatpush1.msra.mxu0 0.0
    %2174 = vmatprep.subr.mxu0 0.0
    %2175 = vmatpush1.msra.mxu0 0.0
    %2176 = vmatprep.subr.mxu0 0.0
    %2177 = vmatpush1.msra.mxu0 0.0
    %2178 = vmatprep.subr.mxu0 0.0
    %2179 = vmatpush1.msra.mxu0 0.0
    %2180 = vmatprep.subr.mxu0 0.0
    %2181 = vmatpush1.msra.mxu0 0.0
    %2182 = vmatprep.subr.mxu0 0.0
    %2183 = vmatpush1.msra.mxu0 0.0
    %2184 = vmatprep.subr.mxu0 0.0
    %2185 = vmatpush1.msra.mxu0 0.0
    %2186 = vmatprep.subr.mxu0 0.0
    %2187 = vmatpush1.msra.mxu0 0.0
    %2188 = vmatprep.subr.mxu0 0.0
    %2189 = vmatpush1.msra.mxu0 0.0
    %2190 = vmatprep.subr.mxu0 0.0
    %2191 = vmatpush1.msra.mxu0 0.0
    %2192 = vmatprep.subr.mxu0 0.0
    %2193 = vmatpush1.msra.mxu0 0.0
    %2194 = vmatprep.subr.mxu0 0.0
    %2195 = vmatpush1.msra.mxu0 0.0
    %2196 = vmatprep.subr.mxu0 0.0
    %2197 = vmatpush1.msra.mxu0 0.0
    %2198 = vmatprep.subr.mxu0 0.0
    %2199 = vmatpush1.msra.mxu0 0.0
    %2200 = vmatprep.subr.mxu0 0.0
    %2201 = vmatpush1.msra.mxu0 0.0
    %2202 = vmatprep.subr.mxu0 0.0
    %2203 = vmatpush1.msra.mxu0 0.0
    %2204 = vmatprep.subr.mxu0 0.0
    %2205 = vmatpush1.msra.mxu0 0.0
    %2206 = vmatprep.subr.mxu0 0.0
    %2207 = vmatpush1.msra.mxu0 0.0
    %2208 = vmatprep.subr.mxu0 0.0
    %2209 = vmatpush1.msra.mxu0 0.0
    %2210 = vmatprep.mubr.f32.mxu0 0.0
    %2211 = vmatmul.mubr.f32.gmra.mrb[0].mxu0 %v404
    %v2212 = vpop.f32.mrb[0].mxu0
    %v2213 = vadd.f32 %v2144, %v2212
    %v2214 = vpop.f32.mrb[0].mxu0
    %2215 = vdwg.mxu0
    %v2216 = vmul.f32 %v2118, %v2213
    %2218 = vrot.lane.b32.xlu0 %v2216, 64
    %v2219 = vpop.permute.xlu0 %2218
    %v2221 = vadd.f32 %v1943, %v2219
    %v2222 = vtanh.pop %v2221
    %v2223 = vsub.f32 1.0, %v2129
    %2225 = vrot.lane.b32.xlu0 %v2222, 96
    %v2226 = vpop.permute.xlu0 %2225
    %v2228 = vmul.f32 %v2223, %v2226
    %v2229 = vmul.f32 %v2129, 0.0
    %v2230 = vadd.f32 %v2228, %v2229
    %2232 = vrot.lane.b32.xlu0 %v2230, 96
    %v2233 = vpop.permute.xlu0 %2232
    %v2234 = vsel %vm250, %v2233, 0
    %2236 = vmatprep.subr.mxu0 0.0
    %2237 = vmatpush1.msra.mxu0 %v1949
    %2238 = vmatprep.subr.mxu0 0.0
    %2239 = vmatpush1.msra.mxu0 %v1951
    %2240 = vmatprep.subr.mxu0 0.0
    %2241 = vmatpush1.msra.mxu0 %v1953
    %2242 = vmatprep.subr.mxu0 0.0
    %2243 = vmatpush1.msra.mxu0 %v1955
    %2244 = vmatprep.subr.mxu0 0.0
    %2245 = vmatpush1.msra.mxu0 0.0
    %2246 = vmatprep.subr.mxu0 0.0
    %2247 = vmatpush1.msra.mxu0 0.0
    %2248 = vmatprep.subr.mxu0 0.0
    %2249 = vmatpush1.msra.mxu0 0.0
    %2250 = vmatprep.subr.mxu0 0.0
    %2251 = vmatpush1.msra.mxu0 0.0
    %2252 = vmatprep.subr.mxu0 0.0
    %2253 = vmatpush1.msra.mxu0 0.0
    %2254 = vmatprep.subr.mxu0 0.0
    %2255 = vmatpush1.msra.mxu0 0.0
    %2256 = vmatprep.subr.mxu0 0.0
    %2257 = vmatpush1.msra.mxu0 0.0
    %2258 = vmatprep.subr.mxu0 0.0
    %2259 = vmatpush1.msra.mxu0 0.0
    %2260 = vmatprep.subr.mxu0 0.0
    %2261 = vmatpush1.msra.mxu0 0.0
    %2262 = vmatprep.subr.mxu0 0.0
    %2263 = vmatpush1.msra.mxu0 0.0
    %2264 = vmatprep.subr.mxu0 0.0
    %2265 = vmatpush1.msra.mxu0 0.0
    %2266 = vmatprep.subr.mxu0 0.0
    %2267 = vmatpush1.msra.mxu0 0.0
    %2268 = vmatprep.subr.mxu0 0.0
    %2269 = vmatpush1.msra.mxu0 0.0
    %2270 = vmatprep.subr.mxu0 0.0
    %2271 = vmatpush1.msra.mxu0 0.0
    %2272 = vmatprep.subr.mxu0 0.0
    %2273 = vmatpush1.msra.mxu0 0.0
    %2274 = vmatprep.subr.mxu0 0.0
    %2275 = vmatpush1.msra.mxu0 0.0
    %2276 = vmatprep.subr.mxu0 0.0
    %2277 = vmatpush1.msra.mxu0 0.0
    %2278 = vmatprep.subr.mxu0 0.0
    %2279 = vmatpush1.msra.mxu0 0.0
    %2280 = vmatprep.subr.mxu0 0.0
    %2281 = vmatpush1.msra.mxu0 0.0
    %2282 = vmatprep.subr.mxu0 0.0
    %2283 = vmatpush1.msra.mxu0 0.0
    %2284 = vmatprep.subr.mxu0 0.0
    %2285 = vmatpush1.msra.mxu0 0.0
    %2286 = vmatprep.subr.mxu0 0.0
    %2287 = vmatpush1.msra.mxu0 0.0
    %2288 = vmatprep.subr.mxu0 0.0
    %2289 = vmatpush1.msra.mxu0 0.0
    %2290 = vmatprep.subr.mxu0 0.0
    %2291 = vmatpush1.msra.mxu0 0.0
    %2292 = vmatprep.subr.mxu0 0.0
    %2293 = vmatpush1.msra.mxu0 0.0
    %2294 = vmatprep.subr.mxu0 0.0
    %2295 = vmatpush1.msra.mxu0 0.0
    %2296 = vmatprep.subr.mxu0 0.0
    %2297 = vmatpush1.msra.mxu0 0.0
    %2298 = vmatprep.subr.mxu0 0.0
    %2299 = vmatpush1.msra.mxu0 0.0
    %2300 = vmatprep.mubr.f32.mxu0 0.0
    %2301 = vmatmul.mubr.f32.gmra.mrb[0].mxu0 %v2234
    %v2302 = vpop.f32.mrb[0].mxu0
    %v2303 = vadd.f32 0.0, %v2302
    %v2304 = vpop.f32.mrb[0].mxu0
    %2305 = vdwg.mxu0
    %2306 = vmatprep.subr.mxu0 0.0
    %2307 = vmatpush1.msra.mxu0 %v2031
    %2308 = vmatprep.subr.mxu0 0.0
    %2309 = vmatpush1.msra.mxu0 %v2033
    %2310 = vmatprep.subr.mxu0 0.0
    %2311 = vmatpush1.msra.mxu0 %v2035
    %2312 = vmatprep.subr.mxu0 0.0
    %2313 = vmatpush1.msra.mxu0 %v2037
    %2314 = vmatprep.subr.mxu0 0.0
    %2315 = vmatpush1.msra.mxu0 0.0
    %2316 = vmatprep.subr.mxu0 0.0
    %2317 = vmatpush1.msra.mxu0 0.0
    %2318 = vmatprep.subr.mxu0 0.0
    %2319 = vmatpush1.msra.mxu0 0.0
    %2320 = vmatprep.subr.mxu0 0.0
    %2321 = vmatpush1.msra.mxu0 0.0
    %2322 = vmatprep.subr.mxu0 0.0
    %2323 = vmatpush1.msra.mxu0 0.0
    %2324 = vmatprep.subr.mxu0 0.0
    %2325 = vmatpush1.msra.mxu0 0.0
    %2326 = vmatprep.subr.mxu0 0.0
    %2327 = vmatpush1.msra.mxu0 0.0
    %2328 = vmatprep.subr.mxu0 0.0
    %2329 = vmatpush1.msra.mxu0 0.0
    %2330 = vmatprep.subr.mxu0 0.0
    %2331 = vmatpush1.msra.mxu0 0.0
    %2332 = vmatprep.subr.mxu0 0.0
    %2333 = vmatpush1.msra.mxu0 0.0
    %2334 = vmatprep.subr.mxu0 0.0
    %2335 = vmatpush1.msra.mxu0 0.0
    %2336 = vmatprep.subr.mxu0 0.0
    %2337 = vmatpush1.msra.mxu0 0.0
    %2338 = vmatprep.subr.mxu0 0.0
    %2339 = vmatpush1.msra.mxu0 0.0
    %2340 = vmatprep.subr.mxu0 0.0
    %2341 = vmatpush1.msra.mxu0 0.0
    %2342 = vmatprep.subr.mxu0 0.0
    %2343 = vmatpush1.msra.mxu0 0.0
    %2344 = vmatprep.subr.mxu0 0.0
    %2345 = vmatpush1.msra.mxu0 0.0
    %2346 = vmatprep.subr.mxu0 0.0
    %2347 = vmatpush1.msra.mxu0 0.0
    %2348 = vmatprep.subr.mxu0 0.0
    %2349 = vmatpush1.msra.mxu0 0.0
    %2350 = vmatprep.subr.mxu0 0.0
    %2351 = vmatpush1.msra.mxu0 0.0
    %2352 = vmatprep.subr.mxu0 0.0
    %2353 = vmatpush1.msra.mxu0 0.0
    %2354 = vmatprep.subr.mxu0 0.0
    %2355 = vmatpush1.msra.mxu0 0.0
    %2356 = vmatprep.subr.mxu0 0.0
    %2357 = vmatpush1.msra.mxu0 0.0
    %2358 = vmatprep.subr.mxu0 0.0
    %2359 = vmatpush1.msra.mxu0 0.0
    %2360 = vmatprep.subr.mxu0 0.0
    %2361 = vmatpush1.msra.mxu0 0.0
    %2362 = vmatprep.subr.mxu0 0.0
    %2363 = vmatpush1.msra.mxu0 0.0
    %2364 = vmatprep.subr.mxu0 0.0
    %2365 = vmatpush1.msra.mxu0 0.0
    %2366 = vmatprep.subr.mxu0 0.0
    %2367 = vmatpush1.msra.mxu0 0.0
    %2368 = vmatprep.subr.mxu0 0.0
    %2369 = vmatpush1.msra.mxu0 0.0
    %2370 = vmatprep.mubr.f32.mxu0 0.0
    %2371 = vmatmul.mubr.f32.gmra.mrb[0].mxu0 %v2234
    %v2372 = vpop.f32.mrb[0].mxu0
    %v2373 = vadd.f32 0.0, %v2372
    %v2374 = vpop.f32.mrb[0].mxu0
    %2375 = vdwg.mxu0
    %v2377 = vrot.slane %v2303, 7
    %v2379 = vadd.f32 %v1943, %v2377
    %v2380 = vxor.u32 %v2379, 2147483648
    %v2381 = vmul.f32 %v2380, 1.442695
    %v2382 = vpow.pop %v2381
    %v2383 = vadd.f32 %v2382, 1.0
    %v2384 = vrcp.pop %v2383
    %v2385 = vmul.f32 1.0, %v2384
    %v2387 = vrot.slane %v2373, 7
    %2388 = vrot.lane.b32.xlu0 %v2387, 32
    %v2389 = vpop.permute.xlu0 %2388
    %v2391 = vadd.f32 %v1943, %v2389
    %v2392 = vxor.u32 %v2391, 2147483648
    %v2393 = vmul.f32 %v2392, 1.442695
    %v2394 = vpow.pop %v2393
    %v2395 = vadd.f32 %v2394, 1.0
    %v2396 = vrcp.pop %v2395
    %v2397 = vmul.f32 1.0, %v2396
    %2398 = vmatprep.subr.mxu0 0.0
    %2399 = vmatpush1.msra.mxu0 %v2131
    %2400 = vmatprep.subr.mxu0 0.0
    %2401 = vmatpush1.msra.mxu0 %v2133
    %2402 = vmatprep.subr.mxu0 0.0
    %2403 = vmatpush1.msra.mxu0 %v2135
    %2404 = vmatprep.subr.mxu0 0.0
    %2405 = vmatpush1.msra.mxu0 %v2137
    %2406 = vmatprep.subr.mxu0 0.0
    %2407 = vmatpush1.msra.mxu0 0.0
    %2408 = vmatprep.subr.mxu0 0.0
    %2409 = vmatpush1.msra.mxu0 0.0
    %2410 = vmatprep.subr.mxu0 0.0
    %2411 = vmatpush1.msra.mxu0 0.0
    %2412 = vmatprep.subr.mxu0 0.0
    %2413 = vmatpush1.msra.mxu0 0.0
    %2414 = vmatprep.subr.mxu0 0.0
    %2415 = vmatpush1.msra.mxu0 0.0
    %2416 = vmatprep.subr.mxu0 0.0
    %2417 = vmatpush1.msra.mxu0 0.0
    %2418 = vmatprep.subr.mxu0 0.0
    %2419 = vmatpush1.msra.mxu0 0.0
    %2420 = vmatprep.subr.mxu0 0.0
    %2421 = vmatpush1.msra.mxu0 0.0
    %2422 = vmatprep.subr.mxu0 0.0
    %2423 = vmatpush1.msra.mxu0 0.0
    %2424 = vmatprep.subr.mxu0 0.0
    %2425 = vmatpush1.msra.mxu0 0.0
    %2426 = vmatprep.subr.mxu0 0.0
    %2427 = vmatpush1.msra.mxu0 0.0
    %2428 = vmatprep.subr.mxu0 0.0
    %2429 = vmatpush1.msra.mxu0 0.0
    %2430 = vmatprep.subr.mxu0 0.0
    %2431 = vmatpush1.msra.mxu0 0.0
    %2432 = vmatprep.subr.mxu0 0.0
    %2433 = vmatpush1.msra.mxu0 0.0
    %2434 = vmatprep.subr.mxu0 0.0
    %2435 = vmatpush1.msra.mxu0 0.0
    %2436 = vmatprep.subr.mxu0 0.0
    %2437 = vmatpush1.msra.mxu0 0.0
    %2438 = vmatprep.subr.mxu0 0.0
    %2439 = vmatpush1.msra.mxu0 0.0
    %2440 = vmatprep.subr.mxu0 0.0
    %2441 = vmatpush1.msra.mxu0 0.0
    %2442 = vmatprep.subr.mxu0 0.0
    %2443 = vmatpush1.msra.mxu0 0.0
    %2444 = vmatprep.subr.mxu0 0.0
    %2445 = vmatpush1.msra.mxu0 0.0
    %2446 = vmatprep.subr.mxu0 0.0
    %2447 = vmatpush1.msra.mxu0 0.0
    %2448 = vmatprep.subr.mxu0 0.0
    %2449 = vmatpush1.msra.mxu0 0.0
    %2450 = vmatprep.subr.mxu0 0.0
    %2451 = vmatpush1.msra.mxu0 0.0
    %2452 = vmatprep.subr.mxu0 0.0
    %2453 = vmatpush1.msra.mxu0 0.0
    %2454 = vmatprep.subr.mxu0 0.0
    %2455 = vmatpush1.msra.mxu0 0.0
    %2456 = vmatprep.subr.mxu0 0.0
    %2457 = vmatpush1.msra.mxu0 0.0
    %2458 = vmatprep.subr.mxu0 0.0
    %2459 = vmatpush1.msra.mxu0 0.0
    %2460 = vmatprep.subr.mxu0 0.0
    %2461 = vmatpush1.msra.mxu0 0.0
    %2462 = vmatprep.mubr.f32.mxu0 0.0
    %2463 = vmatmul.mubr.f32.gmra.mrb[0].mxu0 %v2234
    %v2464 = vpop.f32.mrb[0].mxu0
    %v2465 = vadd.f32 %v2144, %v2464
    %v2466 = vpop.f32.mrb[0].mxu0
    %2467 = vdwg.mxu0
    %v2469 = vrot.slane %v2465, 7
    %v2471 = vmul.f32 %v2385, %v2469
    %2473 = vrot.lane.b32.xlu0 %v2471, 64
    %v2474 = vpop.permute.xlu0 %2473
    %v2476 = vadd.f32 %v1943, %v2474
    %v2477 = vtanh.pop %v2476
    %v2478 = vsub.f32 1.0, %v2397
    %2480 = vrot.lane.b32.xlu0 %v2477, 96
    %v2481 = vpop.permute.xlu0 %2480
    %v2483 = vmul.f32 %v2478, %v2481
    %v2484 = vrot.slane %v2230, 7
    %v2486 = vmul.f32 %v2397, %v2484
    %v2487 = vadd.f32 %v2483, %v2486
    %v2489 = vrot.slane %v2487, 1
    %2490 = vrot.lane.b32.xlu0 %v2489, 96
    %v2491 = vpop.permute.xlu0 %2490
    %v2492 = vsel %vm250, %v2491, 0
    %2494 = vmatprep.subr.mxu0 0.0
    %2495 = vmatpush1.msra.mxu0 %v1949
    %2496 = vmatprep.subr.mxu0 0.0
    %2497 = vmatpush1.msra.mxu0 %v1951
    %2498 = vmatprep.subr.mxu0 0.0
    %2499 = vmatpush1.msra.mxu0 %v1953
    %2500 = vmatprep.subr.mxu0 0.0
    %2501 = vmatpush1.msra.mxu0 %v1955
    %2502 = vmatprep.subr.mxu0 0.0
    %2503 = vmatpush1.msra.mxu0 0.0
    %2504 = vmatprep.subr.mxu0 0.0
    %2505 = vmatpush1.msra.mxu0 0.0
    %2506 = vmatprep.subr.mxu0 0.0
    %2507 = vmatpush1.msra.mxu0 0.0
    %2508 = vmatprep.subr.mxu0 0.0
    %2509 = vmatpush1.msra.mxu0 0.0
    %2510 = vmatprep.subr.mxu0 0.0
    %2511 = vmatpush1.msra.mxu0 0.0
    %2512 = vmatprep.subr.mxu0 0.0
    %2513 = vmatpush1.msra.mxu0 0.0
    %2514 = vmatprep.subr.mxu0 0.0
    %2515 = vmatpush1.msra.mxu0 0.0
    %2516 = vmatprep.subr.mxu0 0.0
    %2517 = vmatpush1.msra.mxu0 0.0
    %2518 = vmatprep.subr.mxu0 0.0
    %2519 = vmatpush1.msra.mxu0 0.0
    %2520 = vmatprep.subr.mxu0 0.0
    %2521 = vmatpush1.msra.mxu0 0.0
    %2522 = vmatprep.subr.mxu0 0.0
    %2523 = vmatpush1.msra.mxu0 0.0
    %2524 = vmatprep.subr.mxu0 0.0
    %2525 = vmatpush1.msra.mxu0 0.0
    %2526 = vmatprep.subr.mxu0 0.0
    %2527 = vmatpush1.msra.mxu0 0.0
    %2528 = vmatprep.subr.mxu0 0.0
    %2529 = vmatpush1.msra.mxu0 0.0
    %2530 = vmatprep.subr.mxu0 0.0
    %2531 = vmatpush1.msra.mxu0 0.0
    %2532 = vmatprep.subr.mxu0 0.0
    %2533 = vmatpush1.msra.mxu0 0.0
    %2534 = vmatprep.subr.mxu0 0.0
    %2535 = vmatpush1.msra.mxu0 0.0
    %2536 = vmatprep.subr.mxu0 0.0
    %2537 = vmatpush1.msra.mxu0 0.0
    %2538 = vmatprep.subr.mxu0 0.0
    %2539 = vmatpush1.msra.mxu0 0.0
    %2540 = vmatprep.subr.mxu0 0.0
    %2541 = vmatpush1.msra.mxu0 0.0
    %2542 = vmatprep.subr.mxu0 0.0
    %2543 = vmatpush1.msra.mxu0 0.0
    %2544 = vmatprep.subr.mxu0 0.0
    %2545 = vmatpush1.msra.mxu0 0.0
    %2546 = vmatprep.subr.mxu0 0.0
    %2547 = vmatpush1.msra.mxu0 0.0
    %2548 = vmatprep.subr.mxu0 0.0
    %2549 = vmatpush1.msra.mxu0 0.0
    %2550 = vmatprep.subr.mxu0 0.0
    %2551 = vmatpush1.msra.mxu0 0.0
    %2552 = vmatprep.subr.mxu0 0.0
    %2553 = vmatpush1.msra.mxu0 0.0
    %2554 = vmatprep.subr.mxu0 0.0
    %2555 = vmatpush1.msra.mxu0 0.0
    %2556 = vmatprep.subr.mxu0 0.0
    %2557 = vmatpush1.msra.mxu0 0.0
    %2558 = vmatprep.mubr.f32.mxu0 0.0
    %2559 = vmatmul.mubr.f32.gmra.mrb[0].mxu0 %v2492
    %v2560 = vpop.f32.mrb[0].mxu0
    %v2561 = vadd.f32 0.0, %v2560
    %v2562 = vpop.f32.mrb[0].mxu0
    %2563 = vdwg.mxu0
    %2564 = vmatprep.subr.mxu0 0.0
    %2565 = vmatpush1.msra.mxu0 %v2031
    %2566 = vmatprep.subr.mxu0 0.0
    %2567 = vmatpush1.msra.mxu0 %v2033
    %2568 = vmatprep.subr.mxu0 0.0
    %2569 = vmatpush1.msra.mxu0 %v2035
    %2570 = vmatprep.subr.mxu0 0.0
    %2571 = vmatpush1.msra.mxu0 %v2037
    %2572 = vmatprep.subr.mxu0 0.0
    %2573 = vmatpush1.msra.mxu0 0.0
    %2574 = vmatprep.subr.mxu0 0.0
    %2575 = vmatpush1.msra.mxu0 0.0
    %2576 = vmatprep.subr.mxu0 0.0
    %2577 = vmatpush1.msra.mxu0 0.0
    %2578 = vmatprep.subr.mxu0 0.0
    %2579 = vmatpush1.msra.mxu0 0.0
    %2580 = vmatprep.subr.mxu0 0.0
    %2581 = vmatpush1.msra.mxu0 0.0
    %2582 = vmatprep.subr.mxu0 0.0
    %2583 = vmatpush1.msra.mxu0 0.0
    %2584 = vmatprep.subr.mxu0 0.0
    %2585 = vmatpush1.msra.mxu0 0.0
    %2586 = vmatprep.subr.mxu0 0.0
    %2587 = vmatpush1.msra.mxu0 0.0
    %2588 = vmatprep.subr.mxu0 0.0
    %2589 = vmatpush1.msra.mxu0 0.0
    %2590 = vmatprep.subr.mxu0 0.0
    %2591 = vmatpush1.msra.mxu0 0.0
    %2592 = vmatprep.subr.mxu0 0.0
    %2593 = vmatpush1.msra.mxu0 0.0
    %2594 = vmatprep.subr.mxu0 0.0
    %2595 = vmatpush1.msra.mxu0 0.0
    %2596 = vmatprep.subr.mxu0 0.0
    %2597 = vmatpush1.msra.mxu0 0.0
    %2598 = vmatprep.subr.mxu0 0.0
    %2599 = vmatpush1.msra.mxu0 0.0
    %2600 = vmatprep.subr.mxu0 0.0
    %2601 = vmatpush1.msra.mxu0 0.0
    %2602 = vmatprep.subr.mxu0 0.0
    %2603 = vmatpush1.msra.mxu0 0.0
    %2604 = vmatprep.subr.mxu0 0.0
    %2605 = vmatpush1.msra.mxu0 0.0
    %2606 = vmatprep.subr.mxu0 0.0
    %2607 = vmatpush1.msra.mxu0 0.0
    %2608 = vmatprep.subr.mxu0 0.0
    %2609 = vmatpush1.msra.mxu0 0.0
    %2610 = vmatprep.subr.mxu0 0.0
    %2611 = vmatpush1.msra.mxu0 0.0
    %2612 = vmatprep.subr.mxu0 0.0
    %2613 = vmatpush1.msra.mxu0 0.0
    %2614 = vmatprep.subr.mxu0 0.0
    %2615 = vmatpush1.msra.mxu0 0.0
    %2616 = vmatprep.subr.mxu0 0.0
    %2617 = vmatpush1.msra.mxu0 0.0
    %2618 = vmatprep.subr.mxu0 0.0
    %2619 = vmatpush1.msra.mxu0 0.0
    %2620 = vmatprep.subr.mxu0 0.0
    %2621 = vmatpush1.msra.mxu0 0.0
    %2622 = vmatprep.subr.mxu0 0.0
    %2623 = vmatpush1.msra.mxu0 0.0
    %2624 = vmatprep.subr.mxu0 0.0
    %2625 = vmatpush1.msra.mxu0 0.0
    %2626 = vmatprep.subr.mxu0 0.0
    %2627 = vmatpush1.msra.mxu0 0.0
    %2628 = vmatprep.mubr.f32.mxu0 0.0
    %2629 = vmatmul.mubr.f32.gmra.mrb[0].mxu0 %v2492
    %v2630 = vpop.f32.mrb[0].mxu0
    %v2631 = vadd.f32 0.0, %v2630
    %v2632 = vpop.f32.mrb[0].mxu0
    %2633 = vdwg.mxu0
    %v2635 = vrot.slane %v2561, 6
    %v2637 = vadd.f32 %v1943, %v2635
    %v2638 = vxor.u32 %v2637, 2147483648
    %v2639 = vmul.f32 %v2638, 1.442695
    %v2640 = vpow.pop %v2639
    %v2641 = vadd.f32 %v2640, 1.0
    %v2642 = vrcp.pop %v2641
    %v2643 = vmul.f32 1.0, %v2642
    %v2645 = vrot.slane %v2631, 6
    %2646 = vrot.lane.b32.xlu0 %v2645, 32
    %v2647 = vpop.permute.xlu0 %2646
    %v2649 = vadd.f32 %v1943, %v2647
    %v2650 = vxor.u32 %v2649, 2147483648
    %v2651 = vmul.f32 %v2650, 1.442695
    %v2652 = vpow.pop %v2651
    %v2653 = vadd.f32 %v2652, 1.0
    %v2654 = vrcp.pop %v2653
    %v2655 = vmul.f32 1.0, %v2654
    %2656 = vmatprep.subr.mxu0 0.0
    %2657 = vmatpush1.msra.mxu0 %v2131
    %2658 = vmatprep.subr.mxu0 0.0
    %2659 = vmatpush1.msra.mxu0 %v2133
    %2660 = vmatprep.subr.mxu0 0.0
    %2661 = vmatpush1.msra.mxu0 %v2135
    %2662 = vmatprep.subr.mxu0 0.0
    %2663 = vmatpush1.msra.mxu0 %v2137
    %2664 = vmatprep.subr.mxu0 0.0
    %2665 = vmatpush1.msra.mxu0 0.0
    %2666 = vmatprep.subr.mxu0 0.0
    %2667 = vmatpush1.msra.mxu0 0.0
    %2668 = vmatprep.subr.mxu0 0.0
    %2669 = vmatpush1.msra.mxu0 0.0
    %2670 = vmatprep.subr.mxu0 0.0
    %2671 = vmatpush1.msra.mxu0 0.0
    %2672 = vmatprep.subr.mxu0 0.0
    %2673 = vmatpush1.msra.mxu0 0.0
    %2674 = vmatprep.subr.mxu0 0.0
    %2675 = vmatpush1.msra.mxu0 0.0
    %2676 = vmatprep.subr.mxu0 0.0
    %2677 = vmatpush1.msra.mxu0 0.0
    %2678 = vmatprep.subr.mxu0 0.0
    %2679 = vmatpush1.msra.mxu0 0.0
    %2680 = vmatprep.subr.mxu0 0.0
    %2681 = vmatpush1.msra.mxu0 0.0
    %2682 = vmatprep.subr.mxu0 0.0
    %2683 = vmatpush1.msra.mxu0 0.0
    %2684 = vmatprep.subr.mxu0 0.0
    %2685 = vmatpush1.msra.mxu0 0.0
    %2686 = vmatprep.subr.mxu0 0.0
    %2687 = vmatpush1.msra.mxu0 0.0
    %2688 = vmatprep.subr.mxu0 0.0
    %2689 = vmatpush1.msra.mxu0 0.0
    %2690 = vmatprep.subr.mxu0 0.0
    %2691 = vmatpush1.msra.mxu0 0.0
    %2692 = vmatprep.subr.mxu0 0.0
    %2693 = vmatpush1.msra.mxu0 0.0
    %2694 = vmatprep.subr.mxu0 0.0
    %2695 = vmatpush1.msra.mxu0 0.0
    %2696 = vmatprep.subr.mxu0 0.0
    %2697 = vmatpush1.msra.mxu0 0.0
    %2698 = vmatprep.subr.mxu0 0.0
    %2699 = vmatpush1.msra.mxu0 0.0
    %2700 = vmatprep.subr.mxu0 0.0
    %2701 = vmatpush1.msra.mxu0 0.0
    %2702 = vmatprep.subr.mxu0 0.0
    %2703 = vmatpush1.msra.mxu0 0.0
    %2704 = vmatprep.subr.mxu0 0.0
    %2705 = vmatpush1.msra.mxu0 0.0
    %2706 = vmatprep.subr.mxu0 0.0
    %2707 = vmatpush1.msra.mxu0 0.0
    %2708 = vmatprep.subr.mxu0 0.0
    %2709 = vmatpush1.msra.mxu0 0.0
    %2710 = vmatprep.subr.mxu0 0.0
    %2711 = vmatpush1.msra.mxu0 0.0
    %2712 = vmatprep.subr.mxu0 0.0
    %2713 = vmatpush1.msra.mxu0 0.0
    %2714 = vmatprep.subr.mxu0 0.0
    %2715 = vmatpush1.msra.mxu0 0.0
    %2716 = vmatprep.subr.mxu0 0.0
    %2717 = vmatpush1.msra.mxu0 0.0
    %2718 = vmatprep.subr.mxu0 0.0
    %2719 = vmatpush1.msra.mxu0 0.0
    %2720 = vmatprep.mubr.f32.mxu0 0.0
    %2721 = vmatmul.mubr.f32.gmra.mrb[0].mxu0 %v2492
    %v2722 = vpop.f32.mrb[0].mxu0
    %v2723 = vadd.f32 %v2144, %v2722
    %v2724 = vpop.f32.mrb[0].mxu0
    %2725 = vdwg.mxu0
    %v2727 = vrot.slane %v2723, 6
    %v2729 = vmul.f32 %v2643, %v2727
    %2731 = vrot.lane.b32.xlu0 %v2729, 64
    %v2732 = vpop.permute.xlu0 %2731
    %v2734 = vadd.f32 %v1943, %v2732
    %v2735 = vtanh.pop %v2734
    %v2736 = vsub.f32 1.0, %v2655
    %2738 = vrot.lane.b32.xlu0 %v2735, 96
    %v2739 = vpop.permute.xlu0 %2738
    %v2741 = vmul.f32 %v2736, %v2739
    %v2742 = vrot.slane %v2487, 7
    %v2744 = vmul.f32 %v2655, %v2742
    %v2745 = vadd.f32 %v2741, %v2744
    %v2747 = vrot.slane %v2745, 2
    %2748 = vrot.lane.b32.xlu0 %v2747, 96
    %v2749 = vpop.permute.xlu0 %2748
    %v2750 = vsel %vm250, %v2749, 0
    %2752 = vmatprep.subr.mxu0 0.0
    %2753 = vmatpush1.msra.mxu0 %v1949
    %2754 = vmatprep.subr.mxu0 0.0
    %2755 = vmatpush1.msra.mxu0 %v1951
    %2756 = vmatprep.subr.mxu0 0.0
    %2757 = vmatpush1.msra.mxu0 %v1953
    %2758 = vmatprep.subr.mxu0 0.0
    %2759 = vmatpush1.msra.mxu0 %v1955
    %2760 = vmatprep.subr.mxu0 0.0
    %2761 = vmatpush1.msra.mxu0 0.0
    %2762 = vmatprep.subr.mxu0 0.0
    %2763 = vmatpush1.msra.mxu0 0.0
    %2764 = vmatprep.subr.mxu0 0.0
    %2765 = vmatpush1.msra.mxu0 0.0
    %2766 = vmatprep.subr.mxu0 0.0
    %2767 = vmatpush1.msra.mxu0 0.0
    %2768 = vmatprep.subr.mxu0 0.0
    %2769 = vmatpush1.msra.mxu0 0.0
    %2770 = vmatprep.subr.mxu0 0.0
    %2771 = vmatpush1.msra.mxu0 0.0
    %2772 = vmatprep.subr.mxu0 0.0
    %2773 = vmatpush1.msra.mxu0 0.0
    %2774 = vmatprep.subr.mxu0 0.0
    %2775 = vmatpush1.msra.mxu0 0.0
    %2776 = vmatprep.subr.mxu0 0.0
    %2777 = vmatpush1.msra.mxu0 0.0
    %2778 = vmatprep.subr.mxu0 0.0
    %2779 = vmatpush1.msra.mxu0 0.0
    %2780 = vmatprep.subr.mxu0 0.0
    %2781 = vmatpush1.msra.mxu0 0.0
    %2782 = vmatprep.subr.mxu0 0.0
    %2783 = vmatpush1.msra.mxu0 0.0
    %2784 = vmatprep.subr.mxu0 0.0
    %2785 = vmatpush1.msra.mxu0 0.0
    %2786 = vmatprep.subr.mxu0 0.0
    %2787 = vmatpush1.msra.mxu0 0.0
    %2788 = vmatprep.subr.mxu0 0.0
    %2789 = vmatpush1.msra.mxu0 0.0
    %2790 = vmatprep.subr.mxu0 0.0
    %2791 = vmatpush1.msra.mxu0 0.0
    %2792 = vmatprep.subr.mxu0 0.0
    %2793 = vmatpush1.msra.mxu0 0.0
    %2794 = vmatprep.subr.mxu0 0.0
    %2795 = vmatpush1.msra.mxu0 0.0
    %2796 = vmatprep.subr.mxu0 0.0
    %2797 = vmatpush1.msra.mxu0 0.0
    %2798 = vmatprep.subr.mxu0 0.0
    %2799 = vmatpush1.msra.mxu0 0.0
    %2800 = vmatprep.subr.mxu0 0.0
    %2801 = vmatpush1.msra.mxu0 0.0
    %2802 = vmatprep.subr.mxu0 0.0
    %2803 = vmatpush1.msra.mxu0 0.0
    %2804 = vmatprep.subr.mxu0 0.0
    %2805 = vmatpush1.msra.mxu0 0.0
    %2806 = vmatprep.subr.mxu0 0.0
    %2807 = vmatpush1.msra.mxu0 0.0
    %2808 = vmatprep.subr.mxu0 0.0
    %2809 = vmatpush1.msra.mxu0 0.0
    %2810 = vmatprep.subr.mxu0 0.0
    %2811 = vmatpush1.msra.mxu0 0.0
    %2812 = vmatprep.subr.mxu0 0.0
    %2813 = vmatpush1.msra.mxu0 0.0
    %2814 = vmatprep.subr.mxu0 0.0
    %2815 = vmatpush1.msra.mxu0 0.0
    %2816 = vmatprep.mubr.f32.mxu0 0.0
    %2817 = vmatmul.mubr.f32.gmra.mrb[0].mxu0 %v2750
    %v2818 = vpop.f32.mrb[0].mxu0
    %v2819 = vadd.f32 0.0, %v2818
    %v2820 = vpop.f32.mrb[0].mxu0
    %2821 = vdwg.mxu0
    %2822 = vmatprep.subr.mxu0 0.0
    %2823 = vmatpush1.msra.mxu0 %v2031
    %2824 = vmatprep.subr.mxu0 0.0
    %2825 = vmatpush1.msra.mxu0 %v2033
    %2826 = vmatprep.subr.mxu0 0.0
    %2827 = vmatpush1.msra.mxu0 %v2035
    %2828 = vmatprep.subr.mxu0 0.0
    %2829 = vmatpush1.msra.mxu0 %v2037
    %2830 = vmatprep.subr.mxu0 0.0
    %2831 = vmatpush1.msra.mxu0 0.0
    %2832 = vmatprep.subr.mxu0 0.0
    %2833 = vmatpush1.msra.mxu0 0.0
    %2834 = vmatprep.subr.mxu0 0.0
    %2835 = vmatpush1.msra.mxu0 0.0
    %2836 = vmatprep.subr.mxu0 0.0
    %2837 = vmatpush1.msra.mxu0 0.0
    %2838 = vmatprep.subr.mxu0 0.0
    %2839 = vmatpush1.msra.mxu0 0.0
    %2840 = vmatprep.subr.mxu0 0.0
    %2841 = vmatpush1.msra.mxu0 0.0
    %2842 = vmatprep.subr.mxu0 0.0
    %2843 = vmatpush1.msra.mxu0 0.0
    %2844 = vmatprep.subr.mxu0 0.0
    %2845 = vmatpush1.msra.mxu0 0.0
    %2846 = vmatprep.subr.mxu0 0.0
    %2847 = vmatpush1.msra.mxu0 0.0
    %2848 = vmatprep.subr.mxu0 0.0
    %2849 = vmatpush1.msra.mxu0 0.0
    %2850 = vmatprep.subr.mxu0 0.0
    %2851 = vmatpush1.msra.mxu0 0.0
    %2852 = vmatprep.subr.mxu0 0.0
    %2853 = vmatpush1.msra.mxu0 0.0
    %2854 = vmatprep.subr.mxu0 0.0
    %2855 = vmatpush1.msra.mxu0 0.0
    %2856 = vmatprep.subr.mxu0 0.0
    %2857 = vmatpush1.msra.mxu0 0.0
    %2858 = vmatprep.subr.mxu0 0.0
    %2859 = vmatpush1.msra.mxu0 0.0
    %2860 = vmatprep.subr.mxu0 0.0
    %2861 = vmatpush1.msra.mxu0 0.0
    %2862 = vmatprep.subr.mxu0 0.0
    %2863 = vmatpush1.msra.mxu0 0.0
    %2864 = vmatprep.subr.mxu0 0.0
    %2865 = vmatpush1.msra.mxu0 0.0
    %2866 = vmatprep.subr.mxu0 0.0
    %2867 = vmatpush1.msra.mxu0 0.0
    %2868 = vmatprep.subr.mxu0 0.0
    %2869 = vmatpush1.msra.mxu0 0.0
    %2870 = vmatprep.subr.mxu0 0.0
    %2871 = vmatpush1.msra.mxu0 0.0
    %2872 = vmatprep.subr.mxu0 0.0
    %2873 = vmatpush1.msra.mxu0 0.0
    %2874 = vmatprep.subr.mxu0 0.0
    %2875 = vmatpush1.msra.mxu0 0.0
    %2876 = vmatprep.subr.mxu0 0.0
    %2877 = vmatpush1.msra.mxu0 0.0
    %2878 = vmatprep.subr.mxu0 0.0
    %2879 = vmatpush1.msra.mxu0 0.0
    %2880 = vmatprep.subr.mxu0 0.0
    %2881 = vmatpush1.msra.mxu0 0.0
    %2882 = vmatprep.subr.mxu0 0.0
    %2883 = vmatpush1.msra.mxu0 0.0
    %2884 = vmatprep.subr.mxu0 0.0
    %2885 = vmatpush1.msra.mxu0 0.0
    %2886 = vmatprep.mubr.f32.mxu0 0.0
    %2887 = vmatmul.mubr.f32.gmra.mrb[0].mxu0 %v2750
    %v2888 = vpop.f32.mrb[0].mxu0
    %v2889 = vadd.f32 0.0, %v2888
    %v2890 = vpop.f32.mrb[0].mxu0
    %2891 = vdwg.mxu0
    %v2893 = vrot.slane %v2819, 5
    %v2895 = vadd.f32 %v1943, %v2893
    %v2896 = vxor.u32 %v2895, 2147483648
    %v2897 = vmul.f32 %v2896, 1.442695
    %v2898 = vpow.pop %v2897
    %v2899 = vadd.f32 %v2898, 1.0
    %v2900 = vrcp.pop %v2899
    %v2901 = vmul.f32 1.0, %v2900
    %v2903 = vrot.slane %v2889, 5
    %2904 = vrot.lane.b32.xlu0 %v2903, 32
    %v2905 = vpop.permute.xlu0 %2904
    %v2907 = vadd.f32 %v1943, %v2905
    %v2908 = vxor.u32 %v2907, 2147483648
    %v2909 = vmul.f32 %v2908, 1.442695
    %v2910 = vpow.pop %v2909
    %v2911 = vadd.f32 %v2910, 1.0
    %v2912 = vrcp.pop %v2911
    %v2913 = vmul.f32 1.0, %v2912
    %2914 = vmatprep.subr.mxu0 0.0
    %2915 = vmatpush1.msra.mxu0 %v2131
    %2916 = vmatprep.subr.mxu0 0.0
    %2917 = vmatpush1.msra.mxu0 %v2133
    %2918 = vmatprep.subr.mxu0 0.0
    %2919 = vmatpush1.msra.mxu0 %v2135
    %2920 = vmatprep.subr.mxu0 0.0
    %2921 = vmatpush1.msra.mxu0 %v2137
    %2922 = vmatprep.subr.mxu0 0.0
    %2923 = vmatpush1.msra.mxu0 0.0
    %2924 = vmatprep.subr.mxu0 0.0
    %2925 = vmatpush1.msra.mxu0 0.0
    %2926 = vmatprep.subr.mxu0 0.0
    %2927 = vmatpush1.msra.mxu0 0.0
    %2928 = vmatprep.subr.mxu0 0.0
    %2929 = vmatpush1.msra.mxu0 0.0
    %2930 = vmatprep.subr.mxu0 0.0
    %2931 = vmatpush1.msra.mxu0 0.0
    %2932 = vmatprep.subr.mxu0 0.0
    %2933 = vmatpush1.msra.mxu0 0.0
    %2934 = vmatprep.subr.mxu0 0.0
    %2935 = vmatpush1.msra.mxu0 0.0
    %2936 = vmatprep.subr.mxu0 0.0
    %2937 = vmatpush1.msra.mxu0 0.0
    %2938 = vmatprep.subr.mxu0 0.0
    %2939 = vmatpush1.msra.mxu0 0.0
    %2940 = vmatprep.subr.mxu0 0.0
    %2941 = vmatpush1.msra.mxu0 0.0
    %2942 = vmatprep.subr.mxu0 0.0
    %2943 = vmatpush1.msra.mxu0 0.0
    %2944 = vmatprep.subr.mxu0 0.0
    %2945 = vmatpush1.msra.mxu0 0.0
    %2946 = vmatprep.subr.mxu0 0.0
    %2947 = vmatpush1.msra.mxu0 0.0
    %2948 = vmatprep.subr.mxu0 0.0
    %2949 = vmatpush1.msra.mxu0 0.0
    %2950 = vmatprep.subr.mxu0 0.0
    %2951 = vmatpush1.msra.mxu0 0.0
    %2952 = vmatprep.subr.mxu0 0.0
    %2953 = vmatpush1.msra.mxu0 0.0
    %2954 = vmatprep.subr.mxu0 0.0
    %2955 = vmatpush1.msra.mxu0 0.0
    %2956 = vmatprep.subr.mxu0 0.0
    %2957 = vmatpush1.msra.mxu0 0.0
    %2958 = vmatprep.subr.mxu0 0.0
    %2959 = vmatpush1.msra.mxu0 0.0
    %2960 = vmatprep.subr.mxu0 0.0
    %2961 = vmatpush1.msra.mxu0 0.0
    %2962 = vmatprep.subr.mxu0 0.0
    %2963 = vmatpush1.msra.mxu0 0.0
    %2964 = vmatprep.subr.mxu0 0.0
    %2965 = vmatpush1.msra.mxu0 0.0
    %2966 = vmatprep.subr.mxu0 0.0
    %2967 = vmatpush1.msra.mxu0 0.0
    %2968 = vmatprep.subr.mxu0 0.0
    %2969 = vmatpush1.msra.mxu0 0.0
    %2970 = vmatprep.subr.mxu0 0.0
    %2971 = vmatpush1.msra.mxu0 0.0
    %2972 = vmatprep.subr.mxu0 0.0
    %2973 = vmatpush1.msra.mxu0 0.0
    %2974 = vmatprep.subr.mxu0 0.0
    %2975 = vmatpush1.msra.mxu0 0.0
    %2976 = vmatprep.subr.mxu0 0.0
    %2977 = vmatpush1.msra.mxu0 0.0
    %2978 = vmatprep.mubr.f32.mxu0 0.0
    %2979 = vmatmul.mubr.f32.gmra.mrb[0].mxu0 %v2750
    %v2980 = vpop.f32.mrb[0].mxu0
    %v2981 = vadd.f32 %v2144, %v2980
    %v2982 = vpop.f32.mrb[0].mxu0
    %2983 = vdwg.mxu0
    %v2985 = vrot.slane %v2981, 5
    %v2987 = vmul.f32 %v2901, %v2985
    %2989 = vrot.lane.b32.xlu0 %v2987, 64
    %v2990 = vpop.permute.xlu0 %2989
    %v2992 = vadd.f32 %v1943, %v2990
    %v2993 = vtanh.pop %v2992
    %v2994 = vsub.f32 1.0, %v2913
    %2996 = vrot.lane.b32.xlu0 %v2993, 96
    %v2997 = vpop.permute.xlu0 %2996
    %v2999 = vmul.f32 %v2994, %v2997
    %v3000 = vrot.slane %v2745, 7
    %v3002 = vmul.f32 %v2913, %v3000
    %v3003 = vadd.f32 %v2999, %v3002
    %v3005 = vrot.slane %v3003, 3
    %3006 = vrot.lane.b32.xlu0 %v3005, 96
    %v3007 = vpop.permute.xlu0 %3006
    %v3008 = vsel %vm250, %v3007, 0
    %3010 = vmatprep.subr.mxu0 0.0
    %3011 = vmatpush1.msra.mxu0 %v1949
    %3012 = vmatprep.subr.mxu0 0.0
    %3013 = vmatpush1.msra.mxu0 %v1951
    %3014 = vmatprep.subr.mxu0 0.0
    %3015 = vmatpush1.msra.mxu0 %v1953
    %3016 = vmatprep.subr.mxu0 0.0
    %3017 = vmatpush1.msra.mxu0 %v1955
    %3018 = vmatprep.subr.mxu0 0.0
    %3019 = vmatpush1.msra.mxu0 0.0
    %3020 = vmatprep.subr.mxu0 0.0
    %3021 = vmatpush1.msra.mxu0 0.0
    %3022 = vmatprep.subr.mxu0 0.0
    %3023 = vmatpush1.msra.mxu0 0.0
    %3024 = vmatprep.subr.mxu0 0.0
    %3025 = vmatpush1.msra.mxu0 0.0
    %3026 = vmatprep.subr.mxu0 0.0
    %3027 = vmatpush1.msra.mxu0 0.0
    %3028 = vmatprep.subr.mxu0 0.0
    %3029 = vmatpush1.msra.mxu0 0.0
    %3030 = vmatprep.subr.mxu0 0.0
    %3031 = vmatpush1.msra.mxu0 0.0
    %3032 = vmatprep.subr.mxu0 0.0
    %3033 = vmatpush1.msra.mxu0 0.0
    %3034 = vmatprep.subr.mxu0 0.0
    %3035 = vmatpush1.msra.mxu0 0.0
    %3036 = vmatprep.subr.mxu0 0.0
    %3037 = vmatpush1.msra.mxu0 0.0
    %3038 = vmatprep.subr.mxu0 0.0
    %3039 = vmatpush1.msra.mxu0 0.0
    %3040 = vmatprep.subr.mxu0 0.0
    %3041 = vmatpush1.msra.mxu0 0.0
    %3042 = vmatprep.subr.mxu0 0.0
    %3043 = vmatpush1.msra.mxu0 0.0
    %3044 = vmatprep.subr.mxu0 0.0
    %3045 = vmatpush1.msra.mxu0 0.0
    %3046 = vmatprep.subr.mxu0 0.0
    %3047 = vmatpush1.msra.mxu0 0.0
    %3048 = vmatprep.subr.mxu0 0.0
    %3049 = vmatpush1.msra.mxu0 0.0
    %3050 = vmatprep.subr.mxu0 0.0
    %3051 = vmatpush1.msra.mxu0 0.0
    %3052 = vmatprep.subr.mxu0 0.0
    %3053 = vmatpush1.msra.mxu0 0.0
    %3054 = vmatprep.subr.mxu0 0.0
    %3055 = vmatpush1.msra.mxu0 0.0
    %3056 = vmatprep.subr.mxu0 0.0
    %3057 = vmatpush1.msra.mxu0 0.0
    %3058 = vmatprep.subr.mxu0 0.0
    %3059 = vmatpush1.msra.mxu0 0.0
    %3060 = vmatprep.subr.mxu0 0.0
    %3061 = vmatpush1.msra.mxu0 0.0
    %3062 = vmatprep.subr.mxu0 0.0
    %3063 = vmatpush1.msra.mxu0 0.0
    %3064 = vmatprep.subr.mxu0 0.0
    %3065 = vmatpush1.msra.mxu0 0.0
    %3066 = vmatprep.subr.mxu0 0.0
    %3067 = vmatpush1.msra.mxu0 0.0
    %3068 = vmatprep.subr.mxu0 0.0
    %3069 = vmatpush1.msra.mxu0 0.0
    %3070 = vmatprep.subr.mxu0 0.0
    %3071 = vmatpush1.msra.mxu0 0.0
    %3072 = vmatprep.subr.mxu0 0.0
    %3073 = vmatpush1.msra.mxu0 0.0
    %3074 = vmatprep.mubr.f32.mxu0 0.0
    %3075 = vmatmul.mubr.f32.gmra.mrb[0].mxu0 %v3008
    %v3076 = vpop.f32.mrb[0].mxu0
    %v3077 = vadd.f32 0.0, %v3076
    %v3078 = vpop.f32.mrb[0].mxu0
    %3079 = vdwg.mxu0
    %3080 = vmatprep.subr.mxu0 0.0
    %3081 = vmatpush1.msra.mxu0 %v2031
    %3082 = vmatprep.subr.mxu0 0.0
    %3083 = vmatpush1.msra.mxu0 %v2033
    %3084 = vmatprep.subr.mxu0 0.0
    %3085 = vmatpush1.msra.mxu0 %v2035
    %3086 = vmatprep.subr.mxu0 0.0
    %3087 = vmatpush1.msra.mxu0 %v2037
    %3088 = vmatprep.subr.mxu0 0.0
    %3089 = vmatpush1.msra.mxu0 0.0
    %3090 = vmatprep.subr.mxu0 0.0
    %3091 = vmatpush1.msra.mxu0 0.0
    %3092 = vmatprep.subr.mxu0 0.0
    %3093 = vmatpush1.msra.mxu0 0.0
    %3094 = vmatprep.subr.mxu0 0.0
    %3095 = vmatpush1.msra.mxu0 0.0
    %3096 = vmatprep.subr.mxu0 0.0
    %3097 = vmatpush1.msra.mxu0 0.0
    %3098 = vmatprep.subr.mxu0 0.0
    %3099 = vmatpush1.msra.mxu0 0.0
    %3100 = vmatprep.subr.mxu0 0.0
    %3101 = vmatpush1.msra.mxu0 0.0
    %3102 = vmatprep.subr.mxu0 0.0
    %3103 = vmatpush1.msra.mxu0 0.0
    %3104 = vmatprep.subr.mxu0 0.0
    %3105 = vmatpush1.msra.mxu0 0.0
    %3106 = vmatprep.subr.mxu0 0.0
    %3107 = vmatpush1.msra.mxu0 0.0
    %3108 = vmatprep.subr.mxu0 0.0
    %3109 = vmatpush1.msra.mxu0 0.0
    %3110 = vmatprep.subr.mxu0 0.0
    %3111 = vmatpush1.msra.mxu0 0.0
    %3112 = vmatprep.subr.mxu0 0.0
    %3113 = vmatpush1.msra.mxu0 0.0
    %3114 = vmatprep.subr.mxu0 0.0
    %3115 = vmatpush1.msra.mxu0 0.0
    %3116 = vmatprep.subr.mxu0 0.0
    %3117 = vmatpush1.msra.mxu0 0.0
    %3118 = vmatprep.subr.mxu0 0.0
    %3119 = vmatpush1.msra.mxu0 0.0
    %3120 = vmatprep.subr.mxu0 0.0
    %3121 = vmatpush1.msra.mxu0 0.0
    %3122 = vmatprep.subr.mxu0 0.0
    %3123 = vmatpush1.msra.mxu0 0.0
    %3124 = vmatprep.subr.mxu0 0.0
    %3125 = vmatpush1.msra.mxu0 0.0
    %3126 = vmatprep.subr.mxu0 0.0
    %3127 = vmatpush1.msra.mxu0 0.0
    %3128 = vmatprep.subr.mxu0 0.0
    %3129 = vmatpush1.msra.mxu0 0.0
    %3130 = vmatprep.subr.mxu0 0.0
    %3131 = vmatpush1.msra.mxu0 0.0
    %3132 = vmatprep.subr.mxu0 0.0
    %3133 = vmatpush1.msra.mxu0 0.0
    %3134 = vmatprep.subr.mxu0 0.0
    %3135 = vmatpush1.msra.mxu0 0.0
    %3136 = vmatprep.subr.mxu0 0.0
    %3137 = vmatpush1.msra.mxu0 0.0
    %3138 = vmatprep.subr.mxu0 0.0
    %3139 = vmatpush1.msra.mxu0 0.0
    %3140 = vmatprep.subr.mxu0 0.0
    %3141 = vmatpush1.msra.mxu0 0.0
    %3142 = vmatprep.subr.mxu0 0.0
    %3143 = vmatpush1.msra.mxu0 0.0
    %3144 = vmatprep.mubr.f32.mxu0 0.0
    %3145 = vmatmul.mubr.f32.gmra.mrb[0].mxu0 %v3008
    %v3146 = vpop.f32.mrb[0].mxu0
    %v3147 = vadd.f32 0.0, %v3146
    %v3148 = vpop.f32.mrb[0].mxu0
    %3149 = vdwg.mxu0
    %v3151 = vrot.slane %v3077, 4
    %v3153 = vadd.f32 %v1943, %v3151
    %v3154 = vxor.u32 %v3153, 2147483648
    %v3155 = vmul.f32 %v3154, 1.442695
    %v3156 = vpow.pop %v3155
    %v3157 = vadd.f32 %v3156, 1.0
    %v3158 = vrcp.pop %v3157
    %v3159 = vmul.f32 1.0, %v3158
    %v3161 = vrot.slane %v3147, 4
    %3162 = vrot.lane.b32.xlu0 %v3161, 32
    %v3163 = vpop.permute.xlu0 %3162
    %v3165 = vadd.f32 %v1943, %v3163
    %v3166 = vxor.u32 %v3165, 2147483648
    %v3167 = vmul.f32 %v3166, 1.442695
    %v3168 = vpow.pop %v3167
    %v3169 = vadd.f32 %v3168, 1.0
    %v3170 = vrcp.pop %v3169
    %v3171 = vmul.f32 1.0, %v3170
    %3172 = vmatprep.subr.mxu0 0.0
    %3173 = vmatpush1.msra.mxu0 %v2131
    %3174 = vmatprep.subr.mxu0 0.0
    %3175 = vmatpush1.msra.mxu0 %v2133
    %3176 = vmatprep.subr.mxu0 0.0
    %3177 = vmatpush1.msra.mxu0 %v2135
    %3178 = vmatprep.subr.mxu0 0.0
    %3179 = vmatpush1.msra.mxu0 %v2137
    %3180 = vmatprep.subr.mxu0 0.0
    %3181 = vmatpush1.msra.mxu0 0.0
    %3182 = vmatprep.subr.mxu0 0.0
    %3183 = vmatpush1.msra.mxu0 0.0
    %3184 = vmatprep.subr.mxu0 0.0
    %3185 = vmatpush1.msra.mxu0 0.0
    %3186 = vmatprep.subr.mxu0 0.0
    %3187 = vmatpush1.msra.mxu0 0.0
    %3188 = vmatprep.subr.mxu0 0.0
    %3189 = vmatpush1.msra.mxu0 0.0
    %3190 = vmatprep.subr.mxu0 0.0
    %3191 = vmatpush1.msra.mxu0 0.0
    %3192 = vmatprep.subr.mxu0 0.0
    %3193 = vmatpush1.msra.mxu0 0.0
    %3194 = vmatprep.subr.mxu0 0.0
    %3195 = vmatpush1.msra.mxu0 0.0
    %3196 = vmatprep.subr.mxu0 0.0
    %3197 = vmatpush1.msra.mxu0 0.0
    %3198 = vmatprep.subr.mxu0 0.0
    %3199 = vmatpush1.msra.mxu0 0.0
    %3200 = vmatprep.subr.mxu0 0.0
    %3201 = vmatpush1.msra.mxu0 0.0
    %3202 = vmatprep.subr.mxu0 0.0
    %3203 = vmatpush1.msra.mxu0 0.0
    %3204 = vmatprep.subr.mxu0 0.0
    %3205 = vmatpush1.msra.mxu0 0.0
    %3206 = vmatprep.subr.mxu0 0.0
    %3207 = vmatpush1.msra.mxu0 0.0
    %3208 = vmatprep.subr.mxu0 0.0
    %3209 = vmatpush1.msra.mxu0 0.0
    %3210 = vmatprep.subr.mxu0 0.0
    %3211 = vmatpush1.msra.mxu0 0.0
    %3212 = vmatprep.subr.mxu0 0.0
    %3213 = vmatpush1.msra.mxu0 0.0
    %3214 = vmatprep.subr.mxu0 0.0
    %3215 = vmatpush1.msra.mxu0 0.0
    %3216 = vmatprep.subr.mxu0 0.0
    %3217 = vmatpush1.msra.mxu0 0.0
    %3218 = vmatprep.subr.mxu0 0.0
    %3219 = vmatpush1.msra.mxu0 0.0
    %3220 = vmatprep.subr.mxu0 0.0
    %3221 = vmatpush1.msra.mxu0 0.0
    %3222 = vmatprep.subr.mxu0 0.0
    %3223 = vmatpush1.msra.mxu0 0.0
    %3224 = vmatprep.subr.mxu0 0.0
    %3225 = vmatpush1.msra.mxu0 0.0
    %3226 = vmatprep.subr.mxu0 0.0
    %3227 = vmatpush1.msra.mxu0 0.0
    %3228 = vmatprep.subr.mxu0 0.0
    %3229 = vmatpush1.msra.mxu0 0.0
    %3230 = vmatprep.subr.mxu0 0.0
    %3231 = vmatpush1.msra.mxu0 0.0
    %3232 = vmatprep.subr.mxu0 0.0
    %3233 = vmatpush1.msra.mxu0 0.0
    %3234 = vmatprep.subr.mxu0 0.0
    %3235 = vmatpush1.msra.mxu0 0.0
    %3236 = vmatprep.mubr.f32.mxu0 0.0
    %3237 = vmatmul.mubr.f32.gmra.mrb[0].mxu0 %v3008
    %v3238 = vpop.f32.mrb[0].mxu0
    %v3239 = vadd.f32 %v2144, %v3238
    %v3240 = vpop.f32.mrb[0].mxu0
    %3241 = vdwg.mxu0
    %v3243 = vrot.slane %v3239, 4
    %v3245 = vmul.f32 %v3159, %v3243
    %3247 = vrot.lane.b32.xlu0 %v3245, 64
    %v3248 = vpop.permute.xlu0 %3247
    %v3250 = vadd.f32 %v1943, %v3248
    %v3251 = vtanh.pop %v3250
    %v3252 = vsub.f32 1.0, %v3171
    %3254 = vrot.lane.b32.xlu0 %v3251, 96
    %v3255 = vpop.permute.xlu0 %3254
    %v3257 = vmul.f32 %v3252, %v3255
    %v3258 = vrot.slane %v3003, 7
    %v3260 = vmul.f32 %v3171, %v3258
    %v3261 = vadd.f32 %v3257, %v3260
    %v3263 = vrot.slane %v3261, 4
    %3264 = vrot.lane.b32.xlu0 %v3263, 96
    %v3265 = vpop.permute.xlu0 %3264
    %v3266 = vsel %vm250, %v3265, 0
    %3268 = vmatprep.subr.mxu0 0.0
    %3269 = vmatpush1.msra.mxu0 %v1949
    %3270 = vmatprep.subr.mxu0 0.0
    %3271 = vmatpush1.msra.mxu0 %v1951
    %3272 = vmatprep.subr.mxu0 0.0
    %3273 = vmatpush1.msra.mxu0 %v1953
    %3274 = vmatprep.subr.mxu0 0.0
    %3275 = vmatpush1.msra.mxu0 %v1955
    %3276 = vmatprep.subr.mxu0 0.0
    %3277 = vmatpush1.msra.mxu0 0.0
    %3278 = vmatprep.subr.mxu0 0.0
    %3279 = vmatpush1.msra.mxu0 0.0
    %3280 = vmatprep.subr.mxu0 0.0
    %3281 = vmatpush1.msra.mxu0 0.0
    %3282 = vmatprep.subr.mxu0 0.0
    %3283 = vmatpush1.msra.mxu0 0.0
    %3284 = vmatprep.subr.mxu0 0.0
    %3285 = vmatpush1.msra.mxu0 0.0
    %3286 = vmatprep.subr.mxu0 0.0
    %3287 = vmatpush1.msra.mxu0 0.0
    %3288 = vmatprep.subr.mxu0 0.0
    %3289 = vmatpush1.msra.mxu0 0.0
    %3290 = vmatprep.subr.mxu0 0.0
    %3291 = vmatpush1.msra.mxu0 0.0
    %3292 = vmatprep.subr.mxu0 0.0
    %3293 = vmatpush1.msra.mxu0 0.0
    %3294 = vmatprep.subr.mxu0 0.0
    %3295 = vmatpush1.msra.mxu0 0.0
    %3296 = vmatprep.subr.mxu0 0.0
    %3297 = vmatpush1.msra.mxu0 0.0
    %3298 = vmatprep.subr.mxu0 0.0
    %3299 = vmatpush1.msra.mxu0 0.0
    %3300 = vmatprep.subr.mxu0 0.0
    %3301 = vmatpush1.msra.mxu0 0.0
    %3302 = vmatprep.subr.mxu0 0.0
    %3303 = vmatpush1.msra.mxu0 0.0
    %3304 = vmatprep.subr.mxu0 0.0
    %3305 = vmatpush1.msra.mxu0 0.0
    %3306 = vmatprep.subr.mxu0 0.0
    %3307 = vmatpush1.msra.mxu0 0.0
    %3308 = vmatprep.subr.mxu0 0.0
    %3309 = vmatpush1.msra.mxu0 0.0
    %3310 = vmatprep.subr.mxu0 0.0
    %3311 = vmatpush1.msra.mxu0 0.0
    %3312 = vmatprep.subr.mxu0 0.0
    %3313 = vmatpush1.msra.mxu0 0.0
    %3314 = vmatprep.subr.mxu0 0.0
    %3315 = vmatpush1.msra.mxu0 0.0
    %3316 = vmatprep.subr.mxu0 0.0
    %3317 = vmatpush1.msra.mxu0 0.0
    %3318 = vmatprep.subr.mxu0 0.0
    %3319 = vmatpush1.msra.mxu0 0.0
    %3320 = vmatprep.subr.mxu0 0.0
    %3321 = vmatpush1.msra.mxu0 0.0
    %3322 = vmatprep.subr.mxu0 0.0
    %3323 = vmatpush1.msra.mxu0 0.0
    %3324 = vmatprep.subr.mxu0 0.0
    %3325 = vmatpush1.msra.mxu0 0.0
    %3326 = vmatprep.subr.mxu0 0.0
    %3327 = vmatpush1.msra.mxu0 0.0
    %3328 = vmatprep.subr.mxu0 0.0
    %3329 = vmatpush1.msra.mxu0 0.0
    %3330 = vmatprep.subr.mxu0 0.0
    %3331 = vmatpush1.msra.mxu0 0.0
    %3332 = vmatprep.mubr.f32.mxu0 0.0
    %3333 = vmatmul.mubr.f32.gmra.mrb[0].mxu0 %v3266
    %v3334 = vpop.f32.mrb[0].mxu0
    %v3335 = vadd.f32 0.0, %v3334
    %v3336 = vpop.f32.mrb[0].mxu0
    %3337 = vdwg.mxu0
    %3338 = vmatprep.subr.mxu0 0.0
    %3339 = vmatpush1.msra.mxu0 %v2031
    %3340 = vmatprep.subr.mxu0 0.0
    %3341 = vmatpush1.msra.mxu0 %v2033
    %3342 = vmatprep.subr.mxu0 0.0
    %3343 = vmatpush1.msra.mxu0 %v2035
    %3344 = vmatprep.subr.mxu0 0.0
    %3345 = vmatpush1.msra.mxu0 %v2037
    %3346 = vmatprep.subr.mxu0 0.0
    %3347 = vmatpush1.msra.mxu0 0.0
    %3348 = vmatprep.subr.mxu0 0.0
    %3349 = vmatpush1.msra.mxu0 0.0
    %3350 = vmatprep.subr.mxu0 0.0
    %3351 = vmatpush1.msra.mxu0 0.0
    %3352 = vmatprep.subr.mxu0 0.0
    %3353 = vmatpush1.msra.mxu0 0.0
    %3354 = vmatprep.subr.mxu0 0.0
    %3355 = vmatpush1.msra.mxu0 0.0
    %3356 = vmatprep.subr.mxu0 0.0
    %3357 = vmatpush1.msra.mxu0 0.0
    %3358 = vmatprep.subr.mxu0 0.0
    %3359 = vmatpush1.msra.mxu0 0.0
    %3360 = vmatprep.subr.mxu0 0.0
    %3361 = vmatpush1.msra.mxu0 0.0
    %3362 = vmatprep.subr.mxu0 0.0
    %3363 = vmatpush1.msra.mxu0 0.0
    %3364 = vmatprep.subr.mxu0 0.0
    %3365 = vmatpush1.msra.mxu0 0.0
    %3366 = vmatprep.subr.mxu0 0.0
    %3367 = vmatpush1.msra.mxu0 0.0
    %3368 = vmatprep.subr.mxu0 0.0
    %3369 = vmatpush1.msra.mxu0 0.0
    %3370 = vmatprep.subr.mxu0 0.0
    %3371 = vmatpush1.msra.mxu0 0.0
    %3372 = vmatprep.subr.mxu0 0.0
    %3373 = vmatpush1.msra.mxu0 0.0
    %3374 = vmatprep.subr.mxu0 0.0
    %3375 = vmatpush1.msra.mxu0 0.0
    %3376 = vmatprep.subr.mxu0 0.0
    %3377 = vmatpush1.msra.mxu0 0.0
    %3378 = vmatprep.subr.mxu0 0.0
    %3379 = vmatpush1.msra.mxu0 0.0
    %3380 = vmatprep.subr.mxu0 0.0
    %3381 = vmatpush1.msra.mxu0 0.0
    %3382 = vmatprep.subr.mxu0 0.0
    %3383 = vmatpush1.msra.mxu0 0.0
    %3384 = vmatprep.subr.mxu0 0.0
    %3385 = vmatpush1.msra.mxu0 0.0
    %3386 = vmatprep.subr.mxu0 0.0
    %3387 = vmatpush1.msra.mxu0 0.0
    %3388 = vmatprep.subr.mxu0 0.0
    %3389 = vmatpush1.msra.mxu0 0.0
    %3390 = vmatprep.subr.mxu0 0.0
    %3391 = vmatpush1.msra.mxu0 0.0
    %3392 = vmatprep.subr.mxu0 0.0
    %3393 = vmatpush1.msra.mxu0 0.0
    %3394 = vmatprep.subr.mxu0 0.0
    %3395 = vmatpush1.msra.mxu0 0.0
    %3396 = vmatprep.subr.mxu0 0.0
    %3397 = vmatpush1.msra.mxu0 0.0
    %3398 = vmatprep.subr.mxu0 0.0
    %3399 = vmatpush1.msra.mxu0 0.0
    %3400 = vmatprep.subr.mxu0 0.0
    %3401 = vmatpush1.msra.mxu0 0.0
    %3402 = vmatprep.mubr.f32.mxu0 0.0
    %3403 = vmatmul.mubr.f32.gmra.mrb[0].mxu0 %v3266
    %v3404 = vpop.f32.mrb[0].mxu0
    %v3405 = vadd.f32 0.0, %v3404
    %v3406 = vpop.f32.mrb[0].mxu0
    %3407 = vdwg.mxu0
    %v3409 = vrot.slane %v3335, 3
    %v3411 = vadd.f32 %v1943, %v3409
    %v3412 = vxor.u32 %v3411, 2147483648
    %v3413 = vmul.f32 %v3412, 1.442695
    %v3414 = vpow.pop %v3413
    %v3415 = vadd.f32 %v3414, 1.0
    %v3416 = vrcp.pop %v3415
    %v3417 = vmul.f32 1.0, %v3416
    %v3419 = vrot.slane %v3405, 3
    %3420 = vrot.lane.b32.xlu0 %v3419, 32
    %v3421 = vpop.permute.xlu0 %3420
    %v3423 = vadd.f32 %v1943, %v3421
    %v3424 = vxor.u32 %v3423, 2147483648
    %v3425 = vmul.f32 %v3424, 1.442695
    %v3426 = vpow.pop %v3425
    %v3427 = vadd.f32 %v3426, 1.0
    %v3428 = vrcp.pop %v3427
    %v3429 = vmul.f32 1.0, %v3428
    %3430 = vmatprep.subr.mxu0 0.0
    %3431 = vmatpush1.msra.mxu0 %v2131
    %3432 = vmatprep.subr.mxu0 0.0
    %3433 = vmatpush1.msra.mxu0 %v2133
    %3434 = vmatprep.subr.mxu0 0.0
    %3435 = vmatpush1.msra.mxu0 %v2135
    %3436 = vmatprep.subr.mxu0 0.0
    %3437 = vmatpush1.msra.mxu0 %v2137
    %3438 = vmatprep.subr.mxu0 0.0
    %3439 = vmatpush1.msra.mxu0 0.0
    %3440 = vmatprep.subr.mxu0 0.0
    %3441 = vmatpush1.msra.mxu0 0.0
    %3442 = vmatprep.subr.mxu0 0.0
    %3443 = vmatpush1.msra.mxu0 0.0
    %3444 = vmatprep.subr.mxu0 0.0
    %3445 = vmatpush1.msra.mxu0 0.0
    %3446 = vmatprep.subr.mxu0 0.0
    %3447 = vmatpush1.msra.mxu0 0.0
    %3448 = vmatprep.subr.mxu0 0.0
    %3449 = vmatpush1.msra.mxu0 0.0
    %3450 = vmatprep.subr.mxu0 0.0
    %3451 = vmatpush1.msra.mxu0 0.0
    %3452 = vmatprep.subr.mxu0 0.0
    %3453 = vmatpush1.msra.mxu0 0.0
    %3454 = vmatprep.subr.mxu0 0.0
    %3455 = vmatpush1.msra.mxu0 0.0
    %3456 = vmatprep.subr.mxu0 0.0
    %3457 = vmatpush1.msra.mxu0 0.0
    %3458 = vmatprep.subr.mxu0 0.0
    %3459 = vmatpush1.msra.mxu0 0.0
    %3460 = vmatprep.subr.mxu0 0.0
    %3461 = vmatpush1.msra.mxu0 0.0
    %3462 = vmatprep.subr.mxu0 0.0
    %3463 = vmatpush1.msra.mxu0 0.0
    %3464 = vmatprep.subr.mxu0 0.0
    %3465 = vmatpush1.msra.mxu0 0.0
    %3466 = vmatprep.subr.mxu0 0.0
    %3467 = vmatpush1.msra.mxu0 0.0
    %3468 = vmatprep.subr.mxu0 0.0
    %3469 = vmatpush1.msra.mxu0 0.0
    %3470 = vmatprep.subr.mxu0 0.0
    %3471 = vmatpush1.msra.mxu0 0.0
    %3472 = vmatprep.subr.mxu0 0.0
    %3473 = vmatpush1.msra.mxu0 0.0
    %3474 = vmatprep.subr.mxu0 0.0
    %3475 = vmatpush1.msra.mxu0 0.0
    %3476 = vmatprep.subr.mxu0 0.0
    %3477 = vmatpush1.msra.mxu0 0.0
    %3478 = vmatprep.subr.mxu0 0.0
    %3479 = vmatpush1.msra.mxu0 0.0
    %3480 = vmatprep.subr.mxu0 0.0
    %3481 = vmatpush1.msra.mxu0 0.0
    %3482 = vmatprep.subr.mxu0 0.0
    %3483 = vmatpush1.msra.mxu0 0.0
    %3484 = vmatprep.subr.mxu0 0.0
    %3485 = vmatpush1.msra.mxu0 0.0
    %3486 = vmatprep.subr.mxu0 0.0
    %3487 = vmatpush1.msra.mxu0 0.0
    %3488 = vmatprep.subr.mxu0 0.0
    %3489 = vmatpush1.msra.mxu0 0.0
    %3490 = vmatprep.subr.mxu0 0.0
    %3491 = vmatpush1.msra.mxu0 0.0
    %3492 = vmatprep.subr.mxu0 0.0
    %3493 = vmatpush1.msra.mxu0 0.0
    %3494 = vmatprep.mubr.f32.mxu0 0.0
    %3495 = vmatmul.mubr.f32.gmra.mrb[0].mxu0 %v3266
    %v3496 = vpop.f32.mrb[0].mxu0
    %v3497 = vadd.f32 %v2144, %v3496
    %v3498 = vpop.f32.mrb[0].mxu0
    %3499 = vdwg.mxu0
    %v3501 = vrot.slane %v3497, 3
    %v3503 = vmul.f32 %v3417, %v3501
    %3505 = vrot.lane.b32.xlu0 %v3503, 64
    %v3506 = vpop.permute.xlu0 %3505
    %v3508 = vadd.f32 %v1943, %v3506
    %v3509 = vtanh.pop %v3508
    %v3510 = vsub.f32 1.0, %v3429
    %3512 = vrot.lane.b32.xlu0 %v3509, 96
    %v3513 = vpop.permute.xlu0 %3512
    %v3515 = vmul.f32 %v3510, %v3513
    %v3516 = vrot.slane %v3261, 7
    %v3518 = vmul.f32 %v3429, %v3516
    %v3519 = vadd.f32 %v3515, %v3518
    %v3521 = vrot.slane %v3519, 5
    %3522 = vrot.lane.b32.xlu0 %v3521, 96
    %v3523 = vpop.permute.xlu0 %3522
    %v3524 = vsel %vm250, %v3523, 0
    %3526 = vmatprep.subr.mxu0 0.0
    %3527 = vmatpush1.msra.mxu0 %v1949
    %3528 = vmatprep.subr.mxu0 0.0
    %3529 = vmatpush1.msra.mxu0 %v1951
    %3530 = vmatprep.subr.mxu0 0.0
    %3531 = vmatpush1.msra.mxu0 %v1953
    %3532 = vmatprep.subr.mxu0 0.0
    %3533 = vmatpush1.msra.mxu0 %v1955
    %3534 = vmatprep.subr.mxu0 0.0
    %3535 = vmatpush1.msra.mxu0 0.0
    %3536 = vmatprep.subr.mxu0 0.0
    %3537 = vmatpush1.msra.mxu0 0.0
    %3538 = vmatprep.subr.mxu0 0.0
    %3539 = vmatpush1.msra.mxu0 0.0
    %3540 = vmatprep.subr.mxu0 0.0
    %3541 = vmatpush1.msra.mxu0 0.0
    %3542 = vmatprep.subr.mxu0 0.0
    %3543 = vmatpush1.msra.mxu0 0.0
    %3544 = vmatprep.subr.mxu0 0.0
    %3545 = vmatpush1.msra.mxu0 0.0
    %3546 = vmatprep.subr.mxu0 0.0
    %3547 = vmatpush1.msra.mxu0 0.0
    %3548 = vmatprep.subr.mxu0 0.0
    %3549 = vmatpush1.msra.mxu0 0.0
    %3550 = vmatprep.subr.mxu0 0.0
    %3551 = vmatpush1.msra.mxu0 0.0
    %3552 = vmatprep.subr.mxu0 0.0
    %3553 = vmatpush1.msra.mxu0 0.0
    %3554 = vmatprep.subr.mxu0 0.0
    %3555 = vmatpush1.msra.mxu0 0.0
    %3556 = vmatprep.subr.mxu0 0.0
    %3557 = vmatpush1.msra.mxu0 0.0
    %3558 = vmatprep.subr.mxu0 0.0
    %3559 = vmatpush1.msra.mxu0 0.0
    %3560 = vmatprep.subr.mxu0 0.0
    %3561 = vmatpush1.msra.mxu0 0.0
    %3562 = vmatprep.subr.mxu0 0.0
    %3563 = vmatpush1.msra.mxu0 0.0
    %3564 = vmatprep.subr.mxu0 0.0
    %3565 = vmatpush1.msra.mxu0 0.0
    %3566 = vmatprep.subr.mxu0 0.0
    %3567 = vmatpush1.msra.mxu0 0.0
    %3568 = vmatprep.subr.mxu0 0.0
    %3569 = vmatpush1.msra.mxu0 0.0
    %3570 = vmatprep.subr.mxu0 0.0
    %3571 = vmatpush1.msra.mxu0 0.0
    %3572 = vmatprep.subr.mxu0 0.0
    %3573 = vmatpush1.msra.mxu0 0.0
    %3574 = vmatprep.subr.mxu0 0.0
    %3575 = vmatpush1.msra.mxu0 0.0
    %3576 = vmatprep.subr.mxu0 0.0
    %3577 = vmatpush1.msra.mxu0 0.0
    %3578 = vmatprep.subr.mxu0 0.0
    %3579 = vmatpush1.msra.mxu0 0.0
    %3580 = vmatprep.subr.mxu0 0.0
    %3581 = vmatpush1.msra.mxu0 0.0
    %3582 = vmatprep.subr.mxu0 0.0
    %3583 = vmatpush1.msra.mxu0 0.0
    %3584 = vmatprep.subr.mxu0 0.0
    %3585 = vmatpush1.msra.mxu0 0.0
    %3586 = vmatprep.subr.mxu0 0.0
    %3587 = vmatpush1.msra.mxu0 0.0
    %3588 = vmatprep.subr.mxu0 0.0
    %3589 = vmatpush1.msra.mxu0 0.0
    %3590 = vmatprep.mubr.f32.mxu0 0.0
    %3591 = vmatmul.mubr.f32.gmra.mrb[0].mxu0 %v3524
    %v3592 = vpop.f32.mrb[0].mxu0
    %v3593 = vadd.f32 0.0, %v3592
    %v3594 = vpop.f32.mrb[0].mxu0
    %3595 = vdwg.mxu0
    %3596 = vmatprep.subr.mxu0 0.0
    %3597 = vmatpush1.msra.mxu0 %v2031
    %3598 = vmatprep.subr.mxu0 0.0
    %3599 = vmatpush1.msra.mxu0 %v2033
    %3600 = vmatprep.subr.mxu0 0.0
    %3601 = vmatpush1.msra.mxu0 %v2035
    %3602 = vmatprep.subr.mxu0 0.0
    %3603 = vmatpush1.msra.mxu0 %v2037
    %3604 = vmatprep.subr.mxu0 0.0
    %3605 = vmatpush1.msra.mxu0 0.0
    %3606 = vmatprep.subr.mxu0 0.0
    %3607 = vmatpush1.msra.mxu0 0.0
    %3608 = vmatprep.subr.mxu0 0.0
    %3609 = vmatpush1.msra.mxu0 0.0
    %3610 = vmatprep.subr.mxu0 0.0
    %3611 = vmatpush1.msra.mxu0 0.0
    %3612 = vmatprep.subr.mxu0 0.0
    %3613 = vmatpush1.msra.mxu0 0.0
    %3614 = vmatprep.subr.mxu0 0.0
    %3615 = vmatpush1.msra.mxu0 0.0
    %3616 = vmatprep.subr.mxu0 0.0
    %3617 = vmatpush1.msra.mxu0 0.0
    %3618 = vmatprep.subr.mxu0 0.0
    %3619 = vmatpush1.msra.mxu0 0.0
    %3620 = vmatprep.subr.mxu0 0.0
    %3621 = vmatpush1.msra.mxu0 0.0
    %3622 = vmatprep.subr.mxu0 0.0
    %3623 = vmatpush1.msra.mxu0 0.0
    %3624 = vmatprep.subr.mxu0 0.0
    %3625 = vmatpush1.msra.mxu0 0.0
    %3626 = vmatprep.subr.mxu0 0.0
    %3627 = vmatpush1.msra.mxu0 0.0
    %3628 = vmatprep.subr.mxu0 0.0
    %3629 = vmatpush1.msra.mxu0 0.0
    %3630 = vmatprep.subr.mxu0 0.0
    %3631 = vmatpush1.msra.mxu0 0.0
    %3632 = vmatprep.subr.mxu0 0.0
    %3633 = vmatpush1.msra.mxu0 0.0
    %3634 = vmatprep.subr.mxu0 0.0
    %3635 = vmatpush1.msra.mxu0 0.0
    %3636 = vmatprep.subr.mxu0 0.0
    %3637 = vmatpush1.msra.mxu0 0.0
    %3638 = vmatprep.subr.mxu0 0.0
    %3639 = vmatpush1.msra.mxu0 0.0
    %3640 = vmatprep.subr.mxu0 0.0
    %3641 = vmatpush1.msra.mxu0 0.0
    %3642 = vmatprep.subr.mxu0 0.0
    %3643 = vmatpush1.msra.mxu0 0.0
    %3644 = vmatprep.subr.mxu0 0.0
    %3645 = vmatpush1.msra.mxu0 0.0
    %3646 = vmatprep.subr.mxu0 0.0
    %3647 = vmatpush1.msra.mxu0 0.0
    %3648 = vmatprep.subr.mxu0 0.0
    %3649 = vmatpush1.msra.mxu0 0.0
    %3650 = vmatprep.subr.mxu0 0.0
    %3651 = vmatpush1.msra.mxu0 0.0
    %3652 = vmatprep.subr.mxu0 0.0
    %3653 = vmatpush1.msra.mxu0 0.0
    %3654 = vmatprep.subr.mxu0 0.0
    %3655 = vmatpush1.msra.mxu0 0.0
    %3656 = vmatprep.subr.mxu0 0.0
    %3657 = vmatpush1.msra.mxu0 0.0
    %3658 = vmatprep.subr.mxu0 0.0
    %3659 = vmatpush1.msra.mxu0 0.0
    %3660 = vmatprep.mubr.f32.mxu0 0.0
    %3661 = vmatmul.mubr.f32.gmra.mrb[0].mxu0 %v3524
    %v3662 = vpop.f32.mrb[0].mxu0
    %v3663 = vadd.f32 0.0, %v3662
    %v3664 = vpop.f32.mrb[0].mxu0
    %3665 = vdwg.mxu0
    %v3667 = vrot.slane %v3593, 2
    %v3669 = vadd.f32 %v1943, %v3667
    %v3670 = vxor.u32 %v3669, 2147483648
    %v3671 = vmul.f32 %v3670, 1.442695
    %v3672 = vpow.pop %v3671
    %v3673 = vadd.f32 %v3672, 1.0
    %v3674 = vrcp.pop %v3673
    %v3675 = vmul.f32 1.0, %v3674
    %v3677 = vrot.slane %v3663, 2
    %3678 = vrot.lane.b32.xlu0 %v3677, 32
    %v3679 = vpop.permute.xlu0 %3678
    %v3681 = vadd.f32 %v1943, %v3679
    %v3682 = vxor.u32 %v3681, 2147483648
    %v3683 = vmul.f32 %v3682, 1.442695
    %v3684 = vpow.pop %v3683
    %v3685 = vadd.f32 %v3684, 1.0
    %v3686 = vrcp.pop %v3685
    %v3687 = vmul.f32 1.0, %v3686
    %3688 = vmatprep.subr.mxu0 0.0
    %3689 = vmatpush1.msra.mxu0 %v2131
    %3690 = vmatprep.subr.mxu0 0.0
    %3691 = vmatpush1.msra.mxu0 %v2133
    %3692 = vmatprep.subr.mxu0 0.0
    %3693 = vmatpush1.msra.mxu0 %v2135
    %3694 = vmatprep.subr.mxu0 0.0
    %3695 = vmatpush1.msra.mxu0 %v2137
    %3696 = vmatprep.subr.mxu0 0.0
    %3697 = vmatpush1.msra.mxu0 0.0
    %3698 = vmatprep.subr.mxu0 0.0
    %3699 = vmatpush1.msra.mxu0 0.0
    %3700 = vmatprep.subr.mxu0 0.0
    %3701 = vmatpush1.msra.mxu0 0.0
    %3702 = vmatprep.subr.mxu0 0.0
    %3703 = vmatpush1.msra.mxu0 0.0
    %3704 = vmatprep.subr.mxu0 0.0
    %3705 = vmatpush1.msra.mxu0 0.0
    %3706 = vmatprep.subr.mxu0 0.0
    %3707 = vmatpush1.msra.mxu0 0.0
    %3708 = vmatprep.subr.mxu0 0.0
    %3709 = vmatpush1.msra.mxu0 0.0
    %3710 = vmatprep.subr.mxu0 0.0
    %3711 = vmatpush1.msra.mxu0 0.0
    %3712 = vmatprep.subr.mxu0 0.0
    %3713 = vmatpush1.msra.mxu0 0.0
    %3714 = vmatprep.subr.mxu0 0.0
    %3715 = vmatpush1.msra.mxu0 0.0
    %3716 = vmatprep.subr.mxu0 0.0
    %3717 = vmatpush1.msra.mxu0 0.0
    %3718 = vmatprep.subr.mxu0 0.0
    %3719 = vmatpush1.msra.mxu0 0.0
    %3720 = vmatprep.subr.mxu0 0.0
    %3721 = vmatpush1.msra.mxu0 0.0
    %3722 = vmatprep.subr.mxu0 0.0
    %3723 = vmatpush1.msra.mxu0 0.0
    %3724 = vmatprep.subr.mxu0 0.0
    %3725 = vmatpush1.msra.mxu0 0.0
    %3726 = vmatprep.subr.mxu0 0.0
    %3727 = vmatpush1.msra.mxu0 0.0
    %3728 = vmatprep.subr.mxu0 0.0
    %3729 = vmatpush1.msra.mxu0 0.0
    %3730 = vmatprep.subr.mxu0 0.0
    %3731 = vmatpush1.msra.mxu0 0.0
    %3732 = vmatprep.subr.mxu0 0.0
    %3733 = vmatpush1.msra.mxu0 0.0
    %3734 = vmatprep.subr.mxu0 0.0
    %3735 = vmatpush1.msra.mxu0 0.0
    %3736 = vmatprep.subr.mxu0 0.0
    %3737 = vmatpush1.msra.mxu0 0.0
    %3738 = vmatprep.subr.mxu0 0.0
    %3739 = vmatpush1.msra.mxu0 0.0
    %3740 = vmatprep.subr.mxu0 0.0
    %3741 = vmatpush1.msra.mxu0 0.0
    %3742 = vmatprep.subr.mxu0 0.0
    %3743 = vmatpush1.msra.mxu0 0.0
    %3744 = vmatprep.subr.mxu0 0.0
    %3745 = vmatpush1.msra.mxu0 0.0
    %3746 = vmatprep.subr.mxu0 0.0
    %3747 = vmatpush1.msra.mxu0 0.0
    %3748 = vmatprep.subr.mxu0 0.0
    %3749 = vmatpush1.msra.mxu0 0.0
    %3750 = vmatprep.subr.mxu0 0.0
    %3751 = vmatpush1.msra.mxu0 0.0
    %3752 = vmatprep.mubr.f32.mxu0 0.0
    %3753 = vmatmul.mubr.f32.gmra.mrb[0].mxu0 %v3524
    %v3754 = vpop.f32.mrb[0].mxu0
    %v3755 = vadd.f32 %v2144, %v3754
    %v3756 = vpop.f32.mrb[0].mxu0
    %3757 = vdwg.mxu0
    %v3759 = vrot.slane %v3755, 2
    %v3761 = vmul.f32 %v3675, %v3759
    %3763 = vrot.lane.b32.xlu0 %v3761, 64
    %v3764 = vpop.permute.xlu0 %3763
    %v3766 = vadd.f32 %v1943, %v3764
    %v3767 = vtanh.pop %v3766
    %v3768 = vsub.f32 1.0, %v3687
    %3770 = vrot.lane.b32.xlu0 %v3767, 96
    %v3771 = vpop.permute.xlu0 %3770
    %v3773 = vmul.f32 %v3768, %v3771
    %v3774 = vrot.slane %v3519, 7
    %v3776 = vmul.f32 %v3687, %v3774
    %v3777 = vadd.f32 %v3773, %v3776
    %v3779 = vrot.slane %v3777, 6
    %3780 = vrot.lane.b32.xlu0 %v3779, 96
    %v3781 = vpop.permute.xlu0 %3780
    %v3782 = vsel %vm250, %v3781, 0
    %3784 = vmatprep.subr.mxu0 0.0
    %3785 = vmatpush1.msra.mxu0 %v1949
    %3786 = vmatprep.subr.mxu0 0.0
    %3787 = vmatpush1.msra.mxu0 %v1951
    %3788 = vmatprep.subr.mxu0 0.0
    %3789 = vmatpush1.msra.mxu0 %v1953
    %3790 = vmatprep.subr.mxu0 0.0
    %3791 = vmatpush1.msra.mxu0 %v1955
    %3792 = vmatprep.subr.mxu0 0.0
    %3793 = vmatpush1.msra.mxu0 0.0
    %3794 = vmatprep.subr.mxu0 0.0
    %3795 = vmatpush1.msra.mxu0 0.0
    %3796 = vmatprep.subr.mxu0 0.0
    %3797 = vmatpush1.msra.mxu0 0.0
    %3798 = vmatprep.subr.mxu0 0.0
    %3799 = vmatpush1.msra.mxu0 0.0
    %3800 = vmatprep.subr.mxu0 0.0
    %3801 = vmatpush1.msra.mxu0 0.0
    %3802 = vmatprep.subr.mxu0 0.0
    %3803 = vmatpush1.msra.mxu0 0.0
    %3804 = vmatprep.subr.mxu0 0.0
    %3805 = vmatpush1.msra.mxu0 0.0
    %3806 = vmatprep.subr.mxu0 0.0
    %3807 = vmatpush1.msra.mxu0 0.0
    %3808 = vmatprep.subr.mxu0 0.0
    %3809 = vmatpush1.msra.mxu0 0.0
    %3810 = vmatprep.subr.mxu0 0.0
    %3811 = vmatpush1.msra.mxu0 0.0
    %3812 = vmatprep.subr.mxu0 0.0
    %3813 = vmatpush1.msra.mxu0 0.0
    %3814 = vmatprep.subr.mxu0 0.0
    %3815 = vmatpush1.msra.mxu0 0.0
    %3816 = vmatprep.subr.mxu0 0.0
    %3817 = vmatpush1.msra.mxu0 0.0
    %3818 = vmatprep.subr.mxu0 0.0
    %3819 = vmatpush1.msra.mxu0 0.0
    %3820 = vmatprep.subr.mxu0 0.0
    %3821 = vmatpush1.msra.mxu0 0.0
    %3822 = vmatprep.subr.mxu0 0.0
    %3823 = vmatpush1.msra.mxu0 0.0
    %3824 = vmatprep.subr.mxu0 0.0
    %3825 = vmatpush1.msra.mxu0 0.0
    %3826 = vmatprep.subr.mxu0 0.0
    %3827 = vmatpush1.msra.mxu0 0.0
    %3828 = vmatprep.subr.mxu0 0.0
    %3829 = vmatpush1.msra.mxu0 0.0
    %3830 = vmatprep.subr.mxu0 0.0
    %3831 = vmatpush1.msra.mxu0 0.0
    %3832 = vmatprep.subr.mxu0 0.0
    %3833 = vmatpush1.msra.mxu0 0.0
    %3834 = vmatprep.subr.mxu0 0.0
    %3835 = vmatpush1.msra.mxu0 0.0
    %3836 = vmatprep.subr.mxu0 0.0
    %3837 = vmatpush1.msra.mxu0 0.0
    %3838 = vmatprep.subr.mxu0 0.0
    %3839 = vmatpush1.msra.mxu0 0.0
    %3840 = vmatprep.subr.mxu0 0.0
    %3841 = vmatpush1.msra.mxu0 0.0
    %3842 = vmatprep.subr.mxu0 0.0
    %3843 = vmatpush1.msra.mxu0 0.0
    %3844 = vmatprep.subr.mxu0 0.0
    %3845 = vmatpush1.msra.mxu0 0.0
    %3846 = vmatprep.subr.mxu0 0.0
    %3847 = vmatpush1.msra.mxu0 0.0
    %3848 = vmatprep.mubr.f32.mxu0 0.0
    %3849 = vmatmul.mubr.f32.gmra.mrb[0].mxu0 %v3782
    %v3850 = vpop.f32.mrb[0].mxu0
    %v3851 = vadd.f32 0.0, %v3850
    %v3852 = vpop.f32.mrb[0].mxu0
    %3853 = vdwg.mxu0
    %3854 = vmatprep.subr.mxu0 0.0
    %3855 = vmatpush1.msra.mxu0 %v2031
    %3856 = vmatprep.subr.mxu0 0.0
    %3857 = vmatpush1.msra.mxu0 %v2033
    %3858 = vmatprep.subr.mxu0 0.0
    %3859 = vmatpush1.msra.mxu0 %v2035
    %3860 = vmatprep.subr.mxu0 0.0
    %3861 = vmatpush1.msra.mxu0 %v2037
    %3862 = vmatprep.subr.mxu0 0.0
    %3863 = vmatpush1.msra.mxu0 0.0
    %3864 = vmatprep.subr.mxu0 0.0
    %3865 = vmatpush1.msra.mxu0 0.0
    %3866 = vmatprep.subr.mxu0 0.0
    %3867 = vmatpush1.msra.mxu0 0.0
    %3868 = vmatprep.subr.mxu0 0.0
    %3869 = vmatpush1.msra.mxu0 0.0
    %3870 = vmatprep.subr.mxu0 0.0
    %3871 = vmatpush1.msra.mxu0 0.0
    %3872 = vmatprep.subr.mxu0 0.0
    %3873 = vmatpush1.msra.mxu0 0.0
    %3874 = vmatprep.subr.mxu0 0.0
    %3875 = vmatpush1.msra.mxu0 0.0
    %3876 = vmatprep.subr.mxu0 0.0
    %3877 = vmatpush1.msra.mxu0 0.0
    %3878 = vmatprep.subr.mxu0 0.0
    %3879 = vmatpush1.msra.mxu0 0.0
    %3880 = vmatprep.subr.mxu0 0.0
    %3881 = vmatpush1.msra.mxu0 0.0
    %3882 = vmatprep.subr.mxu0 0.0
    %3883 = vmatpush1.msra.mxu0 0.0
    %3884 = vmatprep.subr.mxu0 0.0
    %3885 = vmatpush1.msra.mxu0 0.0
    %3886 = vmatprep.subr.mxu0 0.0
    %3887 = vmatpush1.msra.mxu0 0.0
    %3888 = vmatprep.subr.mxu0 0.0
    %3889 = vmatpush1.msra.mxu0 0.0
    %3890 = vmatprep.subr.mxu0 0.0
    %3891 = vmatpush1.msra.mxu0 0.0
    %3892 = vmatprep.subr.mxu0 0.0
    %3893 = vmatpush1.msra.mxu0 0.0
    %3894 = vmatprep.subr.mxu0 0.0
    %3895 = vmatpush1.msra.mxu0 0.0
    %3896 = vmatprep.subr.mxu0 0.0
    %3897 = vmatpush1.msra.mxu0 0.0
    %3898 = vmatprep.subr.mxu0 0.0
    %3899 = vmatpush1.msra.mxu0 0.0
    %3900 = vmatprep.subr.mxu0 0.0
    %3901 = vmatpush1.msra.mxu0 0.0
    %3902 = vmatprep.subr.mxu0 0.0
    %3903 = vmatpush1.msra.mxu0 0.0
    %3904 = vmatprep.subr.mxu0 0.0
    %3905 = vmatpush1.msra.mxu0 0.0
    %3906 = vmatprep.subr.mxu0 0.0
    %3907 = vmatpush1.msra.mxu0 0.0
    %3908 = vmatprep.subr.mxu0 0.0
    %3909 = vmatpush1.msra.mxu0 0.0
    %3910 = vmatprep.subr.mxu0 0.0
    %3911 = vmatpush1.msra.mxu0 0.0
    %3912 = vmatprep.subr.mxu0 0.0
    %3913 = vmatpush1.msra.mxu0 0.0
    %3914 = vmatprep.subr.mxu0 0.0
    %3915 = vmatpush1.msra.mxu0 0.0
    %3916 = vmatprep.subr.mxu0 0.0
    %3917 = vmatpush1.msra.mxu0 0.0
    %3918 = vmatprep.mubr.f32.mxu0 0.0
    %3919 = vmatmul.mubr.f32.gmra.mrb[0].mxu0 %v3782
    %v3920 = vpop.f32.mrb[0].mxu0
    %v3921 = vadd.f32 0.0, %v3920
    %v3922 = vpop.f32.mrb[0].mxu0
    %3923 = vdwg.mxu0
    %v3925 = vrot.slane %v3851, 1
    %v3927 = vadd.f32 %v1943, %v3925
    %v3928 = vxor.u32 %v3927, 2147483648
    %v3929 = vmul.f32 %v3928, 1.442695
    %v3930 = vpow.pop %v3929
    %v3931 = vadd.f32 %v3930, 1.0
    %v3932 = vrcp.pop %v3931
    %v3933 = vmul.f32 1.0, %v3932
    %v3935 = vrot.slane %v3921, 1
    %3936 = vrot.lane.b32.xlu0 %v3935, 32
    %v3937 = vpop.permute.xlu0 %3936
    %v3939 = vadd.f32 %v1943, %v3937
    %v3940 = vxor.u32 %v3939, 2147483648
    %v3941 = vmul.f32 %v3940, 1.442695
    %v3942 = vpow.pop %v3941
    %v3943 = vadd.f32 %v3942, 1.0
    %v3944 = vrcp.pop %v3943
    %v3945 = vmul.f32 1.0, %v3944
    %3946 = vmatprep.subr.mxu0 0.0
    %3947 = vmatpush1.msra.mxu0 %v2131
    %3948 = vmatprep.subr.mxu0 0.0
    %3949 = vmatpush1.msra.mxu0 %v2133
    %3950 = vmatprep.subr.mxu0 0.0
    %3951 = vmatpush1.msra.mxu0 %v2135
    %3952 = vmatprep.subr.mxu0 0.0
    %3953 = vmatpush1.msra.mxu0 %v2137
    %3954 = vmatprep.subr.mxu0 0.0
    %3955 = vmatpush1.msra.mxu0 0.0
    %3956 = vmatprep.subr.mxu0 0.0
    %3957 = vmatpush1.msra.mxu0 0.0
    %3958 = vmatprep.subr.mxu0 0.0
    %3959 = vmatpush1.msra.mxu0 0.0
    %3960 = vmatprep.subr.mxu0 0.0
    %3961 = vmatpush1.msra.mxu0 0.0
    %3962 = vmatprep.subr.mxu0 0.0
    %3963 = vmatpush1.msra.mxu0 0.0
    %3964 = vmatprep.subr.mxu0 0.0
    %3965 = vmatpush1.msra.mxu0 0.0
    %3966 = vmatprep.subr.mxu0 0.0
    %3967 = vmatpush1.msra.mxu0 0.0
    %3968 = vmatprep.subr.mxu0 0.0
    %3969 = vmatpush1.msra.mxu0 0.0
    %3970 = vmatprep.subr.mxu0 0.0
    %3971 = vmatpush1.msra.mxu0 0.0
    %3972 = vmatprep.subr.mxu0 0.0
    %3973 = vmatpush1.msra.mxu0 0.0
    %3974 = vmatprep.subr.mxu0 0.0
    %3975 = vmatpush1.msra.mxu0 0.0
    %3976 = vmatprep.subr.mxu0 0.0
    %3977 = vmatpush1.msra.mxu0 0.0
    %3978 = vmatprep.subr.mxu0 0.0
    %3979 = vmatpush1.msra.mxu0 0.0
    %3980 = vmatprep.subr.mxu0 0.0
    %3981 = vmatpush1.msra.mxu0 0.0
    %3982 = vmatprep.subr.mxu0 0.0
    %3983 = vmatpush1.msra.mxu0 0.0
    %3984 = vmatprep.subr.mxu0 0.0
    %3985 = vmatpush1.msra.mxu0 0.0
    %3986 = vmatprep.subr.mxu0 0.0
    %3987 = vmatpush1.msra.mxu0 0.0
    %3988 = vmatprep.subr.mxu0 0.0
    %3989 = vmatpush1.msra.mxu0 0.0
    %3990 = vmatprep.subr.mxu0 0.0
    %3991 = vmatpush1.msra.mxu0 0.0
    %3992 = vmatprep.subr.mxu0 0.0
    %3993 = vmatpush1.msra.mxu0 0.0
    %3994 = vmatprep.subr.mxu0 0.0
    %3995 = vmatpush1.msra.mxu0 0.0
    %3996 = vmatprep.subr.mxu0 0.0
    %3997 = vmatpush1.msra.mxu0 0.0
    %3998 = vmatprep.subr.mxu0 0.0
    %3999 = vmatpush1.msra.mxu0 0.0
    %4000 = vmatprep.subr.mxu0 0.0
    %4001 = vmatpush1.msra.mxu0 0.0
    %4002 = vmatprep.subr.mxu0 0.0
    %4003 = vmatpush1.msra.mxu0 0.0
    %4004 = vmatprep.subr.mxu0 0.0
    %4005 = vmatpush1.msra.mxu0 0.0
    %4006 = vmatprep.subr.mxu0 0.0
    %4007 = vmatpush1.msra.mxu0 0.0
    %4008 = vmatprep.subr.mxu0 0.0
    %4009 = vmatpush1.msra.mxu0 0.0
    %4010 = vmatprep.mubr.f32.mxu0 0.0
    %4011 = vmatmul.mubr.f32.gmra.mrb[0].mxu0 %v3782
    %v4012 = vpop.f32.mrb[0].mxu0
    %v4013 = vadd.f32 %v2144, %v4012
    %v4014 = vpop.f32.mrb[0].mxu0
    %4015 = vdwg.mxu0
    %v4017 = vrot.slane %v4013, 1
    %v4019 = vmul.f32 %v3933, %v4017
    %4021 = vrot.lane.b32.xlu0 %v4019, 64
    %v4022 = vpop.permute.xlu0 %4021
    %v4024 = vadd.f32 %v1943, %v4022
    %v4025 = vtanh.pop %v4024
    %v4026 = vsub.f32 1.0, %v3945
    %4028 = vrot.lane.b32.xlu0 %v4025, 96
    %v4029 = vpop.permute.xlu0 %4028
    %v4031 = vmul.f32 %v4026, %v4029
    %v4032 = vrot.slane %v3777, 7
    %v4034 = vmul.f32 %v3945, %v4032
    %v4035 = vadd.f32 %v4031, %v4034
    %v4036 = vld [vmem:[%s2 + $0x8] sm:$0xff]
    %v4037 = vld [vmem:[%s2 + $0x30] sm:$0xff]
    %v4038 = vld [vmem:[%s2 + $0x58] sm:$0xff]
    %v4039 = vld [vmem:[%s2 + $0x80] sm:$0xff]
    %v4041 = vrot.slane %v4035, 7
    %4042 = vrot.lane.b32.xlu0 %v4041, 96
    %v4043 = vpop.permute.xlu0 %4042
    %4048 = vrot.lane.b32.xlu0 %v4036, 64
    %v4049 = vpop.permute.xlu0 %4048
    %4050 = vrot.lane.b32.xlu0 %v4037, 64
    %v4051 = vpop.permute.xlu0 %4050
    %4052 = vrot.lane.b32.xlu0 %v4038, 64
    %v4053 = vpop.permute.xlu0 %4052
    %4054 = vrot.lane.b32.xlu0 %v4039, 64
    %v4055 = vpop.permute.xlu0 %4054
    %vm4056 = vcmask 523264
    %v4057 = vsel %vm4056, %v4049, %v2031
    %v4058 = vsel %vm4056, %v4051, %v2033
    %v4059 = vsel %vm4056, %v4053, %v2035
    %v4060 = vsel %vm4056, %v4055, %v2037
    %v4065 = vsel %vm250, %v4043, 0
    %4067 = vmatprep.subr.mxu0 0.0
    %4068 = vmatpush1.msra.mxu0 %v4057
    %4069 = vmatprep.subr.mxu0 0.0
    %4070 = vmatpush1.msra.mxu0 %v4058
    %4071 = vmatprep.subr.mxu0 0.0
    %4072 = vmatpush1.msra.mxu0 %v4059
    %4073 = vmatprep.subr.mxu0 0.0
    %4074 = vmatpush1.msra.mxu0 %v4060
    %4075 = vmatprep.subr.mxu0 0.0
    %4076 = vmatpush1.msra.mxu0 0.0
    %4077 = vmatprep.subr.mxu0 0.0
    %4078 = vmatpush1.msra.mxu0 0.0
    %4079 = vmatprep.subr.mxu0 0.0
    %4080 = vmatpush1.msra.mxu0 0.0
    %4081 = vmatprep.subr.mxu0 0.0
    %4082 = vmatpush1.msra.mxu0 0.0
    %4083 = vmatprep.subr.mxu0 0.0
    %4084 = vmatpush1.msra.mxu0 0.0
    %4085 = vmatprep.subr.mxu0 0.0
    %4086 = vmatpush1.msra.mxu0 0.0
    %4087 = vmatprep.subr.mxu0 0.0
    %4088 = vmatpush1.msra.mxu0 0.0
    %4089 = vmatprep.subr.mxu0 0.0
    %4090 = vmatpush1.msra.mxu0 0.0
    %4091 = vmatprep.subr.mxu0 0.0
    %4092 = vmatpush1.msra.mxu0 0.0
    %4093 = vmatprep.subr.mxu0 0.0
    %4094 = vmatpush1.msra.mxu0 0.0
    %4095 = vmatprep.subr.mxu0 0.0
    %4096 = vmatpush1.msra.mxu0 0.0
    %4097 = vmatprep.subr.mxu0 0.0
    %4098 = vmatpush1.msra.mxu0 0.0
    %4099 = vmatprep.subr.mxu0 0.0
    %4100 = vmatpush1.msra.mxu0 0.0
    %4101 = vmatprep.subr.mxu0 0.0
    %4102 = vmatpush1.msra.mxu0 0.0
    %4103 = vmatprep.subr.mxu0 0.0
    %4104 = vmatpush1.msra.mxu0 0.0
    %4105 = vmatprep.subr.mxu0 0.0
    %4106 = vmatpush1.msra.mxu0 0.0
    %4107 = vmatprep.subr.mxu0 0.0
    %4108 = vmatpush1.msra.mxu0 0.0
    %4109 = vmatprep.subr.mxu0 0.0
    %4110 = vmatpush1.msra.mxu0 0.0
    %4111 = vmatprep.subr.mxu0 0.0
    %4112 = vmatpush1.msra.mxu0 0.0
    %4113 = vmatprep.subr.mxu0 0.0
    %4114 = vmatpush1.msra.mxu0 0.0
    %4115 = vmatprep.subr.mxu0 0.0
    %4116 = vmatpush1.msra.mxu0 0.0
    %4117 = vmatprep.subr.mxu0 0.0
    %4118 = vmatpush1.msra.mxu0 0.0
    %4119 = vmatprep.subr.mxu0 0.0
    %4120 = vmatpush1.msra.mxu0 0.0
    %4121 = vmatprep.subr.mxu0 0.0
    %4122 = vmatpush1.msra.mxu0 0.0
    %4123 = vmatprep.subr.mxu0 0.0
    %4124 = vmatpush1.msra.mxu0 0.0
    %4125 = vmatprep.subr.mxu0 0.0
    %4126 = vmatpush1.msra.mxu0 0.0
    %4127 = vmatprep.subr.mxu0 0.0
    %4128 = vmatpush1.msra.mxu0 0.0
    %4129 = vmatprep.subr.mxu0 0.0
    %4130 = vmatpush1.msra.mxu0 0.0
    %4131 = vmatprep.mubr.f32.mxu0 0.0
    %4132 = vmatmul.mubr.f32.gmra.mrb[0].mxu0 %v4065
    %v4133 = vpop.f32.mrb[0].mxu0
    %v4134 = vadd.f32 0.0, %v4133
    %v4135 = vpop.f32.mrb[0].mxu0
    %4136 = vdwg.mxu0
    %v4137 = vld [vmem:[%s5] sm:$0x1]
    %v4138 = vld [vmem:[%s2 + $0x20] sm:$0xff]
    %v4139 = vld [vmem:[%s2 + $0x48] sm:$0xff]
    %v4140 = vld [vmem:[%s2 + $0x70] sm:$0xff]
    %v4141 = vld [vmem:[%s2 + $0x98] sm:$0xff]
    %v4142 = vld [vmem:[%s3 + $0x2] sm:$0x1]
    %v4143 = vadd.f32 %v4134, %v4142
    %4144 = vrot.lane.b32.xlu0 %v378, 32
    %v4145 = vpop.permute.xlu0 %4144
    %4146 = vrot.lane.b32.xlu0 %v379, 32
    %v4147 = vpop.permute.xlu0 %4146
    %4148 = vrot.lane.b32.xlu0 %v380, 32
    %v4149 = vpop.permute.xlu0 %4148
    %4150 = vrot.lane.b32.xlu0 %v381, 32
    %v4151 = vpop.permute.xlu0 %4150
    %v4157 = vsel %vm250, %v4137, 0
    %4159 = vmatprep.subr.mxu0 0.0
    %4160 = vmatpush1.msra.mxu0 %v4145
    %4161 = vmatprep.subr.mxu0 0.0
    %4162 = vmatpush1.msra.mxu0 %v4147
    %4163 = vmatprep.subr.mxu0 0.0
    %4164 = vmatpush1.msra.mxu0 %v4149
    %4165 = vmatprep.subr.mxu0 0.0
    %4166 = vmatpush1.msra.mxu0 %v4151
    %4167 = vmatprep.subr.mxu0 0.0
    %4168 = vmatpush1.msra.mxu0 0.0
    %4169 = vmatprep.subr.mxu0 0.0
    %4170 = vmatpush1.msra.mxu0 0.0
    %4171 = vmatprep.subr.mxu0 0.0
    %4172 = vmatpush1.msra.mxu0 0.0
    %4173 = vmatprep.subr.mxu0 0.0
    %4174 = vmatpush1.msra.mxu0 0.0
    %4175 = vmatprep.subr.mxu0 0.0
    %4176 = vmatpush1.msra.mxu0 0.0
    %4177 = vmatprep.subr.mxu0 0.0
    %4178 = vmatpush1.msra.mxu0 0.0
    %4179 = vmatprep.subr.mxu0 0.0
    %4180 = vmatpush1.msra.mxu0 0.0
    %4181 = vmatprep.subr.mxu0 0.0
    %4182 = vmatpush1.msra.mxu0 0.0
    %4183 = vmatprep.subr.mxu0 0.0
    %4184 = vmatpush1.msra.mxu0 0.0
    %4185 = vmatprep.subr.mxu0 0.0
    %4186 = vmatpush1.msra.mxu0 0.0
    %4187 = vmatprep.subr.mxu0 0.0
    %4188 = vmatpush1.msra.mxu0 0.0
    %4189 = vmatprep.subr.mxu0 0.0
    %4190 = vmatpush1.msra.mxu0 0.0
    %4191 = vmatprep.subr.mxu0 0.0
    %4192 = vmatpush1.msra.mxu0 0.0
    %4193 = vmatprep.subr.mxu0 0.0
    %4194 = vmatpush1.msra.mxu0 0.0
    %4195 = vmatprep.subr.mxu0 0.0
    %4196 = vmatpush1.msra.mxu0 0.0
    %4197 = vmatprep.subr.mxu0 0.0
    %4198 = vmatpush1.msra.mxu0 0.0
    %4199 = vmatprep.subr.mxu0 0.0
    %4200 = vmatpush1.msra.mxu0 0.0
    %4201 = vmatprep.subr.mxu0 0.0
    %4202 = vmatpush1.msra.mxu0 0.0
    %4203 = vmatprep.subr.mxu0 0.0
    %4204 = vmatpush1.msra.mxu0 0.0
    %4205 = vmatprep.subr.mxu0 0.0
    %4206 = vmatpush1.msra.mxu0 0.0
    %4207 = vmatprep.subr.mxu0 0.0
    %4208 = vmatpush1.msra.mxu0 0.0
    %4209 = vmatprep.subr.mxu0 0.0
    %4210 = vmatpush1.msra.mxu0 0.0
    %4211 = vmatprep.subr.mxu0 0.0
    %4212 = vmatpush1.msra.mxu0 0.0
    %4213 = vmatprep.subr.mxu0 0.0
    %4214 = vmatpush1.msra.mxu0 0.0
    %4215 = vmatprep.subr.mxu0 0.0
    %4216 = vmatpush1.msra.mxu0 0.0
    %4217 = vmatprep.subr.mxu0 0.0
    %4218 = vmatpush1.msra.mxu0 0.0
    %4219 = vmatprep.subr.mxu0 0.0
    %4220 = vmatpush1.msra.mxu0 0.0
    %4221 = vmatprep.subr.mxu0 0.0
    %4222 = vmatpush1.msra.mxu0 0.0
    %4223 = vmatprep.mubr.f32.mxu0 0.0
    %4224 = vmatmul.mubr.f32.gmra.mrb[0].mxu0 %v4157
    %v4225 = vpop.f32.mrb[0].mxu0
    %v4226 = vadd.f32 0.0, %v4225
    %v4227 = vpop.f32.mrb[0].mxu0
    %4228 = vdwg.mxu0
    %4229 = vmatprep.subr.mxu0 0.0
    %4230 = vmatpush1.msra.mxu0 %v4138
    %4231 = vmatprep.subr.mxu0 0.0
    %4232 = vmatpush1.msra.mxu0 %v4139
    %4233 = vmatprep.subr.mxu0 0.0
    %4234 = vmatpush1.msra.mxu0 %v4140
    %4235 = vmatprep.subr.mxu0 0.0
    %4236 = vmatpush1.msra.mxu0 %v4141
    %4237 = vmatprep.subr.mxu0 0.0
    %4238 = vmatpush1.msra.mxu0 0.0
    %4239 = vmatprep.subr.mxu0 0.0
    %4240 = vmatpush1.msra.mxu0 0.0
    %4241 = vmatprep.subr.mxu0 0.0
    %4242 = vmatpush1.msra.mxu0 0.0
    %4243 = vmatprep.subr.mxu0 0.0
    %4244 = vmatpush1.msra.mxu0 0.0
    %4245 = vmatprep.subr.mxu0 0.0
    %4246 = vmatpush1.msra.mxu0 0.0
    %4247 = vmatprep.subr.mxu0 0.0
    %4248 = vmatpush1.msra.mxu0 0.0
    %4249 = vmatprep.subr.mxu0 0.0
    %4250 = vmatpush1.msra.mxu0 0.0
    %4251 = vmatprep.subr.mxu0 0.0
    %4252 = vmatpush1.msra.mxu0 0.0
    %4253 = vmatprep.subr.mxu0 0.0
    %4254 = vmatpush1.msra.mxu0 0.0
    %4255 = vmatprep.subr.mxu0 0.0
    %4256 = vmatpush1.msra.mxu0 0.0
    %4257 = vmatprep.subr.mxu0 0.0
    %4258 = vmatpush1.msra.mxu0 0.0
    %4259 = vmatprep.subr.mxu0 0.0
    %4260 = vmatpush1.msra.mxu0 0.0
    %4261 = vmatprep.subr.mxu0 0.0
    %4262 = vmatpush1.msra.mxu0 0.0
    %4263 = vmatprep.subr.mxu0 0.0
    %4264 = vmatpush1.msra.mxu0 0.0
    %4265 = vmatprep.subr.mxu0 0.0
    %4266 = vmatpush1.msra.mxu0 0.0
    %4267 = vmatprep.subr.mxu0 0.0
    %4268 = vmatpush1.msra.mxu0 0.0
    %4269 = vmatprep.subr.mxu0 0.0
    %4270 = vmatpush1.msra.mxu0 0.0
    %4271 = vmatprep.subr.mxu0 0.0
    %4272 = vmatpush1.msra.mxu0 0.0
    %4273 = vmatprep.subr.mxu0 0.0
    %4274 = vmatpush1.msra.mxu0 0.0
    %4275 = vmatprep.subr.mxu0 0.0
    %4276 = vmatpush1.msra.mxu0 0.0
    %4277 = vmatprep.subr.mxu0 0.0
    %4278 = vmatpush1.msra.mxu0 0.0
    %4279 = vmatprep.subr.mxu0 0.0
    %4280 = vmatpush1.msra.mxu0 0.0
    %4281 = vmatprep.subr.mxu0 0.0
    %4282 = vmatpush1.msra.mxu0 0.0
    %4283 = vmatprep.subr.mxu0 0.0
    %4284 = vmatpush1.msra.mxu0 0.0
    %4285 = vmatprep.subr.mxu0 0.0
    %4286 = vmatpush1.msra.mxu0 0.0
    %4287 = vmatprep.subr.mxu0 0.0
    %4288 = vmatpush1.msra.mxu0 0.0
    %4289 = vmatprep.subr.mxu0 0.0
    %4290 = vmatpush1.msra.mxu0 0.0
    %4291 = vmatprep.subr.mxu0 0.0
    %4292 = vmatpush1.msra.mxu0 0.0
    %4293 = vmatprep.mubr.f32.mxu0 0.0
    %4294 = vmatmul.mubr.f32.gmra.mrb[0].mxu0 %v4157
    %v4295 = vpop.f32.mrb[0].mxu0
    %v4296 = vadd.f32 0.0, %v4295
    %v4297 = vpop.f32.mrb[0].mxu0
    %4298 = vdwg.mxu0
    %v4299 = vadd.f32 %v4143, %v4226
    %v4300 = vxor.u32 %v4299, 2147483648
    %v4301 = vmul.f32 %v4300, 1.442695
    %v4302 = vpow.pop %v4301
    %v4303 = vadd.f32 %v4302, 1.0
    %v4304 = vrcp.pop %v4303
    %v4305 = vmul.f32 1.0, %v4304
    %4307 = vrot.lane.b32.xlu0 %v4296, 32
    %v4308 = vpop.permute.xlu0 %4307
    %v4310 = vadd.f32 %v4143, %v4308
    %v4311 = vxor.u32 %v4310, 2147483648
    %v4312 = vmul.f32 %v4311, 1.442695
    %v4313 = vpow.pop %v4312
    %v4314 = vadd.f32 %v4313, 1.0
    %v4315 = vrcp.pop %v4314
    %v4316 = vmul.f32 1.0, %v4315
    %4321 = vrot.lane.b32.xlu0 %v4138, 96
    %v4322 = vpop.permute.xlu0 %4321
    %4323 = vrot.lane.b32.xlu0 %v4139, 96
    %v4324 = vpop.permute.xlu0 %4323
    %4325 = vrot.lane.b32.xlu0 %v4140, 96
    %v4326 = vpop.permute.xlu0 %4325
    %4327 = vrot.lane.b32.xlu0 %v4141, 96
    %v4328 = vpop.permute.xlu0 %4327
    %4334 = vrot.lane.b32.xlu0 %v4142, 32
    %v4335 = vpop.permute.xlu0 %4334
    %4337 = vmatprep.subr.mxu0 0.0
    %4338 = vmatpush1.msra.mxu0 %v4322
    %4339 = vmatprep.subr.mxu0 0.0
    %4340 = vmatpush1.msra.mxu0 %v4324
    %4341 = vmatprep.subr.mxu0 0.0
    %4342 = vmatpush1.msra.mxu0 %v4326
    %4343 = vmatprep.subr.mxu0 0.0
    %4344 = vmatpush1.msra.mxu0 %v4328
    %4345 = vmatprep.subr.mxu0 0.0
    %4346 = vmatpush1.msra.mxu0 0.0
    %4347 = vmatprep.subr.mxu0 0.0
    %4348 = vmatpush1.msra.mxu0 0.0
    %4349 = vmatprep.subr.mxu0 0.0
    %4350 = vmatpush1.msra.mxu0 0.0
    %4351 = vmatprep.subr.mxu0 0.0
    %4352 = vmatpush1.msra.mxu0 0.0
    %4353 = vmatprep.subr.mxu0 0.0
    %4354 = vmatpush1.msra.mxu0 0.0
    %4355 = vmatprep.subr.mxu0 0.0
    %4356 = vmatpush1.msra.mxu0 0.0
    %4357 = vmatprep.subr.mxu0 0.0
    %4358 = vmatpush1.msra.mxu0 0.0
    %4359 = vmatprep.subr.mxu0 0.0
    %4360 = vmatpush1.msra.mxu0 0.0
    %4361 = vmatprep.subr.mxu0 0.0
    %4362 = vmatpush1.msra.mxu0 0.0
    %4363 = vmatprep.subr.mxu0 0.0
    %4364 = vmatpush1.msra.mxu0 0.0
    %4365 = vmatprep.subr.mxu0 0.0
    %4366 = vmatpush1.msra.mxu0 0.0
    %4367 = vmatprep.subr.mxu0 0.0
    %4368 = vmatpush1.msra.mxu0 0.0
    %4369 = vmatprep.subr.mxu0 0.0
    %4370 = vmatpush1.msra.mxu0 0.0
    %4371 = vmatprep.subr.mxu0 0.0
    %4372 = vmatpush1.msra.mxu0 0.0
    %4373 = vmatprep.subr.mxu0 0.0
    %4374 = vmatpush1.msra.mxu0 0.0
    %4375 = vmatprep.subr.mxu0 0.0
    %4376 = vmatpush1.msra.mxu0 0.0
    %4377 = vmatprep.subr.mxu0 0.0
    %4378 = vmatpush1.msra.mxu0 0.0
    %4379 = vmatprep.subr.mxu0 0.0
    %4380 = vmatpush1.msra.mxu0 0.0
    %4381 = vmatprep.subr.mxu0 0.0
    %4382 = vmatpush1.msra.mxu0 0.0
    %4383 = vmatprep.subr.mxu0 0.0
    %4384 = vmatpush1.msra.mxu0 0.0
    %4385 = vmatprep.subr.mxu0 0.0
    %4386 = vmatpush1.msra.mxu0 0.0
    %4387 = vmatprep.subr.mxu0 0.0
    %4388 = vmatpush1.msra.mxu0 0.0
    %4389 = vmatprep.subr.mxu0 0.0
    %4390 = vmatpush1.msra.mxu0 0.0
    %4391 = vmatprep.subr.mxu0 0.0
    %4392 = vmatpush1.msra.mxu0 0.0
    %4393 = vmatprep.subr.mxu0 0.0
    %4394 = vmatpush1.msra.mxu0 0.0
    %4395 = vmatprep.subr.mxu0 0.0
    %4396 = vmatpush1.msra.mxu0 0.0
    %4397 = vmatprep.subr.mxu0 0.0
    %4398 = vmatpush1.msra.mxu0 0.0
    %4399 = vmatprep.subr.mxu0 0.0
    %4400 = vmatpush1.msra.mxu0 0.0
    %4401 = vmatprep.mubr.f32.mxu0 0.0
    %4402 = vmatmul.mubr.f32.gmra.mrb[0].mxu0 %v4157
    %v4403 = vpop.f32.mrb[0].mxu0
    %v4404 = vadd.f32 %v4335, %v4403
    %v4405 = vpop.f32.mrb[0].mxu0
    %4406 = vdwg.mxu0
    %v4407 = vmul.f32 %v4305, %v4404
    %4409 = vrot.lane.b32.xlu0 %v4407, 64
    %v4410 = vpop.permute.xlu0 %4409
    %v4412 = vadd.f32 %v4143, %v4410
    %v4413 = vtanh.pop %v4412
    %v4414 = vsub.f32 1.0, %v4316
    %4416 = vrot.lane.b32.xlu0 %v4413, 96
    %v4417 = vpop.permute.xlu0 %4416
    %v4419 = vmul.f32 %v4414, %v4417
    %v4420 = vlaneseq
    %v4421 = vshrl.u32 %v4420, 7
    %v4422 = vsub.s32 0, %v4421
    %v4423 = vrot.slane %v4137, %v4422
    %4424 = vrot.lane.b32.xlu0 %v4423, 32
    %v4425 = vpop.permute.xlu0 %4424
    %v4427 = vmul.f32 %v4316, %v4425
    %v4428 = vadd.f32 %v4419, %v4427
    %4430 = vrot.lane.b32.xlu0 %v4428, 96
    %v4431 = vpop.permute.xlu0 %4430
    %vm4433 = vcmask 253952
    %4434 = vst.msk [vmem:[%s7] sm:$0x1] %vm4433, %v4431
    %v4435 = vld [vmem:[#allocation2] sm:$0xff]
    %v4436 = vld [vmem:[#allocation2 + $0x10] sm:$0xff]
    %v4437 = vld [vmem:[#allocation2 + $0x20] sm:$0xff]
    %v4438 = vld [vmem:[#allocation2 + $0x30] sm:$0xff]
    %v4439 = vsel %vm250, %v4431, 0
    %4441 = vmatprep.subr.mxu0 0.0
    %4442 = vmatpush1.msra.mxu0 %v4435
    %4443 = vmatprep.subr.mxu0 0.0
    %4444 = vmatpush1.msra.mxu0 %v4436
    %4445 = vmatprep.subr.mxu0 0.0
    %4446 = vmatpush1.msra.mxu0 %v4437
    %4447 = vmatprep.subr.mxu0 0.0
    %4448 = vmatpush1.msra.mxu0 %v4438
    %4449 = vmatprep.subr.mxu0 0.0
    %4450 = vmatpush1.msra.mxu0 0.0
    %4451 = vmatprep.subr.mxu0 0.0
    %4452 = vmatpush1.msra.mxu0 0.0
    %4453 = vmatprep.subr.mxu0 0.0
    %4454 = vmatpush1.msra.mxu0 0.0
    %4455 = vmatprep.subr.mxu0 0.0
    %4456 = vmatpush1.msra.mxu0 0.0
    %4457 = vmatprep.subr.mxu0 0.0
    %4458 = vmatpush1.msra.mxu0 0.0
    %4459 = vmatprep.subr.mxu0 0.0
    %4460 = vmatpush1.msra.mxu0 0.0
    %4461 = vmatprep.subr.mxu0 0.0
    %4462 = vmatpush1.msra.mxu0 0.0
    %4463 = vmatprep.subr.mxu0 0.0
    %4464 = vmatpush1.msra.mxu0 0.0
    %4465 = vmatprep.subr.mxu0 0.0
    %4466 = vmatpush1.msra.mxu0 0.0
    %4467 = vmatprep.subr.mxu0 0.0
    %4468 = vmatpush1.msra.mxu0 0.0
    %4469 = vmatprep.subr.mxu0 0.0
    %4470 = vmatpush1.msra.mxu0 0.0
    %4471 = vmatprep.subr.mxu0 0.0
    %4472 = vmatpush1.msra.mxu0 0.0
    %4473 = vmatprep.subr.mxu0 0.0
    %4474 = vmatpush1.msra.mxu0 0.0
    %4475 = vmatprep.subr.mxu0 0.0
    %4476 = vmatpush1.msra.mxu0 0.0
    %4477 = vmatprep.subr.mxu0 0.0
    %4478 = vmatpush1.msra.mxu0 0.0
    %4479 = vmatprep.subr.mxu0 0.0
    %4480 = vmatpush1.msra.mxu0 0.0
    %4481 = vmatprep.subr.mxu0 0.0
    %4482 = vmatpush1.msra.mxu0 0.0
    %4483 = vmatprep.subr.mxu0 0.0
    %4484 = vmatpush1.msra.mxu0 0.0
    %4485 = vmatprep.subr.mxu0 0.0
    %4486 = vmatpush1.msra.mxu0 0.0
    %4487 = vmatprep.subr.mxu0 0.0
    %4488 = vmatpush1.msra.mxu0 0.0
    %4489 = vmatprep.subr.mxu0 0.0
    %4490 = vmatpush1.msra.mxu0 0.0
    %4491 = vmatprep.subr.mxu0 0.0
    %4492 = vmatpush1.msra.mxu0 0.0
    %4493 = vmatprep.subr.mxu0 0.0
    %4494 = vmatpush1.msra.mxu0 0.0
    %4495 = vmatprep.subr.mxu0 0.0
    %4496 = vmatpush1.msra.mxu0 0.0
    %4497 = vmatprep.subr.mxu0 0.0
    %4498 = vmatpush1.msra.mxu0 0.0
    %4499 = vmatprep.subr.mxu0 0.0
    %4500 = vmatpush1.msra.mxu0 0.0
    %4501 = vmatprep.subr.mxu0 0.0
    %4502 = vmatpush1.msra.mxu0 0.0
    %4503 = vmatprep.subr.mxu0 0.0
    %4504 = vmatpush1.msra.mxu0 0.0
    %4505 = vmatprep.mubr.f32.mxu0 0.0
    %4506 = vmatmul.mubr.f32.gmra.mrb[0].mxu0 %v4439
    %v4507 = vpop.f32.mrb[0].mxu0
    %v4508 = vadd.f32 0.0, %v4507
    %v4509 = vpop.f32.mrb[0].mxu0
    %4510 = vdwg.mxu0
    %v4511 = vlaneseq
    %v4512 = vshrl.u32 %v4511, 7
    %v4513 = vsub.s32 0, %v4512
    %v4514 = vrot.slane %v4508, %v4513
    %4519 = vrot.lane.b32.xlu0 %v4435, 80
    %v4520 = vpop.permute.xlu0 %4519
    %4521 = vrot.lane.b32.xlu0 %v4436, 80
    %v4522 = vpop.permute.xlu0 %4521
    %4523 = vrot.lane.b32.xlu0 %v4437, 80
    %v4524 = vpop.permute.xlu0 %4523
    %4525 = vrot.lane.b32.xlu0 %v4438, 80
    %v4526 = vpop.permute.xlu0 %4525
    %v4532 = vsel %vm250, %v1933, 0
    %4534 = vmatprep.subr.mxu0 0.0
    %4535 = vmatpush1.msra.mxu0 %v4520
    %4536 = vmatprep.subr.mxu0 0.0
    %4537 = vmatpush1.msra.mxu0 %v4522
    %4538 = vmatprep.subr.mxu0 0.0
    %4539 = vmatpush1.msra.mxu0 %v4524
    %4540 = vmatprep.subr.mxu0 0.0
    %4541 = vmatpush1.msra.mxu0 %v4526
    %4542 = vmatprep.subr.mxu0 0.0
    %4543 = vmatpush1.msra.mxu0 0.0
    %4544 = vmatprep.subr.mxu0 0.0
    %4545 = vmatpush1.msra.mxu0 0.0
    %4546 = vmatprep.subr.mxu0 0.0
    %4547 = vmatpush1.msra.mxu0 0.0
    %4548 = vmatprep.subr.mxu0 0.0
    %4549 = vmatpush1.msra.mxu0 0.0
    %4550 = vmatprep.subr.mxu0 0.0
    %4551 = vmatpush1.msra.mxu0 0.0
    %4552 = vmatprep.subr.mxu0 0.0
    %4553 = vmatpush1.msra.mxu0 0.0
    %4554 = vmatprep.subr.mxu0 0.0
    %4555 = vmatpush1.msra.mxu0 0.0
    %4556 = vmatprep.subr.mxu0 0.0
    %4557 = vmatpush1.msra.mxu0 0.0
    %4558 = vmatprep.subr.mxu0 0.0
    %4559 = vmatpush1.msra.mxu0 0.0
    %4560 = vmatprep.subr.mxu0 0.0
    %4561 = vmatpush1.msra.mxu0 0.0
    %4562 = vmatprep.subr.mxu0 0.0
    %4563 = vmatpush1.msra.mxu0 0.0
    %4564 = vmatprep.subr.mxu0 0.0
    %4565 = vmatpush1.msra.mxu0 0.0
    %4566 = vmatprep.subr.mxu0 0.0
    %4567 = vmatpush1.msra.mxu0 0.0
    %4568 = vmatprep.subr.mxu0 0.0
    %4569 = vmatpush1.msra.mxu0 0.0
    %4570 = vmatprep.subr.mxu0 0.0
    %4571 = vmatpush1.msra.mxu0 0.0
    %4572 = vmatprep.subr.mxu0 0.0
    %4573 = vmatpush1.msra.mxu0 0.0
    %4574 = vmatprep.subr.mxu0 0.0
    %4575 = vmatpush1.msra.mxu0 0.0
    %4576 = vmatprep.subr.mxu0 0.0
    %4577 = vmatpush1.msra.mxu0 0.0
    %4578 = vmatprep.subr.mxu0 0.0
    %4579 = vmatpush1.msra.mxu0 0.0
    %4580 = vmatprep.subr.mxu0 0.0
    %4581 = vmatpush1.msra.mxu0 0.0
    %4582 = vmatprep.subr.mxu0 0.0
    %4583 = vmatpush1.msra.mxu0 0.0
    %4584 = vmatprep.subr.mxu0 0.0
    %4585 = vmatpush1.msra.mxu0 0.0
    %4586 = vmatprep.subr.mxu0 0.0
    %4587 = vmatpush1.msra.mxu0 0.0
    %4588 = vmatprep.subr.mxu0 0.0
    %4589 = vmatpush1.msra.mxu0 0.0
    %4590 = vmatprep.subr.mxu0 0.0
    %4591 = vmatpush1.msra.mxu0 0.0
    %4592 = vmatprep.subr.mxu0 0.0
    %4593 = vmatpush1.msra.mxu0 0.0
    %4594 = vmatprep.subr.mxu0 0.0
    %4595 = vmatpush1.msra.mxu0 0.0
    %4596 = vmatprep.subr.mxu0 0.0
    %4597 = vmatpush1.msra.mxu0 0.0
    %4598 = vmatprep.mubr.f32.mxu0 0.0
    %4599 = vmatmul.mubr.f32.gmra.mrb[0].mxu0 %v4532
    %v4600 = vpop.f32.mrb[0].mxu0
    %v4601 = vadd.f32 %v4514, %v4600
    %v4602 = vpop.f32.mrb[0].mxu0
    %4603 = vdwg.mxu0
    %v4604 = vld [vmem:[%s3 + $0x3] sm:$0x1]
    %v4605 = vlaneseq
    %v4606 = vshrl.u32 %v4605, 7
    %v4607 = vsub.s32 0, %v4606
    %v4608 = vrot.slane %v4604, %v4607
    %v4609 = vadd.f32 %v4601, %v4608
    %v4610 = vmax.f32 %v4609, 0.0
    %v4611 = vld [vmem:[#allocation2] sm:$0xff]
    %v4612 = vld [vmem:[#allocation2 + $0x10] sm:$0xff]
    %v4613 = vld [vmem:[#allocation2 + $0x20] sm:$0xff]
    %v4614 = vld [vmem:[#allocation2 + $0x30] sm:$0xff]
    %v4615 = vld [vmem:[#allocation2 + $0x40] sm:$0xff]
    %v4616 = vld [vmem:[#allocation2 + $0x50] sm:$0xff]
    %4623 = vrot.lane.b32.xlu0 %v4611, 32
    %v4624 = vpop.permute.xlu0 %4623
    %4625 = vrot.lane.b32.xlu0 %v4612, 32
    %v4626 = vpop.permute.xlu0 %4625
    %4627 = vrot.lane.b32.xlu0 %v4613, 32
    %v4628 = vpop.permute.xlu0 %4627
    %4629 = vrot.lane.b32.xlu0 %v4614, 32
    %v4630 = vpop.permute.xlu0 %4629
    %4631 = vrot.lane.b32.xlu0 %v4615, 32
    %v4632 = vpop.permute.xlu0 %4631
    %4633 = vrot.lane.b32.xlu0 %v4616, 32
    %v4634 = vpop.permute.xlu0 %4633
    %4642 = vrot.lane.b32.xlu0 %v4608, 80
    %v4643 = vpop.permute.xlu0 %4642
    %vm4645 = vcmask 392192
    %v4647 = vsel %vm4645, %v4610, 0
    %4649 = vmatprep.subr.mxu0 0.0
    %4650 = vmatpush1.msra.mxu0 %v4624
    %4651 = vmatprep.subr.mxu0 0.0
    %4652 = vmatpush1.msra.mxu0 %v4626
    %4653 = vmatprep.subr.mxu0 0.0
    %4654 = vmatpush1.msra.mxu0 %v4628
    %4655 = vmatprep.subr.mxu0 0.0
    %4656 = vmatpush1.msra.mxu0 %v4630
    %4657 = vmatprep.subr.mxu0 0.0
    %4658 = vmatpush1.msra.mxu0 %v4632
    %4659 = vmatprep.subr.mxu0 0.0
    %4660 = vmatpush1.msra.mxu0 %v4634
    %4661 = vmatprep.subr.mxu0 0.0
    %4662 = vmatpush1.msra.mxu0 0.0
    %4663 = vmatprep.subr.mxu0 0.0
    %4664 = vmatpush1.msra.mxu0 0.0
    %4665 = vmatprep.subr.mxu0 0.0
    %4666 = vmatpush1.msra.mxu0 0.0
    %4667 = vmatprep.subr.mxu0 0.0
    %4668 = vmatpush1.msra.mxu0 0.0
    %4669 = vmatprep.subr.mxu0 0.0
    %4670 = vmatpush1.msra.mxu0 0.0
    %4671 = vmatprep.subr.mxu0 0.0
    %4672 = vmatpush1.msra.mxu0 0.0
    %4673 = vmatprep.subr.mxu0 0.0
    %4674 = vmatpush1.msra.mxu0 0.0
    %4675 = vmatprep.subr.mxu0 0.0
    %4676 = vmatpush1.msra.mxu0 0.0
    %4677 = vmatprep.subr.mxu0 0.0
    %4678 = vmatpush1.msra.mxu0 0.0
    %4679 = vmatprep.subr.mxu0 0.0
    %4680 = vmatpush1.msra.mxu0 0.0
    %4681 = vmatprep.subr.mxu0 0.0
    %4682 = vmatpush1.msra.mxu0 0.0
    %4683 = vmatprep.subr.mxu0 0.0
    %4684 = vmatpush1.msra.mxu0 0.0
    %4685 = vmatprep.subr.mxu0 0.0
    %4686 = vmatpush1.msra.mxu0 0.0
    %4687 = vmatprep.subr.mxu0 0.0
    %4688 = vmatpush1.msra.mxu0 0.0
    %4689 = vmatprep.subr.mxu0 0.0
    %4690 = vmatpush1.msra.mxu0 0.0
    %4691 = vmatprep.subr.mxu0 0.0
    %4692 = vmatpush1.msra.mxu0 0.0
    %4693 = vmatprep.subr.mxu0 0.0
    %4694 = vmatpush1.msra.mxu0 0.0
    %4695 = vmatprep.subr.mxu0 0.0
    %4696 = vmatpush1.msra.mxu0 0.0
    %4697 = vmatprep.subr.mxu0 0.0
    %4698 = vmatpush1.msra.mxu0 0.0
    %4699 = vmatprep.subr.mxu0 0.0
    %4700 = vmatpush1.msra.mxu0 0.0
    %4701 = vmatprep.subr.mxu0 0.0
    %4702 = vmatpush1.msra.mxu0 0.0
    %4703 = vmatprep.subr.mxu0 0.0
    %4704 = vmatpush1.msra.mxu0 0.0
    %4705 = vmatprep.subr.mxu0 0.0
    %4706 = vmatpush1.msra.mxu0 0.0
    %4707 = vmatprep.subr.mxu0 0.0
    %4708 = vmatpush1.msra.mxu0 0.0
    %4709 = vmatprep.subr.mxu0 0.0
    %4710 = vmatpush1.msra.mxu0 0.0
    %4711 = vmatprep.subr.mxu0 0.0
    %4712 = vmatpush1.msra.mxu0 0.0
    %4713 = vmatprep.mubr.f32.mxu0 0.0
    %4714 = vmatmul.mubr.f32.gmra.mrb[0].mxu0 %v4647
    %v4715 = vpop.f32.mrb[0].mxu0
    %v4716 = vadd.f32 %v4643, %v4715
    %v4717 = vpop.f32.mrb[0].mxu0
    %4718 = vdwg.mxu0
    %v4719 = vmax.f32 %v4716, 0.0
    %v4720 = vld [vmem:[#allocation2 + $0x8] sm:$0xff]
    %v4721 = vld [vmem:[#allocation2 + $0x18] sm:$0xff]
    %v4722 = vld [vmem:[#allocation2 + $0x28] sm:$0xff]
    %v4723 = vld [vmem:[#allocation2 + $0x38] sm:$0xff]
    %4724 = vrot.lane.b32.xlu0 %v4608, 48
    %v4725 = vpop.permute.xlu0 %4724
    %v4728 = vsel %vm250, %v4719, 0
    %4730 = vmatprep.subr.mxu0 0.0
    %4731 = vmatpush1.msra.mxu0 %v4720
    %4732 = vmatprep.subr.mxu0 0.0
    %4733 = vmatpush1.msra.mxu0 %v4721
    %4734 = vmatprep.subr.mxu0 0.0
    %4735 = vmatpush1.msra.mxu0 %v4722
    %4736 = vmatprep.subr.mxu0 0.0
    %4737 = vmatpush1.msra.mxu0 %v4723
    %4738 = vmatprep.subr.mxu0 0.0
    %4739 = vmatpush1.msra.mxu0 0.0
    %4740 = vmatprep.subr.mxu0 0.0
    %4741 = vmatpush1.msra.mxu0 0.0
    %4742 = vmatprep.subr.mxu0 0.0
    %4743 = vmatpush1.msra.mxu0 0.0
    %4744 = vmatprep.subr.mxu0 0.0
    %4745 = vmatpush1.msra.mxu0 0.0
    %4746 = vmatprep.subr.mxu0 0.0
    %4747 = vmatpush1.msra.mxu0 0.0
    %4748 = vmatprep.subr.mxu0 0.0
    %4749 = vmatpush1.msra.mxu0 0.0
    %4750 = vmatprep.subr.mxu0 0.0
    %4751 = vmatpush1.msra.mxu0 0.0
    %4752 = vmatprep.subr.mxu0 0.0
    %4753 = vmatpush1.msra.mxu0 0.0
    %4754 = vmatprep.subr.mxu0 0.0
    %4755 = vmatpush1.msra.mxu0 0.0
    %4756 = vmatprep.subr.mxu0 0.0
    %4757 = vmatpush1.msra.mxu0 0.0
    %4758 = vmatprep.subr.mxu0 0.0
    %4759 = vmatpush1.msra.mxu0 0.0
    %4760 = vmatprep.subr.mxu0 0.0
    %4761 = vmatpush1.msra.mxu0 0.0
    %4762 = vmatprep.subr.mxu0 0.0
    %4763 = vmatpush1.msra.mxu0 0.0
    %4764 = vmatprep.subr.mxu0 0.0
    %4765 = vmatpush1.msra.mxu0 0.0
    %4766 = vmatprep.subr.mxu0 0.0
    %4767 = vmatpush1.msra.mxu0 0.0
    %4768 = vmatprep.subr.mxu0 0.0
    %4769 = vmatpush1.msra.mxu0 0.0
    %4770 = vmatprep.subr.mxu0 0.0
    %4771 = vmatpush1.msra.mxu0 0.0
    %4772 = vmatprep.subr.mxu0 0.0
    %4773 = vmatpush1.msra.mxu0 0.0
    %4774 = vmatprep.subr.mxu0 0.0
    %4775 = vmatpush1.msra.mxu0 0.0
    %4776 = vmatprep.subr.mxu0 0.0
    %4777 = vmatpush1.msra.mxu0 0.0
    %4778 = vmatprep.subr.mxu0 0.0
    %4779 = vmatpush1.msra.mxu0 0.0
    %4780 = vmatprep.subr.mxu0 0.0
    %4781 = vmatpush1.msra.mxu0 0.0
    %4782 = vmatprep.subr.mxu0 0.0
    %4783 = vmatpush1.msra.mxu0 0.0
    %4784 = vmatprep.subr.mxu0 0.0
    %4785 = vmatpush1.msra.mxu0 0.0
    %4786 = vmatprep.subr.mxu0 0.0
    %4787 = vmatpush1.msra.mxu0 0.0
    %4788 = vmatprep.subr.mxu0 0.0
    %4789 = vmatpush1.msra.mxu0 0.0
    %4790 = vmatprep.subr.mxu0 0.0
    %4791 = vmatpush1.msra.mxu0 0.0
    %4792 = vmatprep.subr.mxu0 0.0
    %4793 = vmatpush1.msra.mxu0 0.0
    %4794 = vmatprep.mubr.f32.mxu0 0.0
    %4795 = vmatmul.mubr.f32.gmra.mrb[0].mxu0 %v4728
    %v4796 = vpop.f32.mrb[0].mxu0
    %v4797 = vadd.f32 %v4725, %v4796
    %v4798 = vpop.f32.mrb[0].mxu0
    %4799 = vdwg.mxu0
    %v4800 = vmax.f32 %v4797, 0.0
    %v4801 = vld [vmem:[#allocation2 + $0x8] ss:$0 sm:$0xff]
    %4803 = vset.pattern.permute.xlu0 96
    %4804 = vperm.xlu0 %4803, %v4604
    %v4805 = vpop.permute.xlu0 %4804
    %4808 = vrot.lane.b32.xlu0 %v4801, 112
    %v4809 = vpop.permute.xlu0 %4808
    %vm4810 = vcmask 130048
    %v4811 = vsel %vm4810, %v4809, 0
    %v4814 = vsel %vm4810, %v4800, 0
    %4816 = vmatprep.subr.mxu0 0.0
    %4817 = vmatpush1.xpose.msra.mxu0 %v4814
    %4818 = vmatprep.subr.mxu0 0.0
    %4819 = vmatpush1.xpose.msra.mxu0 0.0
    %4820 = vmatprep.subr.mxu0 0.0
    %4821 = vmatpush1.xpose.msra.mxu0 0.0
    %4822 = vmatprep.subr.mxu0 0.0
    %4823 = vmatpush1.xpose.msra.mxu0 0.0
    %4824 = vmatprep.subr.mxu0 0.0
    %4825 = vmatpush1.xpose.msra.mxu0 0.0
    %4826 = vmatprep.subr.mxu0 0.0
    %4827 = vmatpush1.xpose.msra.mxu0 0.0
    %4828 = vmatprep.subr.mxu0 0.0
    %4829 = vmatpush1.xpose.msra.mxu0 0.0
    %4830 = vmatprep.subr.mxu0 0.0
    %4831 = vmatpush1.xpose.msra.mxu0 0.0
    %4832 = vmatprep.subr.mxu0 0.0
    %4833 = vmatpush1.xpose.msra.mxu0 0.0
    %4834 = vmatprep.subr.mxu0 0.0
    %4835 = vmatpush1.xpose.msra.mxu0 0.0
    %4836 = vmatprep.subr.mxu0 0.0
    %4837 = vmatpush1.xpose.msra.mxu0 0.0
    %4838 = vmatprep.subr.mxu0 0.0
    %4839 = vmatpush1.xpose.msra.mxu0 0.0
    %4840 = vmatprep.subr.mxu0 0.0
    %4841 = vmatpush1.xpose.msra.mxu0 0.0
    %4842 = vmatprep.subr.mxu0 0.0
    %4843 = vmatpush1.xpose.msra.mxu0 0.0
    %4844 = vmatprep.subr.mxu0 0.0
    %4845 = vmatpush1.xpose.msra.mxu0 0.0
    %4846 = vmatprep.subr.mxu0 0.0
    %4847 = vmatpush1.xpose.msra.mxu0 0.0
    %4848 = vmatprep.subr.mxu0 0.0
    %4849 = vmatpush1.xpose.msra.mxu0 0.0
    %4850 = vmatprep.subr.mxu0 0.0
    %4851 = vmatpush1.xpose.msra.mxu0 0.0
    %4852 = vmatprep.subr.mxu0 0.0
    %4853 = vmatpush1.xpose.msra.mxu0 0.0
    %4854 = vmatprep.subr.mxu0 0.0
    %4855 = vmatpush1.xpose.msra.mxu0 0.0
    %4856 = vmatprep.subr.mxu0 0.0
    %4857 = vmatpush1.xpose.msra.mxu0 0.0
    %4858 = vmatprep.subr.mxu0 0.0
    %4859 = vmatpush1.xpose.msra.mxu0 0.0
    %4860 = vmatprep.subr.mxu0 0.0
    %4861 = vmatpush1.xpose.msra.mxu0 0.0
    %4862 = vmatprep.subr.mxu0 0.0
    %4863 = vmatpush1.xpose.msra.mxu0 0.0
    %4864 = vmatprep.subr.mxu0 0.0
    %4865 = vmatpush1.xpose.msra.mxu0 0.0
    %4866 = vmatprep.subr.mxu0 0.0
    %4867 = vmatpush1.xpose.msra.mxu0 0.0
    %4868 = vmatprep.subr.mxu0 0.0
    %4869 = vmatpush1.xpose.msra.mxu0 0.0
    %4870 = vmatprep.subr.mxu0 0.0
    %4871 = vmatpush1.xpose.msra.mxu0 0.0
    %4872 = vmatprep.subr.mxu0 0.0
    %4873 = vmatpush1.xpose.msra.mxu0 0.0
    %4874 = vmatprep.subr.mxu0 0.0
    %4875 = vmatpush1.xpose.msra.mxu0 0.0
    %4876 = vmatprep.subr.mxu0 0.0
    %4877 = vmatpush1.xpose.msra.mxu0 0.0
    %4878 = vmatprep.subr.mxu0 0.0
    %4879 = vmatpush1.xpose.msra.mxu0 0.0
    %4880 = vmatprep.mubr.f32.mxu0 0.0
    %4881 = vmatmul.mubr.f32.gmra.mrb[0].mxu0 %v4811
    %v4882 = vpop.f32.mrb[0].mxu0
    %v4883 = vadd.f32 %v4805, %v4882
    %v4884 = vpop.f32.mrb[0].mxu0
    %4885 = vdwg.mxu0
    %vm4886 = vcmask 57344
    %4887 = vst.msk [vmem:[#allocation5] sm:$0x1] %vm4886, %v4883
    // Predicated region
    $region30: #{recurrent_net_forward.1} parent=1 // pred_check
      _
    $region31: #{recurrent_net_forward.1} parent=1 // pred_check_branch
      %4889 = sbr.rel (0) target = $region33
    $region32: #{recurrent_net_forward.1} parent=1 // pred_region
      %s4891 = ssub.s32 16, 16
      %4892 = vsyncadd [#allocation4], %s4891
      %s4894 = sshll.u32 [#allocation5], 4
      %s4895 = int_to_ptr.vmem [resolvable:$true] %s4894
      %4897 = dma.vmem_to_hbm [thread:$0]  %s4895, 16, %s6, [#allocation4]
    $region33: #{recurrent_net_forward.1} parent=1 // pred_fallthru
      _
    // Predicated region
    $region34: #{recurrent_net_forward.1} parent=1 // pred_check
      _
    $region35: #{recurrent_net_forward.1} parent=1 // pred_check_branch
      %4899 = sbr.rel (0) target = $region37
    $region36: #{recurrent_net_forward.1} parent=1 // pred_region
      _
    $region37: #{recurrent_net_forward.1} parent=1 // pred_fallthru
      _
    // Predicated region
    $region38: #{recurrent_net_forward.1} parent=1 // pred_check
      _
    $region39: #{recurrent_net_forward.1} parent=1 // pred_check_branch
      %4901 = sbr.rel (0) target = $region41
    $region40: #{recurrent_net_forward.1} parent=1 // pred_region
      %4902 = dma.done [#allocation4], 16
    $region41: #{recurrent_net_forward.1} parent=1 // pred_fallthru
      _
    // Predicated region
    $region42: #{recurrent_net_forward.1} parent=1 // pred_check
      _
    $region43: #{recurrent_net_forward.1} parent=1 // pred_check_branch
      %4904 = sbr.rel (0) target = $region45
    $region44: #{recurrent_net_forward.1} parent=1 // pred_region
      _
    $region45: #{recurrent_net_forward.1} parent=1 // pred_fallthru
      _
    %4905 = vsyncpa [#allocation3], 1
    %4906 = vsyncpa [#allocation4], 1

</llo_original>
